<compile_context>
chip_gen: v5e
topology: v5e:2x2
jax: 0.10.0
libtpu: 0.0.40
codegen_flags: <defaults>
</compile_context>

<pallas_src>
import jax
import jax.numpy as jnp
from jax.experimental import pallas as pl
from jax.experimental.pallas import tpu as pltpu


def _round_up(n, m):
    return ((n + m - 1) // m) * m


# ----------------------------- Pallas kernels ------------------------------ #

def _conv_pool_kernel(a_ref, w_ref, b_ref, o_ref):
    # a_ref: (4, tm, Kp) -- one im2col row-block per 2x2 pool offset.
    # w_ref: (Kp, Cout), b_ref: (1, Cout), o_ref: (tm, Cout).
    w = w_ref[...]
    p0 = jnp.dot(a_ref[0], w, preferred_element_type=jnp.float32)
    p1 = jnp.dot(a_ref[1], w, preferred_element_type=jnp.float32)
    p2 = jnp.dot(a_ref[2], w, preferred_element_type=jnp.float32)
    p3 = jnp.dot(a_ref[3], w, preferred_element_type=jnp.float32)
    # bias is constant across the 4 pooled candidates -> add after the max.
    o_ref[...] = jnp.maximum(jnp.maximum(p0, p1), jnp.maximum(p2, p3)) + b_ref[...]


def _mlp_kernel(x_ref, w1_ref, b1_ref, w2_ref, b2_ref, o_ref):
    h = jnp.dot(x_ref[...], w1_ref[...], preferred_element_type=jnp.float32) + b1_ref[...]
    o_ref[...] = jnp.dot(h, w2_ref[...], preferred_element_type=jnp.float32) + b2_ref[...]


# ------------------------------- conv glue --------------------------------- #

def _pool_offset_im2col(x, k, pad):
    """x: (B, H, W, C) NHWC -> (4, Mp, Kp) patch blocks, one per 2x2 pool offset.

    Block o = (dy, dx) holds the im2col rows for conv output positions
    (2i+dy, 2j+dx); taking the elementwise max over the 4 matmul results
    fuses the 2x2/stride-2 max-pool into the conv kernel.
    """
    B, H, W, C = x.shape
    OHp, OWp = H // 2, W // 2
    xp = jnp.pad(x, ((0, 0), (pad, pad), (pad, pad), (0, 0)))
    K = k * k * C
    Kp = _round_up(K, 128)
    blocks = []
    for dy in (0, 1):
        for dx in (0, 1):
            taps = [
                xp[:, dy + kh: dy + kh + H: 2, dx + kw: dx + kw + W: 2, :]
                for kh in range(k) for kw in range(k)
            ]
            patch = jnp.stack(taps, axis=3)                # (B, OHp, OWp, k*k, C)
            blocks.append(patch.reshape(B * OHp * OWp, K))
    a = jnp.stack(blocks, axis=0)                          # (4, Mp, K)
    if Kp != K:
        a = jnp.pad(a, ((0, 0), (0, 0), (0, Kp - K)))      # lane-align K
    return a, (B, OHp, OWp)


def conv_pool(x, wmat, bias, *, k=5, pad=2):
    """Fused Conv2d(k=5, pad=2) + MaxPool2d(2) on NHWC input.

    wmat: (Kp, Cout) pre-transposed, K-padded conv weight; bias: (1, Cout).
    Returns (B, H//2, W//2, Cout).
    """
    a, (B, OHp, OWp) = _pool_offset_im2col(x, k, pad)
    Mp = B * OHp * OWp
    Kp, Cout = wmat.shape
    # Two grid steps when possible so both v7x TensorCores get work.
    tm = Mp // 2 if (Mp // 2) >= 8 and (Mp // 2) % 8 == 0 else Mp
    grid = (Mp // tm,)
    out = pl.pallas_call(
        _conv_pool_kernel,
        out_shape=jax.ShapeDtypeStruct((Mp, Cout), jnp.float32),
        grid_spec=pltpu.PrefetchScalarGridSpec(
            num_scalar_prefetch=0,
            grid=grid,
            in_specs=[
                pl.BlockSpec((4, tm, Kp), lambda i: (0, i, 0)),
                pl.BlockSpec((Kp, Cout), lambda i: (0, 0)),
                pl.BlockSpec((1, Cout), lambda i: (0, 0)),
            ],
            out_specs=pl.BlockSpec((tm, Cout), lambda i: (i, 0)),
        ),
        compiler_params=pltpu.CompilerParams(dimension_semantics=("parallel",)),
        cost_estimate=pl.CostEstimate(
            flops=2 * 4 * Mp * Kp * Cout,
            transcendentals=0,
            bytes_accessed=4 * (4 * Mp * Kp + Kp * Cout + Mp * Cout),
        ),
    )(a, wmat, bias)
    return out.reshape(B, OHp, OWp, Cout)


def mlp(x, w1, b1, w2, b2):
    """Fused Linear(1024->64) + Linear(64->10). All operands fully VMEM-resident."""
    B = x.shape[0]
    N = w2.shape[1]
    return pl.pallas_call(
        _mlp_kernel,
        out_shape=jax.ShapeDtypeStruct((B, N), jnp.float32),
        cost_estimate=pl.CostEstimate(
            flops=2 * B * (w1.shape[0] * w1.shape[1] + w2.shape[0] * w2.shape[1]),
            transcendentals=0,
            bytes_accessed=4 * (x.size + w1.size + w2.size + B * N),
        ),
    )(x, w1, b1, w2, b2)


# --------------------------- parameter preparation -------------------------- #

def init_params(key):
    """PyTorch-layout parameters (as nn.Conv2d / nn.Linear would hold them)."""
    def conv_init(key, cout, cin, k):
        kw_, kb_ = jax.random.split(key)
        bound = 1.0 / jnp.sqrt(cin * k * k)
        w = jax.random.uniform(kw_, (cout, cin, k, k), jnp.float32, -bound, bound)
        b = jax.random.uniform(kb_, (cout,), jnp.float32, -bound, bound)
        return w, b

    def linear_init(key, cout, cin):
        kw_, kb_ = jax.random.split(key)
        bound = 1.0 / jnp.sqrt(cin)
        w = jax.random.uniform(kw_, (cout, cin), jnp.float32, -bound, bound)
        b = jax.random.uniform(kb_, (cout,), jnp.float32, -bound, bound)
        return w, b

    ks = jax.random.split(key, 5)
    return {
        "conv1": conv_init(ks[0], 32, 3, 5),
        "conv2": conv_init(ks[1], 32, 32, 5),
        "conv3": conv_init(ks[2], 64, 32, 5),
        "fc1": linear_init(ks[3], 64, 64 * 4 * 4),
        "fc2": linear_init(ks[4], 10, 64),
    }


def prepare_params(params, *, k=5):
    """One-time conversion into kernel-friendly layouts (done outside the hot path)."""
    def conv_prep(w, b):
        cout, cin = w.shape[0], w.shape[1]
        K = k * k * cin
        Kp = _round_up(K, 128)
        # column order (kh, kw, cin) to match the im2col tap order.
        wmat = jnp.transpose(w, (2, 3, 1, 0)).reshape(K, cout)
        wmat = jnp.pad(wmat, ((0, Kp - K), (0, 0)))
        return wmat, b.reshape(1, cout)

    w1, b1 = params["fc1"]           # (64, 1024), in-index = c*16 + oh*4 + ow
    w2, b2 = params["fc2"]           # (10, 64)
    # Reorder fc1's input dim from PyTorch's NCHW flatten (c, oh, ow) to the
    # NHWC flatten (oh, ow, c) produced by the conv3+pool kernel output.
    w1k = jnp.transpose(w1.reshape(64, 64, 4, 4), (2, 3, 1, 0)).reshape(64 * 4 * 4, 64)
    return {
        "conv1": conv_prep(*params["conv1"]),
        "conv2": conv_prep(*params["conv2"]),
        "conv3": conv_prep(*params["conv3"]),
        "fc": (w1k, b1.reshape(1, 64), jnp.transpose(w2), b2.reshape(1, 10)),
    }


# ----------------------------- Net (forward) -------------------------------- #

def net_forward(prepared, x_nchw):
    # NCHW -> NHWC for the kernels.
    x = jnp.transpose(x_nchw, (0, 2, 3, 1)).astype(jnp.float32)
    x = conv_pool(x, *prepared["conv1"])    # (B, 16, 16, 32)
    x = conv_pool(x, *prepared["conv2"])    # (B, 8, 8, 32)
    x = conv_pool(x, *prepared["conv3"])    # (B, 4, 4, 64)
    B = x.shape[0]
    x = x.reshape(B, 4 * 4 * 64)            # NHWC flatten; fc1 weight pre-permuted to match
    w1, b1, w2, b2 = prepared["fc"]
    return mlp(x, w1, b1, w2, b2)           # (B, 10)


def net_forward_ref(params, x_nchw):
    # Pure-JAX reference (NCHW throughout) mirroring the PyTorch module exactly.
    x = x_nchw.astype(jnp.float32)

    def conv(x, w, b):
        y = jax.lax.conv_general_dilated(
            x, w, (1, 1), ((2, 2), (2, 2)),
            dimension_numbers=("NCHW", "OIHW", "NCHW"))
        return y + b[None, :, None, None]

    def pool(x):
        return jax.lax.reduce_window(
            x, -jnp.inf, jax.lax.max, (1, 1, 2, 2), (1, 1, 2, 2), "VALID")

    x = pool(conv(x, *params["conv1"]))
    x = pool(conv(x, *params["conv2"]))
    x = pool(conv(x, *params["conv3"]))
    x = x.reshape(x.shape[0], -1)
    w1, b1 = params["fc1"]
    x = x @ w1.T + b1
    w2, b2 = params["fc2"]
    x = x @ w2.T + b2
    return x


if __name__ == "__main__":
    key = jax.random.PRNGKey(0)
    kp, kx = jax.random.split(key)
    params = init_params(kp)
    prepared = prepare_params(params)                        # one-time layout prep
    x = jax.random.normal(kx, (2, 3, 32, 32), jnp.float32)   # CIFAR-like NCHW input

    out = jax.jit(net_forward)(prepared, x)
    out = jax.block_until_ready(out)
    assert out.shape == (2, 10), out.shape

    ref = jax.block_until_ready(net_forward_ref(params, x))
    assert jnp.allclose(out, ref, rtol=1e-4, atol=1e-4), (out, ref)

    print("KERNEL_OK")
</pallas_src>

<mosaic_0001>
module attributes {stable_mosaic.version = 11 : i64} {
  func.func @_conv_pool_kernel(%arg0: i32, %arg1: memref<4x256x128xf32, #tpu.memory_space<vmem>>, %arg2: memref<128x32xf32, #tpu.memory_space<vmem>>, %arg3: memref<1x32xf32, #tpu.memory_space<vmem>>, %arg4: memref<256x32xf32, #tpu.memory_space<vmem>>) attributes {dimension_semantics = [#tpu.dimension_semantics<parallel>], iteration_bounds = array<i64: 2>, scalar_prefetch = 0 : i64, scratch_operands = 0 : i64, tpu.core_type = #tpu.core_type<tc>, window_params = [{transform_indices = @transform_0, window_bounds = array<i64: 4, 256, 128>}, {pipeline_mode = #tpu.pipeline_mode<synchronous>, transform_indices = @transform_1, window_bounds = array<i64: 128, 32>}, {pipeline_mode = #tpu.pipeline_mode<synchronous>, transform_indices = @transform_2, window_bounds = array<i64: 1, 32>}, {transform_indices = @transform_3, window_bounds = array<i64: 256, 32>}]} {
    %c0 = arith.constant 0 : index
    %c0_0 = arith.constant 0 : index
    %0 = vector.load %arg2[%c0, %c0_0] : memref<128x32xf32, #tpu.memory_space<vmem>>, vector<128x32xf32>
    %c0_1 = arith.constant 0 : index
    %c0_2 = arith.constant 0 : index
    %c0_3 = arith.constant 0 : index
    %1 = vector.load %arg1[%c0_1, %c0_2, %c0_3] : memref<4x256x128xf32, #tpu.memory_space<vmem>>, vector<1x256x128xf32>
    %2 = vector.shape_cast %1 : vector<1x256x128xf32> to vector<256x128xf32>
    %cst = arith.constant dense<0.000000e+00> : vector<256x32xf32>
    %3 = tpu.matmul %2, %0, %cst {dimension_numbers = #tpu.dot_dimension_numbers<[1], [0], [0], [1], [0, 0, 1, 1], [], []>} : vector<256x128xf32>, vector<128x32xf32>, vector<256x32xf32> -> vector<256x32xf32>
    %c1 = arith.constant 1 : index
    %c0_4 = arith.constant 0 : index
    %c0_5 = arith.constant 0 : index
    %4 = vector.load %arg1[%c1, %c0_4, %c0_5] : memref<4x256x128xf32, #tpu.memory_space<vmem>>, vector<1x256x128xf32>
    %5 = vector.shape_cast %4 : vector<1x256x128xf32> to vector<256x128xf32>
    %cst_6 = arith.constant dense<0.000000e+00> : vector<256x32xf32>
    %6 = tpu.matmul %5, %0, %cst_6 {dimension_numbers = #tpu.dot_dimension_numbers<[1], [0], [0], [1], [0, 0, 1, 1], [], []>} : vector<256x128xf32>, vector<128x32xf32>, vector<256x32xf32> -> vector<256x32xf32>
    %c2 = arith.constant 2 : index
    %c0_7 = arith.constant 0 : index
    %c0_8 = arith.constant 0 : index
    %7 = vector.load %arg1[%c2, %c0_7, %c0_8] : memref<4x256x128xf32, #tpu.memory_space<vmem>>, vector<1x256x128xf32>
    %8 = vector.shape_cast %7 : vector<1x256x128xf32> to vector<256x128xf32>
    %cst_9 = arith.constant dense<0.000000e+00> : vector<256x32xf32>
    %9 = tpu.matmul %8, %0, %cst_9 {dimension_numbers = #tpu.dot_dimension_numbers<[1], [0], [0], [1], [0, 0, 1, 1], [], []>} : vector<256x128xf32>, vector<128x32xf32>, vector<256x32xf32> -> vector<256x32xf32>
    %c3 = arith.constant 3 : index
    %c0_10 = arith.constant 0 : index
    %c0_11 = arith.constant 0 : index
    %10 = vector.load %arg1[%c3, %c0_10, %c0_11] : memref<4x256x128xf32, #tpu.memory_space<vmem>>, vector<1x256x128xf32>
    %11 = vector.shape_cast %10 : vector<1x256x128xf32> to vector<256x128xf32>
    %cst_12 = arith.constant dense<0.000000e+00> : vector<256x32xf32>
    %12 = tpu.matmul %11, %0, %cst_12 {dimension_numbers = #tpu.dot_dimension_numbers<[1], [0], [0], [1], [0, 0, 1, 1], [], []>} : vector<256x128xf32>, vector<128x32xf32>, vector<256x32xf32> -> vector<256x32xf32>
    %13 = arith.maximumf %3, %6 : vector<256x32xf32>
    %14 = arith.maximumf %9, %12 : vector<256x32xf32>
    %15 = arith.maximumf %13, %14 : vector<256x32xf32>
    %c0_13 = arith.constant 0 : index
    %c0_14 = arith.constant 0 : index
    %16 = vector.load %arg3[%c0_13, %c0_14] : memref<1x32xf32, #tpu.memory_space<vmem>>, vector<1x32xf32>
    %17 = vector.broadcast %16 : vector<1x32xf32> to vector<256x32xf32>
    %18 = arith.addf %15, %17 : vector<256x32xf32>
    %c0_15 = arith.constant 0 : index
    %c0_16 = arith.constant 0 : index
    %19 = vector.load %arg4[%c0_15, %c0_16] : memref<256x32xf32, #tpu.memory_space<vmem>>, vector<256x32xf32>
    tpu.vector_store %arg4[%c0_15, %c0_16], %18 {strides = array<i32>} : memref<256x32xf32, #tpu.memory_space<vmem>>, vector<256x32xf32>,
    return
  }
  func.func @transform_0(%arg0: i32) -> (i32, i32, i32) {
    %c0_i32 = arith.constant 0 : i32
    %c0_i32_0 = arith.constant 0 : i32
    %c0_i32_1 = arith.constant 0 : i32
    return %c0_i32, %arg0, %c0_i32_0 : i32, i32, i32
  }
  func.func @transform_1(%arg0: i32) -> (i32, i32) {
    %c0_i32 = arith.constant 0 : i32
    %c0_i32_0 = arith.constant 0 : i32
    %c0_i32_1 = arith.constant 0 : i32
    return %c0_i32, %c0_i32_0 : i32, i32
  }
  func.func @transform_2(%arg0: i32) -> (i32, i32) {
    %c0_i32 = arith.constant 0 : i32
    %c0_i32_0 = arith.constant 0 : i32
    %c0_i32_1 = arith.constant 0 : i32
    return %c0_i32, %c0_i32_0 : i32, i32
  }
  func.func @transform_3(%arg0: i32) -> (i32, i32) {
    %c0_i32 = arith.constant 0 : i32
    %c0_i32_0 = arith.constant 0 : i32
    return %arg0, %c0_i32 : i32, i32
  }
}

module attributes {stable_mosaic.version = 11 : i64} {
  func.func @_conv_pool_kernel(%arg0: i32, %arg1: memref<4x64x896xf32, #tpu.memory_space<vmem>>, %arg2: memref<896x32xf32, #tpu.memory_space<vmem>>, %arg3: memref<1x32xf32, #tpu.memory_space<vmem>>, %arg4: memref<64x32xf32, #tpu.memory_space<vmem>>) attributes {dimension_semantics = [#tpu.dimension_semantics<parallel>], iteration_bounds = array<i64: 2>, scalar_prefetch = 0 : i64, scratch_operands = 0 : i64, tpu.core_type = #tpu.core_type<tc>, window_params = [{transform_indices = @transform_0, window_bounds = array<i64: 4, 64, 896>}, {pipeline_mode = #tpu.pipeline_mode<synchronous>, transform_indices = @transform_1, window_bounds = array<i64: 896, 32>}, {pipeline_mode = #tpu.pipeline_mode<synchronous>, transform_indices = @transform_2, window_bounds = array<i64: 1, 32>}, {transform_indices = @transform_3, window_bounds = array<i64: 64, 32>}]} {
    %c0 = arith.constant 0 : index
    %c0_0 = arith.constant 0 : index
    %0 = vector.load %arg2[%c0, %c0_0] : memref<896x32xf32, #tpu.memory_space<vmem>>, vector<896x32xf32>
    %c0_1 = arith.constant 0 : index
    %c0_2 = arith.constant 0 : index
    %c0_3 = arith.constant 0 : index
    %1 = vector.load %arg1[%c0_1, %c0_2, %c0_3] : memref<4x64x896xf32, #tpu.memory_space<vmem>>, vector<1x64x896xf32>
    %2 = vector.shape_cast %1 : vector<1x64x896xf32> to vector<64x896xf32>
    %cst = arith.constant dense<0.000000e+00> : vector<64x32xf32>
    %3 = tpu.matmul %2, %0, %cst {dimension_numbers = #tpu.dot_dimension_numbers<[1], [0], [0], [1], [0, 0, 1, 1], [], []>} : vector<64x896xf32>, vector<896x32xf32>, vector<64x32xf32> -> vector<64x32xf32>
    %c1 = arith.constant 1 : index
    %c0_4 = arith.constant 0 : index
    %c0_5 = arith.constant 0 : index
    %4 = vector.load %arg1[%c1, %c0_4, %c0_5] : memref<4x64x896xf32, #tpu.memory_space<vmem>>, vector<1x64x896xf32>
    %5 = vector.shape_cast %4 : vector<1x64x896xf32> to vector<64x896xf32>
    %cst_6 = arith.constant dense<0.000000e+00> : vector<64x32xf32>
    %6 = tpu.matmul %5, %0, %cst_6 {dimension_numbers = #tpu.dot_dimension_numbers<[1], [0], [0], [1], [0, 0, 1, 1], [], []>} : vector<64x896xf32>, vector<896x32xf32>, vector<64x32xf32> -> vector<64x32xf32>
    %c2 = arith.constant 2 : index
    %c0_7 = arith.constant 0 : index
    %c0_8 = arith.constant 0 : index
    %7 = vector.load %arg1[%c2, %c0_7, %c0_8] : memref<4x64x896xf32, #tpu.memory_space<vmem>>, vector<1x64x896xf32>
    %8 = vector.shape_cast %7 : vector<1x64x896xf32> to vector<64x896xf32>
    %cst_9 = arith.constant dense<0.000000e+00> : vector<64x32xf32>
    %9 = tpu.matmul %8, %0, %cst_9 {dimension_numbers = #tpu.dot_dimension_numbers<[1], [0], [0], [1], [0, 0, 1, 1], [], []>} : vector<64x896xf32>, vector<896x32xf32>, vector<64x32xf32> -> vector<64x32xf32>
    %c3 = arith.constant 3 : index
    %c0_10 = arith.constant 0 : index
    %c0_11 = arith.constant 0 : index
    %10 = vector.load %arg1[%c3, %c0_10, %c0_11] : memref<4x64x896xf32, #tpu.memory_space<vmem>>, vector<1x64x896xf32>
    %11 = vector.shape_cast %10 : vector<1x64x896xf32> to vector<64x896xf32>
    %cst_12 = arith.constant dense<0.000000e+00> : vector<64x32xf32>
    %12 = tpu.matmul %11, %0, %cst_12 {dimension_numbers = #tpu.dot_dimension_numbers<[1], [0], [0], [1], [0, 0, 1, 1], [], []>} : vector<64x896xf32>, vector<896x32xf32>, vector<64x32xf32> -> vector<64x32xf32>
    %13 = arith.maximumf %3, %6 : vector<64x32xf32>
    %14 = arith.maximumf %9, %12 : vector<64x32xf32>
    %15 = arith.maximumf %13, %14 : vector<64x32xf32>
    %c0_13 = arith.constant 0 : index
    %c0_14 = arith.constant 0 : index
    %16 = vector.load %arg3[%c0_13, %c0_14] : memref<1x32xf32, #tpu.memory_space<vmem>>, vector<1x32xf32>
    %17 = vector.broadcast %16 : vector<1x32xf32> to vector<64x32xf32>
    %18 = arith.addf %15, %17 : vector<64x32xf32>
    %c0_15 = arith.constant 0 : index
    %c0_16 = arith.constant 0 : index
    %19 = vector.load %arg4[%c0_15, %c0_16] : memref<64x32xf32, #tpu.memory_space<vmem>>, vector<64x32xf32>
    tpu.vector_store %arg4[%c0_15, %c0_16], %18 {strides = array<i32>} : memref<64x32xf32, #tpu.memory_space<vmem>>, vector<64x32xf32>,
    return
  }
  func.func @transform_0(%arg0: i32) -> (i32, i32, i32) {
    %c0_i32 = arith.constant 0 : i32
    %c0_i32_0 = arith.constant 0 : i32
    %c0_i32_1 = arith.constant 0 : i32
    return %c0_i32, %arg0, %c0_i32_0 : i32, i32, i32
  }
  func.func @transform_1(%arg0: i32) -> (i32, i32) {
    %c0_i32 = arith.constant 0 : i32
    %c0_i32_0 = arith.constant 0 : i32
    %c0_i32_1 = arith.constant 0 : i32
    return %c0_i32, %c0_i32_0 : i32, i32
  }
  func.func @transform_2(%arg0: i32) -> (i32, i32) {
    %c0_i32 = arith.constant 0 : i32
    %c0_i32_0 = arith.constant 0 : i32
    %c0_i32_1 = arith.constant 0 : i32
    return %c0_i32, %c0_i32_0 : i32, i32
  }
  func.func @transform_3(%arg0: i32) -> (i32, i32) {
    %c0_i32 = arith.constant 0 : i32
    %c0_i32_0 = arith.constant 0 : i32
    return %arg0, %c0_i32 : i32, i32
  }
}

module attributes {stable_mosaic.version = 11 : i64} {
  func.func @_conv_pool_kernel(%arg0: i32, %arg1: memref<4x16x896xf32, #tpu.memory_space<vmem>>, %arg2: memref<896x64xf32, #tpu.memory_space<vmem>>, %arg3: memref<1x64xf32, #tpu.memory_space<vmem>>, %arg4: memref<16x64xf32, #tpu.memory_space<vmem>>) attributes {dimension_semantics = [#tpu.dimension_semantics<parallel>], iteration_bounds = array<i64: 2>, scalar_prefetch = 0 : i64, scratch_operands = 0 : i64, tpu.core_type = #tpu.core_type<tc>, window_params = [{transform_indices = @transform_0, window_bounds = array<i64: 4, 16, 896>}, {pipeline_mode = #tpu.pipeline_mode<synchronous>, transform_indices = @transform_1, window_bounds = array<i64: 896, 64>}, {pipeline_mode = #tpu.pipeline_mode<synchronous>, transform_indices = @transform_2, window_bounds = array<i64: 1, 64>}, {transform_indices = @transform_3, window_bounds = array<i64: 16, 64>}]} {
    %c0 = arith.constant 0 : index
    %c0_0 = arith.constant 0 : index
    %0 = vector.load %arg2[%c0, %c0_0] : memref<896x64xf32, #tpu.memory_space<vmem>>, vector<896x64xf32>
    %c0_1 = arith.constant 0 : index
    %c0_2 = arith.constant 0 : index
    %c0_3 = arith.constant 0 : index
    %1 = vector.load %arg1[%c0_1, %c0_2, %c0_3] : memref<4x16x896xf32, #tpu.memory_space<vmem>>, vector<1x16x896xf32>
    %2 = vector.shape_cast %1 : vector<1x16x896xf32> to vector<16x896xf32>
    %cst = arith.constant dense<0.000000e+00> : vector<16x64xf32>
    %3 = tpu.matmul %2, %0, %cst {dimension_numbers = #tpu.dot_dimension_numbers<[1], [0], [0], [1], [0, 0, 1, 1], [], []>} : vector<16x896xf32>, vector<896x64xf32>, vector<16x64xf32> -> vector<16x64xf32>
    %c1 = arith.constant 1 : index
    %c0_4 = arith.constant 0 : index
    %c0_5 = arith.constant 0 : index
    %4 = vector.load %arg1[%c1, %c0_4, %c0_5] : memref<4x16x896xf32, #tpu.memory_space<vmem>>, vector<1x16x896xf32>
    %5 = vector.shape_cast %4 : vector<1x16x896xf32> to vector<16x896xf32>
    %cst_6 = arith.constant dense<0.000000e+00> : vector<16x64xf32>
    %6 = tpu.matmul %5, %0, %cst_6 {dimension_numbers = #tpu.dot_dimension_numbers<[1], [0], [0], [1], [0, 0, 1, 1], [], []>} : vector<16x896xf32>, vector<896x64xf32>, vector<16x64xf32> -> vector<16x64xf32>
    %c2 = arith.constant 2 : index
    %c0_7 = arith.constant 0 : index
    %c0_8 = arith.constant 0 : index
    %7 = vector.load %arg1[%c2, %c0_7, %c0_8] : memref<4x16x896xf32, #tpu.memory_space<vmem>>, vector<1x16x896xf32>
    %8 = vector.shape_cast %7 : vector<1x16x896xf32> to vector<16x896xf32>
    %cst_9 = arith.constant dense<0.000000e+00> : vector<16x64xf32>
    %9 = tpu.matmul %8, %0, %cst_9 {dimension_numbers = #tpu.dot_dimension_numbers<[1], [0], [0], [1], [0, 0, 1, 1], [], []>} : vector<16x896xf32>, vector<896x64xf32>, vector<16x64xf32> -> vector<16x64xf32>
    %c3 = arith.constant 3 : index
    %c0_10 = arith.constant 0 : index
    %c0_11 = arith.constant 0 : index
    %10 = vector.load %arg1[%c3, %c0_10, %c0_11] : memref<4x16x896xf32, #tpu.memory_space<vmem>>, vector<1x16x896xf32>
    %11 = vector.shape_cast %10 : vector<1x16x896xf32> to vector<16x896xf32>
    %cst_12 = arith.constant dense<0.000000e+00> : vector<16x64xf32>
    %12 = tpu.matmul %11, %0, %cst_12 {dimension_numbers = #tpu.dot_dimension_numbers<[1], [0], [0], [1], [0, 0, 1, 1], [], []>} : vector<16x896xf32>, vector<896x64xf32>, vector<16x64xf32> -> vector<16x64xf32>
    %13 = arith.maximumf %3, %6 : vector<16x64xf32>
    %14 = arith.maximumf %9, %12 : vector<16x64xf32>
    %15 = arith.maximumf %13, %14 : vector<16x64xf32>
    %c0_13 = arith.constant 0 : index
    %c0_14 = arith.constant 0 : index
    %16 = vector.load %arg3[%c0_13, %c0_14] : memref<1x64xf32, #tpu.memory_space<vmem>>, vector<1x64xf32>
    %17 = vector.broadcast %16 : vector<1x64xf32> to vector<16x64xf32>
    %18 = arith.addf %15, %17 : vector<16x64xf32>
    %c0_15 = arith.constant 0 : index
    %c0_16 = arith.constant 0 : index
    %19 = vector.load %arg4[%c0_15, %c0_16] : memref<16x64xf32, #tpu.memory_space<vmem>>, vector<16x64xf32>
    tpu.vector_store %arg4[%c0_15, %c0_16], %18 {strides = array<i32>} : memref<16x64xf32, #tpu.memory_space<vmem>>, vector<16x64xf32>,
    return
  }
  func.func @transform_0(%arg0: i32) -> (i32, i32, i32) {
    %c0_i32 = arith.constant 0 : i32
    %c0_i32_0 = arith.constant 0 : i32
    %c0_i32_1 = arith.constant 0 : i32
    return %c0_i32, %arg0, %c0_i32_0 : i32, i32, i32
  }
  func.func @transform_1(%arg0: i32) -> (i32, i32) {
    %c0_i32 = arith.constant 0 : i32
    %c0_i32_0 = arith.constant 0 : i32
    %c0_i32_1 = arith.constant 0 : i32
    return %c0_i32, %c0_i32_0 : i32, i32
  }
  func.func @transform_2(%arg0: i32) -> (i32, i32) {
    %c0_i32 = arith.constant 0 : i32
    %c0_i32_0 = arith.constant 0 : i32
    %c0_i32_1 = arith.constant 0 : i32
    return %c0_i32, %c0_i32_0 : i32, i32
  }
  func.func @transform_3(%arg0: i32) -> (i32, i32) {
    %c0_i32 = arith.constant 0 : i32
    %c0_i32_0 = arith.constant 0 : i32
    return %arg0, %c0_i32 : i32, i32
  }
}

module attributes {stable_mosaic.version = 11 : i64} {
  func.func @_mlp_kernel(%arg0: memref<2x1024xf32, #tpu.memory_space<vmem>>, %arg1: memref<1024x64xf32, #tpu.memory_space<vmem>>, %arg2: memref<1x64xf32, #tpu.memory_space<vmem>>, %arg3: memref<64x10xf32, #tpu.memory_space<vmem>>, %arg4: memref<1x10xf32, #tpu.memory_space<vmem>>, %arg5: memref<2x10xf32, #tpu.memory_space<vmem>>) attributes {dimension_semantics = [], scalar_prefetch = 0 : i64, scratch_operands = 0 : i64, tpu.core_type = #tpu.core_type<tc>} {
    %c0 = arith.constant 0 : index
    %c0_0 = arith.constant 0 : index
    %0 = vector.load %arg0[%c0, %c0_0] : memref<2x1024xf32, #tpu.memory_space<vmem>>, vector<2x1024xf32>
    %c0_1 = arith.constant 0 : index
    %c0_2 = arith.constant 0 : index
    %1 = vector.load %arg1[%c0_1, %c0_2] : memref<1024x64xf32, #tpu.memory_space<vmem>>, vector<1024x64xf32>
    %cst = arith.constant dense<0.000000e+00> : vector<2x64xf32>
    %2 = tpu.matmul %0, %1, %cst {dimension_numbers = #tpu.dot_dimension_numbers<[1], [0], [0], [1], [0, 0, 1, 1], [], []>} : vector<2x1024xf32>, vector<1024x64xf32>, vector<2x64xf32> -> vector<2x64xf32>
    %c0_3 = arith.constant 0 : index
    %c0_4 = arith.constant 0 : index
    %3 = vector.load %arg2[%c0_3, %c0_4] : memref<1x64xf32, #tpu.memory_space<vmem>>, vector<1x64xf32>
    %4 = vector.broadcast %3 : vector<1x64xf32> to vector<2x64xf32>
    %5 = arith.addf %2, %4 : vector<2x64xf32>
    %c0_5 = arith.constant 0 : index
    %c0_6 = arith.constant 0 : index
    %6 = vector.load %arg3[%c0_5, %c0_6] : memref<64x10xf32, #tpu.memory_space<vmem>>, vector<64x10xf32>
    %cst_7 = arith.constant dense<0.000000e+00> : vector<2x10xf32>
    %7 = tpu.matmul %5, %6, %cst_7 {dimension_numbers = #tpu.dot_dimension_numbers<[1], [0], [0], [1], [0, 0, 1, 1], [], []>} : vector<2x64xf32>, vector<64x10xf32>, vector<2x10xf32> -> vector<2x10xf32>
    %c0_8 = arith.constant 0 : index
    %c0_9 = arith.constant 0 : index
    %8 = vector.load %arg4[%c0_8, %c0_9] : memref<1x10xf32, #tpu.memory_space<vmem>>, vector<1x10xf32>
    %9 = vector.broadcast %8 : vector<1x10xf32> to vector<2x10xf32>
    %10 = arith.addf %7, %9 : vector<2x10xf32>
    %c0_10 = arith.constant 0 : index
    %c0_11 = arith.constant 0 : index
    %11 = vector.load %arg5[%c0_10, %c0_11] : memref<2x10xf32, #tpu.memory_space<vmem>>, vector<2x10xf32>
    tpu.vector_store %arg5[%c0_10, %c0_11], %10 {strides = array<i32>} : memref<2x10xf32, #tpu.memory_space<vmem>>, vector<2x10xf32>,
    return
  }
}

</mosaic_0001>

<llo_original>
// kernel: net_forward.4
$region0: #{net_forward.4}
  #allocation0 [shape = 'u32[]', space=smem, size = 0x4, offset = 0x4, fixed_abs, tag = 'smem constant byte address 0x4 - core index']
  #allocation1 [shape = 'u32[72,128]{1,0:T(1,128)}', space=vmem, size = 0x9000, scoped, tag = 'internal scratch']
  %s0 = inlined_call_operand.vmem [shape: f32[4,512,128], index: 0, kind: input, shape index: {}]
  %s1 = inlined_call_operand.vmem [shape: f32[128,32], index: 1, kind: input, shape index: {}]
  %s2 = inlined_call_operand.vmem [shape: f32[1,32], index: 2, kind: input, shape index: {}]
  %s3 = inlined_call_operand.vmem [shape: f32[512,32], index: 3, kind: output, shape index: {}]
  %s4 = sld [smem:[#allocation0]]
  $region83: #{net_forward.4} parent=0
    _
  %s6 = ssub.s32 1, %s4
  %s7 = scalar_select 0, %s6, %s4
  $region1: #{net_forward.4} parent=0
    #allocation2 [shape = 'u8[1048576]{0}', space=vmem, size = 0x100000, scoped, tag = 'input window, operand 0']
    loop: start=0, step=1, limit=4
    $region2: #{net_forward.4} parent=1 // loop_pre_header
      _
    $region3: #{net_forward.4} parent=1 // loop_header
      %s9 = sphi 0, %s13
      %p10 = scmp.ge.s32.totalorder %s9, 4
      %s19 = sphi 0, %s21
      %s22 = sphi 0, %s19
      %s23 = sphi 0, %s22
      %s39 = sphi 0, %s23
      %s43 = sphi 0, %s43
      %s45 = sphi 0, %s43
      %s46 = sphi 0, %s45
      %s60 = sphi 0, %s46
      %s64 = sphi 0, %s64
      %s66 = sphi 0, %s64
      %s67 = sphi 0, %s66
      %s81 = sphi 0, %s67
      %s87 = sphi 0, %s89
      %s90 = sphi 0, %s87
      %s91 = sphi 0, %s90
      %s107 = sphi 0, %s91
    $region4: #{net_forward.4} parent=1 // loop_header_branch
      %12 = sbr.rel (%p10) target = $region8
    $region5: #{net_forward.4} parent=1 // loop_body
      %s14 = ssub.s32 %s9, 1
      %s15 = ssub.s32 %s9, 2
      %s16 = sadd.s32 %s9, 1
      %s17 = ssub.s32 %s9, %s16
      %p18 = scmp.eq.s32.totalorder %s17, 0
      %s20 = sadd.s32 %s19, 1
      %s21 = scalar_select %p18, %s19, %s20
      %p24 = pneg %p18
      %p25 = scmp.eq.s32.totalorder %s9, 1
      %p26 = por %p24, %p25
      %p27 = scmp.ne.s32.totalorder %s19, %s22
      %p28 = scmp.eq.s32.totalorder %s9, 0
      %p29 = por %p27, %p28
      %p30 = scmp.ne.s32.totalorder %s19, %s22
      %p31 = scmp.eq.s32.totalorder %s14, 1
      %p32 = por %p30, %p31
      %p33 = scmp.ne.s32.totalorder %s22, %s23
      %p34 = scmp.eq.s32.totalorder %s14, 0
      %p35 = por %p33, %p34
      %p36 = scmp.ne.s32.totalorder %s22, %s23
      %p37 = scmp.eq.s32.totalorder %s15, 1
      %p38 = por %p36, %p37
      %p40 = scmp.ne.s32.totalorder %s23, %s39
      %p41 = scmp.eq.s32.totalorder %s15, 0
      %p42 = por %p40, %p41
      %s44 = sadd.s32 %s43, 1
      %p47 = scmp.eq.s32.totalorder %s9, 1
      %p48 = scmp.ne.s32.totalorder %s43, %s45
      %p49 = scmp.eq.s32.totalorder %s9, 0
      %p50 = por %p48, %p49
      %p51 = scmp.ne.s32.totalorder %s43, %s45
      %p52 = scmp.eq.s32.totalorder %s14, 1
      %p53 = por %p51, %p52
      %p54 = scmp.ne.s32.totalorder %s45, %s46
      %p55 = scmp.eq.s32.totalorder %s14, 0
      %p56 = por %p54, %p55
      %p57 = scmp.ne.s32.totalorder %s45, %s46
      %p58 = scmp.eq.s32.totalorder %s15, 1
      %p59 = por %p57, %p58
      %p61 = scmp.ne.s32.totalorder %s46, %s60
      %p62 = scmp.eq.s32.totalorder %s15, 0
      %p63 = por %p61, %p62
      %s65 = sadd.s32 %s64, 1
      %p68 = scmp.eq.s32.totalorder %s9, 1
      %p69 = scmp.ne.s32.totalorder %s64, %s66
      %p70 = scmp.eq.s32.totalorder %s9, 0
      %p71 = por %p69, %p70
      %p72 = scmp.ne.s32.totalorder %s64, %s66
      %p73 = scmp.eq.s32.totalorder %s14, 1
      %p74 = por %p72, %p73
      %p75 = scmp.ne.s32.totalorder %s66, %s67
      %p76 = scmp.eq.s32.totalorder %s14, 0
      %p77 = por %p75, %p76
      %p78 = scmp.ne.s32.totalorder %s66, %s67
      %p79 = scmp.eq.s32.totalorder %s15, 1
      %p80 = por %p78, %p79
      %p82 = scmp.ne.s32.totalorder %s67, %s81
      %p83 = scmp.eq.s32.totalorder %s15, 0
      %p84 = por %p82, %p83
      %s85 = ssub.s32 %s9, %s16
      %p86 = scmp.eq.s32.totalorder %s85, 0
      %s88 = sadd.s32 %s87, 1
      %s89 = scalar_select %p86, %s87, %s88
      %p92 = pneg %p86
      %p93 = scmp.eq.s32.totalorder %s9, 1
      %p94 = por %p92, %p93
      %p95 = scmp.ne.s32.totalorder %s87, %s90
      %p96 = scmp.eq.s32.totalorder %s9, 0
      %p97 = por %p95, %p96
      %p98 = scmp.ne.s32.totalorder %s87, %s90
      %p99 = scmp.eq.s32.totalorder %s14, 1
      %p100 = por %p98, %p99
      %p101 = scmp.ne.s32.totalorder %s90, %s91
      %p102 = scmp.eq.s32.totalorder %s14, 0
      %p103 = por %p101, %p102
      %p104 = scmp.ne.s32.totalorder %s90, %s91
      %p105 = scmp.eq.s32.totalorder %s15, 1
      %p106 = por %p104, %p105
      %p108 = scmp.ne.s32.totalorder %s91, %s107
      %p109 = scmp.eq.s32.totalorder %s15, 0
      %p110 = por %p108, %p109
      %p111 = scmp.le.s32.totalorder 1, %s9
      %p112 = scmp.lt.s32.totalorder %s9, 3
      %p113 = pnand %p111, %p112
      %p114 = pneg %p113
      // Predicated region
      $region9: #{net_forward.4} parent=5 // pred_check
        _
      $region10: #{net_forward.4} parent=5 // pred_check_branch
        %116 = sbr.rel (%p113) target = $region12
      $region11: #{net_forward.4} parent=5 // pred_region
        %s117 = ssub.s32 %s9, 1
        // Predicated region
        $region13: #{net_forward.4} parent=11 // pred_check
          %p118 = pneg %p56
        $region14: #{net_forward.4} parent=11 // pred_check_branch
          %120 = sbr.rel (%p118) target = $region16
        $region15: #{net_forward.4} parent=11 // pred_region
          _
        $region16: #{net_forward.4} parent=11 // pred_fallthru
          _
        // Predicated region
        $region17: #{net_forward.4} parent=11 // pred_check
          %p121 = pneg %p77
        $region18: #{net_forward.4} parent=11 // pred_check_branch
          %123 = sbr.rel (%p121) target = $region20
        $region19: #{net_forward.4} parent=11 // pred_region
          _
        $region20: #{net_forward.4} parent=11 // pred_fallthru
          _
      $region12: #{net_forward.4} parent=5 // pred_fallthru
        _
      %p124 = scmp.lt.s32.totalorder %s9, 2
      // Predicated region
      $region21: #{net_forward.4} parent=5 // pred_check
        %p125 = pneg %p124
      $region22: #{net_forward.4} parent=5 // pred_check_branch
        %127 = sbr.rel (%p125) target = $region24
      $region23: #{net_forward.4} parent=5 // pred_region
        // Predicated region
        $region25: #{net_forward.4} parent=23 // pred_check
          %p128 = pneg %p29
        $region26: #{net_forward.4} parent=23 // pred_check_branch
          %130 = sbr.rel (%p128) target = $region28
        $region27: #{net_forward.4} parent=23 // pred_region
          %s131 = sand.u32 %s19, 1
          %s132 = sand.u32 %s19, 1
          %s133 = smul.addr %s132, 1024
          %s134 = scalar_lea.vmem [#allocation2], %s133
          %s135 = smul.u32 32, %s9
          %s136 = smul.addr %s135, 8
          %s137 = scalar_lea.vmem %s0, %s136
          // Predicated region
          $region29: #{net_forward.4} parent=27 // pred_check
            _
          $region30: #{net_forward.4} parent=27 // pred_check_branch
            %139 = sbr.rel (0) target = $region32
          $region31: #{net_forward.4} parent=27 // pred_region
            // Predicated region
            $region33: #{net_forward.4} parent=31 // pred_check
              _
            $region34: #{net_forward.4} parent=31 // pred_check_branch
              %141 = sbr.rel (0) target = $region36
            $region35: #{net_forward.4} parent=31 // pred_region
              // Predicated region
              $region48: #{net_forward.4} parent=35 // pred_check
                _
              $region49: #{net_forward.4} parent=35 // pred_check_branch
                %411 = sbr.rel (0) target = $region51
              $region50: #{net_forward.4} parent=35 // pred_region
                loop: start=0, step=1, limit=1
                $region52: #{net_forward.4} parent=50 // loop_pre_header
                  _
                $region53: #{net_forward.4} parent=50 // loop_header
                  %s413 = sphi 0, %s417
                  %p414 = scmp.ge.s32.totalorder %s413, 1
                  %s418 = sphi %s137, %s137
                  %s419 = sphi %s134, %s134
                $region54: #{net_forward.4} parent=50 // loop_header_branch
                  %416 = sbr.rel (%p414) target = $region58
                $region55: #{net_forward.4} parent=50 // loop_body
                  %v420 = vld [vmem:[%s418] sm:$0xff]
                  %421 = vst [vmem:[%s419] sm:$0xff] %v420
                  %v422 = vld [vmem:[%s418 + $0x8] sm:$0xff]
                  %423 = vst [vmem:[%s419 + $0x8] sm:$0xff] %v422
                  %v424 = vld [vmem:[%s418 + $0x10] sm:$0xff]
                  %425 = vst [vmem:[%s419 + $0x10] sm:$0xff] %v424
                  %v426 = vld [vmem:[%s418 + $0x18] sm:$0xff]
                  %427 = vst [vmem:[%s419 + $0x18] sm:$0xff] %v426
                  %v428 = vld [vmem:[%s418 + $0x20] sm:$0xff]
                  %429 = vst [vmem:[%s419 + $0x20] sm:$0xff] %v428
                  %v430 = vld [vmem:[%s418 + $0x28] sm:$0xff]
                  %431 = vst [vmem:[%s419 + $0x28] sm:$0xff] %v430
                  %v432 = vld [vmem:[%s418 + $0x30] sm:$0xff]
                  %433 = vst [vmem:[%s419 + $0x30] sm:$0xff] %v432
                  %v434 = vld [vmem:[%s418 + $0x38] sm:$0xff]
                  %435 = vst [vmem:[%s419 + $0x38] sm:$0xff] %v434
                  %v436 = vld [vmem:[%s418 + $0x40] sm:$0xff]
                  %437 = vst [vmem:[%s419 + $0x40] sm:$0xff] %v436
                  %v438 = vld [vmem:[%s418 + $0x48] sm:$0xff]
                  %439 = vst [vmem:[%s419 + $0x48] sm:$0xff] %v438
                  %v440 = vld [vmem:[%s418 + $0x50] sm:$0xff]
                  %441 = vst [vmem:[%s419 + $0x50] sm:$0xff] %v440
                  %v442 = vld [vmem:[%s418 + $0x58] sm:$0xff]
                  %443 = vst [vmem:[%s419 + $0x58] sm:$0xff] %v442
                  %v444 = vld [vmem:[%s418 + $0x60] sm:$0xff]
                  %445 = vst [vmem:[%s419 + $0x60] sm:$0xff] %v444
                  %v446 = vld [vmem:[%s418 + $0x68] sm:$0xff]
                  %447 = vst [vmem:[%s419 + $0x68] sm:$0xff] %v446
                  %v448 = vld [vmem:[%s418 + $0x70] sm:$0xff]
                  %449 = vst [vmem:[%s419 + $0x70] sm:$0xff] %v448
                  %v450 = vld [vmem:[%s418 + $0x78] sm:$0xff]
                  %451 = vst [vmem:[%s419 + $0x78] sm:$0xff] %v450
                  %v452 = vld [vmem:[%s418 + $0x80] sm:$0xff]
                  %453 = vst [vmem:[%s419 + $0x80] sm:$0xff] %v452
                  %v454 = vld [vmem:[%s418 + $0x88] sm:$0xff]
                  %455 = vst [vmem:[%s419 + $0x88] sm:$0xff] %v454
                  %v456 = vld [vmem:[%s418 + $0x90] sm:$0xff]
                  %457 = vst [vmem:[%s419 + $0x90] sm:$0xff] %v456
                  %v458 = vld [vmem:[%s418 + $0x98] sm:$0xff]
                  %459 = vst [vmem:[%s419 + $0x98] sm:$0xff] %v458
                  %v460 = vld [vmem:[%s418 + $0xa0] sm:$0xff]
                  %461 = vst [vmem:[%s419 + $0xa0] sm:$0xff] %v460
                  %v462 = vld [vmem:[%s418 + $0xa8] sm:$0xff]
                  %463 = vst [vmem:[%s419 + $0xa8] sm:$0xff] %v462
                  %v464 = vld [vmem:[%s418 + $0xb0] sm:$0xff]
                  %465 = vst [vmem:[%s419 + $0xb0] sm:$0xff] %v464
                  %v466 = vld [vmem:[%s418 + $0xb8] sm:$0xff]
                  %467 = vst [vmem:[%s419 + $0xb8] sm:$0xff] %v466
                  %v468 = vld [vmem:[%s418 + $0xc0] sm:$0xff]
                  %469 = vst [vmem:[%s419 + $0xc0] sm:$0xff] %v468
                  %v470 = vld [vmem:[%s418 + $0xc8] sm:$0xff]
                  %471 = vst [vmem:[%s419 + $0xc8] sm:$0xff] %v470
                  %v472 = vld [vmem:[%s418 + $0xd0] sm:$0xff]
                  %473 = vst [vmem:[%s419 + $0xd0] sm:$0xff] %v472
                  %v474 = vld [vmem:[%s418 + $0xd8] sm:$0xff]
                  %475 = vst [vmem:[%s419 + $0xd8] sm:$0xff] %v474
                  %v476 = vld [vmem:[%s418 + $0xe0] sm:$0xff]
                  %477 = vst [vmem:[%s419 + $0xe0] sm:$0xff] %v476
                  %v478 = vld [vmem:[%s418 + $0xe8] sm:$0xff]
                  %479 = vst [vmem:[%s419 + $0xe8] sm:$0xff] %v478
                  %v480 = vld [vmem:[%s418 + $0xf0] sm:$0xff]
                  %481 = vst [vmem:[%s419 + $0xf0] sm:$0xff] %v480
                  %v482 = vld [vmem:[%s418 + $0xf8] sm:$0xff]
                  %483 = vst [vmem:[%s419 + $0xf8] sm:$0xff] %v482
                  %v484 = vld [vmem:[%s418 + $0x200] sm:$0xff]
                  %485 = vst [vmem:[%s419 + $0x100] sm:$0xff] %v484
                  %v486 = vld [vmem:[%s418 + $0x208] sm:$0xff]
                  %487 = vst [vmem:[%s419 + $0x108] sm:$0xff] %v486
                  %v488 = vld [vmem:[%s418 + $0x210] sm:$0xff]
                  %489 = vst [vmem:[%s419 + $0x110] sm:$0xff] %v488
                  %v490 = vld [vmem:[%s418 + $0x218] sm:$0xff]
                  %491 = vst [vmem:[%s419 + $0x118] sm:$0xff] %v490
                  %v492 = vld [vmem:[%s418 + $0x220] sm:$0xff]
                  %493 = vst [vmem:[%s419 + $0x120] sm:$0xff] %v492
                  %v494 = vld [vmem:[%s418 + $0x228] sm:$0xff]
                  %495 = vst [vmem:[%s419 + $0x128] sm:$0xff] %v494
                  %v496 = vld [vmem:[%s418 + $0x230] sm:$0xff]
                  %497 = vst [vmem:[%s419 + $0x130] sm:$0xff] %v496
                  %v498 = vld [vmem:[%s418 + $0x238] sm:$0xff]
                  %499 = vst [vmem:[%s419 + $0x138] sm:$0xff] %v498
                  %v500 = vld [vmem:[%s418 + $0x240] sm:$0xff]
                  %501 = vst [vmem:[%s419 + $0x140] sm:$0xff] %v500
                  %v502 = vld [vmem:[%s418 + $0x248] sm:$0xff]
                  %503 = vst [vmem:[%s419 + $0x148] sm:$0xff] %v502
                  %v504 = vld [vmem:[%s418 + $0x250] sm:$0xff]
                  %505 = vst [vmem:[%s419 + $0x150] sm:$0xff] %v504
                  %v506 = vld [vmem:[%s418 + $0x258] sm:$0xff]
                  %507 = vst [vmem:[%s419 + $0x158] sm:$0xff] %v506
                  %v508 = vld [vmem:[%s418 + $0x260] sm:$0xff]
                  %509 = vst [vmem:[%s419 + $0x160] sm:$0xff] %v508
                  %v510 = vld [vmem:[%s418 + $0x268] sm:$0xff]
                  %511 = vst [vmem:[%s419 + $0x168] sm:$0xff] %v510
                  %v512 = vld [vmem:[%s418 + $0x270] sm:$0xff]
                  %513 = vst [vmem:[%s419 + $0x170] sm:$0xff] %v512
                  %v514 = vld [vmem:[%s418 + $0x278] sm:$0xff]
                  %515 = vst [vmem:[%s419 + $0x178] sm:$0xff] %v514
                  %v516 = vld [vmem:[%s418 + $0x280] sm:$0xff]
                  %517 = vst [vmem:[%s419 + $0x180] sm:$0xff] %v516
                  %v518 = vld [vmem:[%s418 + $0x288] sm:$0xff]
                  %519 = vst [vmem:[%s419 + $0x188] sm:$0xff] %v518
                  %v520 = vld [vmem:[%s418 + $0x290] sm:$0xff]
                  %521 = vst [vmem:[%s419 + $0x190] sm:$0xff] %v520
                  %v522 = vld [vmem:[%s418 + $0x298] sm:$0xff]
                  %523 = vst [vmem:[%s419 + $0x198] sm:$0xff] %v522
                  %v524 = vld [vmem:[%s418 + $0x2a0] sm:$0xff]
                  %525 = vst [vmem:[%s419 + $0x1a0] sm:$0xff] %v524
                  %v526 = vld [vmem:[%s418 + $0x2a8] sm:$0xff]
                  %527 = vst [vmem:[%s419 + $0x1a8] sm:$0xff] %v526
                  %v528 = vld [vmem:[%s418 + $0x2b0] sm:$0xff]
                  %529 = vst [vmem:[%s419 + $0x1b0] sm:$0xff] %v528
                  %v530 = vld [vmem:[%s418 + $0x2b8] sm:$0xff]
                  %531 = vst [vmem:[%s419 + $0x1b8] sm:$0xff] %v530
                  %v532 = vld [vmem:[%s418 + $0x2c0] sm:$0xff]
                  %533 = vst [vmem:[%s419 + $0x1c0] sm:$0xff] %v532
                  %v534 = vld [vmem:[%s418 + $0x2c8] sm:$0xff]
                  %535 = vst [vmem:[%s419 + $0x1c8] sm:$0xff] %v534
                  %v536 = vld [vmem:[%s418 + $0x2d0] sm:$0xff]
                  %537 = vst [vmem:[%s419 + $0x1d0] sm:$0xff] %v536
                  %v538 = vld [vmem:[%s418 + $0x2d8] sm:$0xff]
                  %539 = vst [vmem:[%s419 + $0x1d8] sm:$0xff] %v538
                  %v540 = vld [vmem:[%s418 + $0x2e0] sm:$0xff]
                  %541 = vst [vmem:[%s419 + $0x1e0] sm:$0xff] %v540
                  %v542 = vld [vmem:[%s418 + $0x2e8] sm:$0xff]
                  %543 = vst [vmem:[%s419 + $0x1e8] sm:$0xff] %v542
                  %v544 = vld [vmem:[%s418 + $0x2f0] sm:$0xff]
                  %545 = vst [vmem:[%s419 + $0x1f0] sm:$0xff] %v544
                  %v546 = vld [vmem:[%s418 + $0x2f8] sm:$0xff]
                  %547 = vst [vmem:[%s419 + $0x1f8] sm:$0xff] %v546
                  %v548 = vld [vmem:[%s418 + $0x400] sm:$0xff]
                  %549 = vst [vmem:[%s419 + $0x200] sm:$0xff] %v548
                  %v550 = vld [vmem:[%s418 + $0x408] sm:$0xff]
                  %551 = vst [vmem:[%s419 + $0x208] sm:$0xff] %v550
                  %v552 = vld [vmem:[%s418 + $0x410] sm:$0xff]
                  %553 = vst [vmem:[%s419 + $0x210] sm:$0xff] %v552
                  %v554 = vld [vmem:[%s418 + $0x418] sm:$0xff]
                  %555 = vst [vmem:[%s419 + $0x218] sm:$0xff] %v554
                  %v556 = vld [vmem:[%s418 + $0x420] sm:$0xff]
                  %557 = vst [vmem:[%s419 + $0x220] sm:$0xff] %v556
                  %v558 = vld [vmem:[%s418 + $0x428] sm:$0xff]
                  %559 = vst [vmem:[%s419 + $0x228] sm:$0xff] %v558
                  %v560 = vld [vmem:[%s418 + $0x430] sm:$0xff]
                  %561 = vst [vmem:[%s419 + $0x230] sm:$0xff] %v560
                  %v562 = vld [vmem:[%s418 + $0x438] sm:$0xff]
                  %563 = vst [vmem:[%s419 + $0x238] sm:$0xff] %v562
                  %v564 = vld [vmem:[%s418 + $0x440] sm:$0xff]
                  %565 = vst [vmem:[%s419 + $0x240] sm:$0xff] %v564
                  %v566 = vld [vmem:[%s418 + $0x448] sm:$0xff]
                  %567 = vst [vmem:[%s419 + $0x248] sm:$0xff] %v566
                  %v568 = vld [vmem:[%s418 + $0x450] sm:$0xff]
                  %569 = vst [vmem:[%s419 + $0x250] sm:$0xff] %v568
                  %v570 = vld [vmem:[%s418 + $0x458] sm:$0xff]
                  %571 = vst [vmem:[%s419 + $0x258] sm:$0xff] %v570
                  %v572 = vld [vmem:[%s418 + $0x460] sm:$0xff]
                  %573 = vst [vmem:[%s419 + $0x260] sm:$0xff] %v572
                  %v574 = vld [vmem:[%s418 + $0x468] sm:$0xff]
                  %575 = vst [vmem:[%s419 + $0x268] sm:$0xff] %v574
                  %v576 = vld [vmem:[%s418 + $0x470] sm:$0xff]
                  %577 = vst [vmem:[%s419 + $0x270] sm:$0xff] %v576
                  %v578 = vld [vmem:[%s418 + $0x478] sm:$0xff]
                  %579 = vst [vmem:[%s419 + $0x278] sm:$0xff] %v578
                  %v580 = vld [vmem:[%s418 + $0x480] sm:$0xff]
                  %581 = vst [vmem:[%s419 + $0x280] sm:$0xff] %v580
                  %v582 = vld [vmem:[%s418 + $0x488] sm:$0xff]
                  %583 = vst [vmem:[%s419 + $0x288] sm:$0xff] %v582
                  %v584 = vld [vmem:[%s418 + $0x490] sm:$0xff]
                  %585 = vst [vmem:[%s419 + $0x290] sm:$0xff] %v584
                  %v586 = vld [vmem:[%s418 + $0x498] sm:$0xff]
                  %587 = vst [vmem:[%s419 + $0x298] sm:$0xff] %v586
                  %v588 = vld [vmem:[%s418 + $0x4a0] sm:$0xff]
                  %589 = vst [vmem:[%s419 + $0x2a0] sm:$0xff] %v588
                  %v590 = vld [vmem:[%s418 + $0x4a8] sm:$0xff]
                  %591 = vst [vmem:[%s419 + $0x2a8] sm:$0xff] %v590
                  %v592 = vld [vmem:[%s418 + $0x4b0] sm:$0xff]
                  %593 = vst [vmem:[%s419 + $0x2b0] sm:$0xff] %v592
                  %v594 = vld [vmem:[%s418 + $0x4b8] sm:$0xff]
                  %595 = vst [vmem:[%s419 + $0x2b8] sm:$0xff] %v594
                  %v596 = vld [vmem:[%s418 + $0x4c0] sm:$0xff]
                  %597 = vst [vmem:[%s419 + $0x2c0] sm:$0xff] %v596
                  %v598 = vld [vmem:[%s418 + $0x4c8] sm:$0xff]
                  %599 = vst [vmem:[%s419 + $0x2c8] sm:$0xff] %v598
                  %v600 = vld [vmem:[%s418 + $0x4d0] sm:$0xff]
                  %601 = vst [vmem:[%s419 + $0x2d0] sm:$0xff] %v600
                  %v602 = vld [vmem:[%s418 + $0x4d8] sm:$0xff]
                  %603 = vst [vmem:[%s419 + $0x2d8] sm:$0xff] %v602
                  %v604 = vld [vmem:[%s418 + $0x4e0] sm:$0xff]
                  %605 = vst [vmem:[%s419 + $0x2e0] sm:$0xff] %v604
                  %v606 = vld [vmem:[%s418 + $0x4e8] sm:$0xff]
                  %607 = vst [vmem:[%s419 + $0x2e8] sm:$0xff] %v606
                  %v608 = vld [vmem:[%s418 + $0x4f0] sm:$0xff]
                  %609 = vst [vmem:[%s419 + $0x2f0] sm:$0xff] %v608
                  %v610 = vld [vmem:[%s418 + $0x4f8] sm:$0xff]
                  %611 = vst [vmem:[%s419 + $0x2f8] sm:$0xff] %v610
                  %v612 = vld [vmem:[%s418 + $0x600] sm:$0xff]
                  %613 = vst [vmem:[%s419 + $0x300] sm:$0xff] %v612
                  %v614 = vld [vmem:[%s418 + $0x608] sm:$0xff]
                  %615 = vst [vmem:[%s419 + $0x308] sm:$0xff] %v614
                  %v616 = vld [vmem:[%s418 + $0x610] sm:$0xff]
                  %617 = vst [vmem:[%s419 + $0x310] sm:$0xff] %v616
                  %v618 = vld [vmem:[%s418 + $0x618] sm:$0xff]
                  %619 = vst [vmem:[%s419 + $0x318] sm:$0xff] %v618
                  %v620 = vld [vmem:[%s418 + $0x620] sm:$0xff]
                  %621 = vst [vmem:[%s419 + $0x320] sm:$0xff] %v620
                  %v622 = vld [vmem:[%s418 + $0x628] sm:$0xff]
                  %623 = vst [vmem:[%s419 + $0x328] sm:$0xff] %v622
                  %v624 = vld [vmem:[%s418 + $0x630] sm:$0xff]
                  %625 = vst [vmem:[%s419 + $0x330] sm:$0xff] %v624
                  %v626 = vld [vmem:[%s418 + $0x638] sm:$0xff]
                  %627 = vst [vmem:[%s419 + $0x338] sm:$0xff] %v626
                  %v628 = vld [vmem:[%s418 + $0x640] sm:$0xff]
                  %629 = vst [vmem:[%s419 + $0x340] sm:$0xff] %v628
                  %v630 = vld [vmem:[%s418 + $0x648] sm:$0xff]
                  %631 = vst [vmem:[%s419 + $0x348] sm:$0xff] %v630
                  %v632 = vld [vmem:[%s418 + $0x650] sm:$0xff]
                  %633 = vst [vmem:[%s419 + $0x350] sm:$0xff] %v632
                  %v634 = vld [vmem:[%s418 + $0x658] sm:$0xff]
                  %635 = vst [vmem:[%s419 + $0x358] sm:$0xff] %v634
                  %v636 = vld [vmem:[%s418 + $0x660] sm:$0xff]
                  %637 = vst [vmem:[%s419 + $0x360] sm:$0xff] %v636
                  %v638 = vld [vmem:[%s418 + $0x668] sm:$0xff]
                  %639 = vst [vmem:[%s419 + $0x368] sm:$0xff] %v638
                  %v640 = vld [vmem:[%s418 + $0x670] sm:$0xff]
                  %641 = vst [vmem:[%s419 + $0x370] sm:$0xff] %v640
                  %v642 = vld [vmem:[%s418 + $0x678] sm:$0xff]
                  %643 = vst [vmem:[%s419 + $0x378] sm:$0xff] %v642
                  %v644 = vld [vmem:[%s418 + $0x680] sm:$0xff]
                  %645 = vst [vmem:[%s419 + $0x380] sm:$0xff] %v644
                  %v646 = vld [vmem:[%s418 + $0x688] sm:$0xff]
                  %647 = vst [vmem:[%s419 + $0x388] sm:$0xff] %v646
                  %v648 = vld [vmem:[%s418 + $0x690] sm:$0xff]
                  %649 = vst [vmem:[%s419 + $0x390] sm:$0xff] %v648
                  %v650 = vld [vmem:[%s418 + $0x698] sm:$0xff]
                  %651 = vst [vmem:[%s419 + $0x398] sm:$0xff] %v650
                  %v652 = vld [vmem:[%s418 + $0x6a0] sm:$0xff]
                  %653 = vst [vmem:[%s419 + $0x3a0] sm:$0xff] %v652
                  %v654 = vld [vmem:[%s418 + $0x6a8] sm:$0xff]
                  %655 = vst [vmem:[%s419 + $0x3a8] sm:$0xff] %v654
                  %v656 = vld [vmem:[%s418 + $0x6b0] sm:$0xff]
                  %657 = vst [vmem:[%s419 + $0x3b0] sm:$0xff] %v656
                  %v658 = vld [vmem:[%s418 + $0x6b8] sm:$0xff]
                  %659 = vst [vmem:[%s419 + $0x3b8] sm:$0xff] %v658
                  %v660 = vld [vmem:[%s418 + $0x6c0] sm:$0xff]
                  %661 = vst [vmem:[%s419 + $0x3c0] sm:$0xff] %v660
                  %v662 = vld [vmem:[%s418 + $0x6c8] sm:$0xff]
                  %663 = vst [vmem:[%s419 + $0x3c8] sm:$0xff] %v662
                  %v664 = vld [vmem:[%s418 + $0x6d0] sm:$0xff]
                  %665 = vst [vmem:[%s419 + $0x3d0] sm:$0xff] %v664
                  %v666 = vld [vmem:[%s418 + $0x6d8] sm:$0xff]
                  %667 = vst [vmem:[%s419 + $0x3d8] sm:$0xff] %v666
                  %v668 = vld [vmem:[%s418 + $0x6e0] sm:$0xff]
                  %669 = vst [vmem:[%s419 + $0x3e0] sm:$0xff] %v668
                  %v670 = vld [vmem:[%s418 + $0x6e8] sm:$0xff]
                  %671 = vst [vmem:[%s419 + $0x3e8] sm:$0xff] %v670
                  %v672 = vld [vmem:[%s418 + $0x6f0] sm:$0xff]
                  %673 = vst [vmem:[%s419 + $0x3f0] sm:$0xff] %v672
                  %v674 = vld [vmem:[%s418 + $0x6f8] sm:$0xff]
                  %675 = vst [vmem:[%s419 + $0x3f8] sm:$0xff] %v674
                $region56: #{net_forward.4} parent=50 // loop_footer
                  %s417 = sadd.s32 1, %s413
                $region57: #{net_forward.4} parent=50 // loop_footer_branch
                  %412 = sbr.rel target = $region53
                $region58: #{net_forward.4} parent=50 // loop_exit
                  _
              $region51: #{net_forward.4} parent=35 // pred_fallthru
                _
              // Predicated region
              $region59: #{net_forward.4} parent=35 // pred_check
                _
              $region60: #{net_forward.4} parent=35 // pred_check_branch
                %677 = sbr.rel target = $region62
              $region61: #{net_forward.4} parent=35 // pred_region
                _
              $region62: #{net_forward.4} parent=35 // pred_fallthru
                _
            $region36: #{net_forward.4} parent=31 // pred_fallthru
              _
            // Predicated region
            $region37: #{net_forward.4} parent=31 // pred_check
              _
            $region38: #{net_forward.4} parent=31 // pred_check_branch
              %143 = sbr.rel target = $region40
            $region39: #{net_forward.4} parent=31 // pred_region
              %s145 = ssub.s32 256, 1
              loop: start=0, step=1, limit=1
              $region41: #{net_forward.4} parent=39 // loop_pre_header
                _
              $region42: #{net_forward.4} parent=39 // loop_header
                %s147 = sphi 0, %s151
                %p148 = scmp.ge.s32.totalorder %s147, 1
                %s152 = sphi %s137, %s137
                %s153 = sphi %s134, %s134
              $region43: #{net_forward.4} parent=39 // loop_header_branch
                %150 = sbr.rel (%p148) target = $region47
              $region44: #{net_forward.4} parent=39 // loop_body
                %v154 = vld [vmem:[%s152] sm:%s145]
                %155 = vst [vmem:[%s153] sm:%s145] %v154
                %v156 = vld [vmem:[%s152 + $0x8] sm:%s145]
                %157 = vst [vmem:[%s153 + $0x8] sm:%s145] %v156
                %v158 = vld [vmem:[%s152 + $0x10] sm:%s145]
                %159 = vst [vmem:[%s153 + $0x10] sm:%s145] %v158
                %v160 = vld [vmem:[%s152 + $0x18] sm:%s145]
                %161 = vst [vmem:[%s153 + $0x18] sm:%s145] %v160
                %v162 = vld [vmem:[%s152 + $0x20] sm:%s145]
                %163 = vst [vmem:[%s153 + $0x20] sm:%s145] %v162
                %v164 = vld [vmem:[%s152 + $0x28] sm:%s145]
                %165 = vst [vmem:[%s153 + $0x28] sm:%s145] %v164
                %v166 = vld [vmem:[%s152 + $0x30] sm:%s145]
                %167 = vst [vmem:[%s153 + $0x30] sm:%s145] %v166
                %v168 = vld [vmem:[%s152 + $0x38] sm:%s145]
                %169 = vst [vmem:[%s153 + $0x38] sm:%s145] %v168
                %v170 = vld [vmem:[%s152 + $0x40] sm:%s145]
                %171 = vst [vmem:[%s153 + $0x40] sm:%s145] %v170
                %v172 = vld [vmem:[%s152 + $0x48] sm:%s145]
                %173 = vst [vmem:[%s153 + $0x48] sm:%s145] %v172
                %v174 = vld [vmem:[%s152 + $0x50] sm:%s145]
                %175 = vst [vmem:[%s153 + $0x50] sm:%s145] %v174
                %v176 = vld [vmem:[%s152 + $0x58] sm:%s145]
                %177 = vst [vmem:[%s153 + $0x58] sm:%s145] %v176
                %v178 = vld [vmem:[%s152 + $0x60] sm:%s145]
                %179 = vst [vmem:[%s153 + $0x60] sm:%s145] %v178
                %v180 = vld [vmem:[%s152 + $0x68] sm:%s145]
                %181 = vst [vmem:[%s153 + $0x68] sm:%s145] %v180
                %v182 = vld [vmem:[%s152 + $0x70] sm:%s145]
                %183 = vst [vmem:[%s153 + $0x70] sm:%s145] %v182
                %v184 = vld [vmem:[%s152 + $0x78] sm:%s145]
                %185 = vst [vmem:[%s153 + $0x78] sm:%s145] %v184
                %v186 = vld [vmem:[%s152 + $0x80] sm:%s145]
                %187 = vst [vmem:[%s153 + $0x80] sm:%s145] %v186
                %v188 = vld [vmem:[%s152 + $0x88] sm:%s145]
                %189 = vst [vmem:[%s153 + $0x88] sm:%s145] %v188
                %v190 = vld [vmem:[%s152 + $0x90] sm:%s145]
                %191 = vst [vmem:[%s153 + $0x90] sm:%s145] %v190
                %v192 = vld [vmem:[%s152 + $0x98] sm:%s145]
                %193 = vst [vmem:[%s153 + $0x98] sm:%s145] %v192
                %v194 = vld [vmem:[%s152 + $0xa0] sm:%s145]
                %195 = vst [vmem:[%s153 + $0xa0] sm:%s145] %v194
                %v196 = vld [vmem:[%s152 + $0xa8] sm:%s145]
                %197 = vst [vmem:[%s153 + $0xa8] sm:%s145] %v196
                %v198 = vld [vmem:[%s152 + $0xb0] sm:%s145]
                %199 = vst [vmem:[%s153 + $0xb0] sm:%s145] %v198
                %v200 = vld [vmem:[%s152 + $0xb8] sm:%s145]
                %201 = vst [vmem:[%s153 + $0xb8] sm:%s145] %v200
                %v202 = vld [vmem:[%s152 + $0xc0] sm:%s145]
                %203 = vst [vmem:[%s153 + $0xc0] sm:%s145] %v202
                %v204 = vld [vmem:[%s152 + $0xc8] sm:%s145]
                %205 = vst [vmem:[%s153 + $0xc8] sm:%s145] %v204
                %v206 = vld [vmem:[%s152 + $0xd0] sm:%s145]
                %207 = vst [vmem:[%s153 + $0xd0] sm:%s145] %v206
                %v208 = vld [vmem:[%s152 + $0xd8] sm:%s145]
                %209 = vst [vmem:[%s153 + $0xd8] sm:%s145] %v208
                %v210 = vld [vmem:[%s152 + $0xe0] sm:%s145]
                %211 = vst [vmem:[%s153 + $0xe0] sm:%s145] %v210
                %v212 = vld [vmem:[%s152 + $0xe8] sm:%s145]
                %213 = vst [vmem:[%s153 + $0xe8] sm:%s145] %v212
                %v214 = vld [vmem:[%s152 + $0xf0] sm:%s145]
                %215 = vst [vmem:[%s153 + $0xf0] sm:%s145] %v214
                %v216 = vld [vmem:[%s152 + $0xf8] sm:%s145]
                %217 = vst [vmem:[%s153 + $0xf8] sm:%s145] %v216
                %v218 = vld [vmem:[%s152 + $0x200] sm:%s145]
                %219 = vst [vmem:[%s153 + $0x100] sm:%s145] %v218
                %v220 = vld [vmem:[%s152 + $0x208] sm:%s145]
                %221 = vst [vmem:[%s153 + $0x108] sm:%s145] %v220
                %v222 = vld [vmem:[%s152 + $0x210] sm:%s145]
                %223 = vst [vmem:[%s153 + $0x110] sm:%s145] %v222
                %v224 = vld [vmem:[%s152 + $0x218] sm:%s145]
                %225 = vst [vmem:[%s153 + $0x118] sm:%s145] %v224
                %v226 = vld [vmem:[%s152 + $0x220] sm:%s145]
                %227 = vst [vmem:[%s153 + $0x120] sm:%s145] %v226
                %v228 = vld [vmem:[%s152 + $0x228] sm:%s145]
                %229 = vst [vmem:[%s153 + $0x128] sm:%s145] %v228
                %v230 = vld [vmem:[%s152 + $0x230] sm:%s145]
                %231 = vst [vmem:[%s153 + $0x130] sm:%s145] %v230
                %v232 = vld [vmem:[%s152 + $0x238] sm:%s145]
                %233 = vst [vmem:[%s153 + $0x138] sm:%s145] %v232
                %v234 = vld [vmem:[%s152 + $0x240] sm:%s145]
                %235 = vst [vmem:[%s153 + $0x140] sm:%s145] %v234
                %v236 = vld [vmem:[%s152 + $0x248] sm:%s145]
                %237 = vst [vmem:[%s153 + $0x148] sm:%s145] %v236
                %v238 = vld [vmem:[%s152 + $0x250] sm:%s145]
                %239 = vst [vmem:[%s153 + $0x150] sm:%s145] %v238
                %v240 = vld [vmem:[%s152 + $0x258] sm:%s145]
                %241 = vst [vmem:[%s153 + $0x158] sm:%s145] %v240
                %v242 = vld [vmem:[%s152 + $0x260] sm:%s145]
                %243 = vst [vmem:[%s153 + $0x160] sm:%s145] %v242
                %v244 = vld [vmem:[%s152 + $0x268] sm:%s145]
                %245 = vst [vmem:[%s153 + $0x168] sm:%s145] %v244
                %v246 = vld [vmem:[%s152 + $0x270] sm:%s145]
                %247 = vst [vmem:[%s153 + $0x170] sm:%s145] %v246
                %v248 = vld [vmem:[%s152 + $0x278] sm:%s145]
                %249 = vst [vmem:[%s153 + $0x178] sm:%s145] %v248
                %v250 = vld [vmem:[%s152 + $0x280] sm:%s145]
                %251 = vst [vmem:[%s153 + $0x180] sm:%s145] %v250
                %v252 = vld [vmem:[%s152 + $0x288] sm:%s145]
                %253 = vst [vmem:[%s153 + $0x188] sm:%s145] %v252
                %v254 = vld [vmem:[%s152 + $0x290] sm:%s145]
                %255 = vst [vmem:[%s153 + $0x190] sm:%s145] %v254
                %v256 = vld [vmem:[%s152 + $0x298] sm:%s145]
                %257 = vst [vmem:[%s153 + $0x198] sm:%s145] %v256
                %v258 = vld [vmem:[%s152 + $0x2a0] sm:%s145]
                %259 = vst [vmem:[%s153 + $0x1a0] sm:%s145] %v258
                %v260 = vld [vmem:[%s152 + $0x2a8] sm:%s145]
                %261 = vst [vmem:[%s153 + $0x1a8] sm:%s145] %v260
                %v262 = vld [vmem:[%s152 + $0x2b0] sm:%s145]
                %263 = vst [vmem:[%s153 + $0x1b0] sm:%s145] %v262
                %v264 = vld [vmem:[%s152 + $0x2b8] sm:%s145]
                %265 = vst [vmem:[%s153 + $0x1b8] sm:%s145] %v264
                %v266 = vld [vmem:[%s152 + $0x2c0] sm:%s145]
                %267 = vst [vmem:[%s153 + $0x1c0] sm:%s145] %v266
                %v268 = vld [vmem:[%s152 + $0x2c8] sm:%s145]
                %269 = vst [vmem:[%s153 + $0x1c8] sm:%s145] %v268
                %v270 = vld [vmem:[%s152 + $0x2d0] sm:%s145]
                %271 = vst [vmem:[%s153 + $0x1d0] sm:%s145] %v270
                %v272 = vld [vmem:[%s152 + $0x2d8] sm:%s145]
                %273 = vst [vmem:[%s153 + $0x1d8] sm:%s145] %v272
                %v274 = vld [vmem:[%s152 + $0x2e0] sm:%s145]
                %275 = vst [vmem:[%s153 + $0x1e0] sm:%s145] %v274
                %v276 = vld [vmem:[%s152 + $0x2e8] sm:%s145]
                %277 = vst [vmem:[%s153 + $0x1e8] sm:%s145] %v276
                %v278 = vld [vmem:[%s152 + $0x2f0] sm:%s145]
                %279 = vst [vmem:[%s153 + $0x1f0] sm:%s145] %v278
                %v280 = vld [vmem:[%s152 + $0x2f8] sm:%s145]
                %281 = vst [vmem:[%s153 + $0x1f8] sm:%s145] %v280
                %v282 = vld [vmem:[%s152 + $0x400] sm:%s145]
                %283 = vst [vmem:[%s153 + $0x200] sm:%s145] %v282
                %v284 = vld [vmem:[%s152 + $0x408] sm:%s145]
                %285 = vst [vmem:[%s153 + $0x208] sm:%s145] %v284
                %v286 = vld [vmem:[%s152 + $0x410] sm:%s145]
                %287 = vst [vmem:[%s153 + $0x210] sm:%s145] %v286
                %v288 = vld [vmem:[%s152 + $0x418] sm:%s145]
                %289 = vst [vmem:[%s153 + $0x218] sm:%s145] %v288
                %v290 = vld [vmem:[%s152 + $0x420] sm:%s145]
                %291 = vst [vmem:[%s153 + $0x220] sm:%s145] %v290
                %v292 = vld [vmem:[%s152 + $0x428] sm:%s145]
                %293 = vst [vmem:[%s153 + $0x228] sm:%s145] %v292
                %v294 = vld [vmem:[%s152 + $0x430] sm:%s145]
                %295 = vst [vmem:[%s153 + $0x230] sm:%s145] %v294
                %v296 = vld [vmem:[%s152 + $0x438] sm:%s145]
                %297 = vst [vmem:[%s153 + $0x238] sm:%s145] %v296
                %v298 = vld [vmem:[%s152 + $0x440] sm:%s145]
                %299 = vst [vmem:[%s153 + $0x240] sm:%s145] %v298
                %v300 = vld [vmem:[%s152 + $0x448] sm:%s145]
                %301 = vst [vmem:[%s153 + $0x248] sm:%s145] %v300
                %v302 = vld [vmem:[%s152 + $0x450] sm:%s145]
                %303 = vst [vmem:[%s153 + $0x250] sm:%s145] %v302
                %v304 = vld [vmem:[%s152 + $0x458] sm:%s145]
                %305 = vst [vmem:[%s153 + $0x258] sm:%s145] %v304
                %v306 = vld [vmem:[%s152 + $0x460] sm:%s145]
                %307 = vst [vmem:[%s153 + $0x260] sm:%s145] %v306
                %v308 = vld [vmem:[%s152 + $0x468] sm:%s145]
                %309 = vst [vmem:[%s153 + $0x268] sm:%s145] %v308
                %v310 = vld [vmem:[%s152 + $0x470] sm:%s145]
                %311 = vst [vmem:[%s153 + $0x270] sm:%s145] %v310
                %v312 = vld [vmem:[%s152 + $0x478] sm:%s145]
                %313 = vst [vmem:[%s153 + $0x278] sm:%s145] %v312
                %v314 = vld [vmem:[%s152 + $0x480] sm:%s145]
                %315 = vst [vmem:[%s153 + $0x280] sm:%s145] %v314
                %v316 = vld [vmem:[%s152 + $0x488] sm:%s145]
                %317 = vst [vmem:[%s153 + $0x288] sm:%s145] %v316
                %v318 = vld [vmem:[%s152 + $0x490] sm:%s145]
                %319 = vst [vmem:[%s153 + $0x290] sm:%s145] %v318
                %v320 = vld [vmem:[%s152 + $0x498] sm:%s145]
                %321 = vst [vmem:[%s153 + $0x298] sm:%s145] %v320
                %v322 = vld [vmem:[%s152 + $0x4a0] sm:%s145]
                %323 = vst [vmem:[%s153 + $0x2a0] sm:%s145] %v322
                %v324 = vld [vmem:[%s152 + $0x4a8] sm:%s145]
                %325 = vst [vmem:[%s153 + $0x2a8] sm:%s145] %v324
                %v326 = vld [vmem:[%s152 + $0x4b0] sm:%s145]
                %327 = vst [vmem:[%s153 + $0x2b0] sm:%s145] %v326
                %v328 = vld [vmem:[%s152 + $0x4b8] sm:%s145]
                %329 = vst [vmem:[%s153 + $0x2b8] sm:%s145] %v328
                %v330 = vld [vmem:[%s152 + $0x4c0] sm:%s145]
                %331 = vst [vmem:[%s153 + $0x2c0] sm:%s145] %v330
                %v332 = vld [vmem:[%s152 + $0x4c8] sm:%s145]
                %333 = vst [vmem:[%s153 + $0x2c8] sm:%s145] %v332
                %v334 = vld [vmem:[%s152 + $0x4d0] sm:%s145]
                %335 = vst [vmem:[%s153 + $0x2d0] sm:%s145] %v334
                %v336 = vld [vmem:[%s152 + $0x4d8] sm:%s145]
                %337 = vst [vmem:[%s153 + $0x2d8] sm:%s145] %v336
                %v338 = vld [vmem:[%s152 + $0x4e0] sm:%s145]
                %339 = vst [vmem:[%s153 + $0x2e0] sm:%s145] %v338
                %v340 = vld [vmem:[%s152 + $0x4e8] sm:%s145]
                %341 = vst [vmem:[%s153 + $0x2e8] sm:%s145] %v340
                %v342 = vld [vmem:[%s152 + $0x4f0] sm:%s145]
                %343 = vst [vmem:[%s153 + $0x2f0] sm:%s145] %v342
                %v344 = vld [vmem:[%s152 + $0x4f8] sm:%s145]
                %345 = vst [vmem:[%s153 + $0x2f8] sm:%s145] %v344
                %v346 = vld [vmem:[%s152 + $0x600] sm:%s145]
                %347 = vst [vmem:[%s153 + $0x300] sm:%s145] %v346
                %v348 = vld [vmem:[%s152 + $0x608] sm:%s145]
                %349 = vst [vmem:[%s153 + $0x308] sm:%s145] %v348
                %v350 = vld [vmem:[%s152 + $0x610] sm:%s145]
                %351 = vst [vmem:[%s153 + $0x310] sm:%s145] %v350
                %v352 = vld [vmem:[%s152 + $0x618] sm:%s145]
                %353 = vst [vmem:[%s153 + $0x318] sm:%s145] %v352
                %v354 = vld [vmem:[%s152 + $0x620] sm:%s145]
                %355 = vst [vmem:[%s153 + $0x320] sm:%s145] %v354
                %v356 = vld [vmem:[%s152 + $0x628] sm:%s145]
                %357 = vst [vmem:[%s153 + $0x328] sm:%s145] %v356
                %v358 = vld [vmem:[%s152 + $0x630] sm:%s145]
                %359 = vst [vmem:[%s153 + $0x330] sm:%s145] %v358
                %v360 = vld [vmem:[%s152 + $0x638] sm:%s145]
                %361 = vst [vmem:[%s153 + $0x338] sm:%s145] %v360
                %v362 = vld [vmem:[%s152 + $0x640] sm:%s145]
                %363 = vst [vmem:[%s153 + $0x340] sm:%s145] %v362
                %v364 = vld [vmem:[%s152 + $0x648] sm:%s145]
                %365 = vst [vmem:[%s153 + $0x348] sm:%s145] %v364
                %v366 = vld [vmem:[%s152 + $0x650] sm:%s145]
                %367 = vst [vmem:[%s153 + $0x350] sm:%s145] %v366
                %v368 = vld [vmem:[%s152 + $0x658] sm:%s145]
                %369 = vst [vmem:[%s153 + $0x358] sm:%s145] %v368
                %v370 = vld [vmem:[%s152 + $0x660] sm:%s145]
                %371 = vst [vmem:[%s153 + $0x360] sm:%s145] %v370
                %v372 = vld [vmem:[%s152 + $0x668] sm:%s145]
                %373 = vst [vmem:[%s153 + $0x368] sm:%s145] %v372
                %v374 = vld [vmem:[%s152 + $0x670] sm:%s145]
                %375 = vst [vmem:[%s153 + $0x370] sm:%s145] %v374
                %v376 = vld [vmem:[%s152 + $0x678] sm:%s145]
                %377 = vst [vmem:[%s153 + $0x378] sm:%s145] %v376
                %v378 = vld [vmem:[%s152 + $0x680] sm:%s145]
                %379 = vst [vmem:[%s153 + $0x380] sm:%s145] %v378
                %v380 = vld [vmem:[%s152 + $0x688] sm:%s145]
                %381 = vst [vmem:[%s153 + $0x388] sm:%s145] %v380
                %v382 = vld [vmem:[%s152 + $0x690] sm:%s145]
                %383 = vst [vmem:[%s153 + $0x390] sm:%s145] %v382
                %v384 = vld [vmem:[%s152 + $0x698] sm:%s145]
                %385 = vst [vmem:[%s153 + $0x398] sm:%s145] %v384
                %v386 = vld [vmem:[%s152 + $0x6a0] sm:%s145]
                %387 = vst [vmem:[%s153 + $0x3a0] sm:%s145] %v386
                %v388 = vld [vmem:[%s152 + $0x6a8] sm:%s145]
                %389 = vst [vmem:[%s153 + $0x3a8] sm:%s145] %v388
                %v390 = vld [vmem:[%s152 + $0x6b0] sm:%s145]
                %391 = vst [vmem:[%s153 + $0x3b0] sm:%s145] %v390
                %v392 = vld [vmem:[%s152 + $0x6b8] sm:%s145]
                %393 = vst [vmem:[%s153 + $0x3b8] sm:%s145] %v392
                %v394 = vld [vmem:[%s152 + $0x6c0] sm:%s145]
                %395 = vst [vmem:[%s153 + $0x3c0] sm:%s145] %v394
                %v396 = vld [vmem:[%s152 + $0x6c8] sm:%s145]
                %397 = vst [vmem:[%s153 + $0x3c8] sm:%s145] %v396
                %v398 = vld [vmem:[%s152 + $0x6d0] sm:%s145]
                %399 = vst [vmem:[%s153 + $0x3d0] sm:%s145] %v398
                %v400 = vld [vmem:[%s152 + $0x6d8] sm:%s145]
                %401 = vst [vmem:[%s153 + $0x3d8] sm:%s145] %v400
                %v402 = vld [vmem:[%s152 + $0x6e0] sm:%s145]
                %403 = vst [vmem:[%s153 + $0x3e0] sm:%s145] %v402
                %v404 = vld [vmem:[%s152 + $0x6e8] sm:%s145]
                %405 = vst [vmem:[%s153 + $0x3e8] sm:%s145] %v404
                %v406 = vld [vmem:[%s152 + $0x6f0] sm:%s145]
                %407 = vst [vmem:[%s153 + $0x3f0] sm:%s145] %v406
                %v408 = vld [vmem:[%s152 + $0x6f8] sm:%s145]
                %409 = vst [vmem:[%s153 + $0x3f8] sm:%s145] %v408
              $region45: #{net_forward.4} parent=39 // loop_footer
                %s151 = sadd.s32 1, %s147
              $region46: #{net_forward.4} parent=39 // loop_footer_branch
                %146 = sbr.rel target = $region42
              $region47: #{net_forward.4} parent=39 // loop_exit
                _
            $region40: #{net_forward.4} parent=31 // pred_fallthru
              _
          $region32: #{net_forward.4} parent=27 // pred_fallthru
            _
          %678 = vnop
        $region28: #{net_forward.4} parent=23 // pred_fallthru
          _
      $region24: #{net_forward.4} parent=5 // pred_fallthru
        _
      %p679 = scmp.le.s32.totalorder 1, %s9
      %p680 = scmp.lt.s32.totalorder %s9, 3
      %p681 = pnand %p679, %p680
      %p682 = pneg %p681
      // Predicated region
      $region63: #{net_forward.4} parent=5 // pred_check
        _
      $region64: #{net_forward.4} parent=5 // pred_check_branch
        %684 = sbr.rel (%p681) target = $region66
      $region65: #{net_forward.4} parent=5 // pred_region
        %s685 = ssub.s32 %s9, 1
        %s686 = sand.u32 %s22, 1
        %s687 = sand.u32 %s22, 1
        %s688 = smul.addr %s687, 1024
        %s689 = scalar_lea.vmem [#allocation2], %s688
        // Predicated region
        $region67: #{net_forward.4} parent=65 // pred_check
          %p690 = pneg %p35
        $region68: #{net_forward.4} parent=65 // pred_check_branch
          %692 = sbr.rel (%p690) target = $region70
        $region69: #{net_forward.4} parent=65 // pred_region
          _
        $region70: #{net_forward.4} parent=65 // pred_fallthru
          _
        %s693 = sand.u32 %s22, 1
        %s694 = sand.u32 %s22, 1
        %s695 = smul.addr %s694, 1024
        %s696 = scalar_lea.vmem [#allocation2], %s695
        %p697 = pneg %p35
        %p698 = pneg %p32
        %p699 = pneg %p56
        %p700 = pneg %p53
        %p701 = pneg %p77
        %p702 = pneg %p74
        %p703 = pneg %p103
        %p704 = pneg %p100
        %s705 = smul.u32 32, %s14
        %p706 = scmp.lt.s32.totalorder %s705, 63
        %s707 = scalar_select %p706, %s705, 63
        %s708 = smul.addr %s707, 8
        %s709 = scalar_lea.vmem %s3, %s708
        %s710 = smul.u32 32, %s14
        %s711 = smul.u32 32, %s14
        %p712 = scmp.lt.s32.totalorder %s711, 63
        %s713 = scalar_select %p712, %s711, 63
        %s714 = smul.addr %s713, 8
        %s715 = scalar_lea.vmem %s3, %s714
        %s716 = smul.u32 32, %s14
        %v717 = vld [vmem:[%s1] sm:$0xff]
        %v718 = vld [vmem:[%s1 + $0x8] sm:$0xff]
        %v719 = vld [vmem:[%s1 + $0x10] sm:$0xff]
        %v720 = vld [vmem:[%s1 + $0x18] sm:$0xff]
        %v721 = vld [vmem:[%s1 + $0x20] sm:$0xff]
        %v722 = vld [vmem:[%s1 + $0x28] sm:$0xff]
        %v723 = vld [vmem:[%s1 + $0x30] sm:$0xff]
        %v724 = vld [vmem:[%s1 + $0x38] sm:$0xff]
        %v725 = vld [vmem:[%s1 + $0x40] sm:$0xff]
        %v726 = vld [vmem:[%s1 + $0x48] sm:$0xff]
        %v727 = vld [vmem:[%s1 + $0x50] sm:$0xff]
        %v728 = vld [vmem:[%s1 + $0x58] sm:$0xff]
        %v729 = vld [vmem:[%s1 + $0x60] sm:$0xff]
        %v730 = vld [vmem:[%s1 + $0x68] sm:$0xff]
        %v731 = vld [vmem:[%s1 + $0x70] sm:$0xff]
        %v732 = vld [vmem:[%s1 + $0x78] sm:$0xff]
        %v733 = vld [vmem:[%s689] sm:$0xff]
        %v734 = vld [vmem:[%s689 + $0x8] sm:$0xff]
        %v735 = vld [vmem:[%s689 + $0x10] sm:$0xff]
        %v736 = vld [vmem:[%s689 + $0x18] sm:$0xff]
        %v737 = vld [vmem:[%s689 + $0x20] sm:$0xff]
        %v738 = vld [vmem:[%s689 + $0x28] sm:$0xff]
        %v739 = vld [vmem:[%s689 + $0x30] sm:$0xff]
        %v740 = vld [vmem:[%s689 + $0x38] sm:$0xff]
        %v741 = vld [vmem:[%s689 + $0x40] sm:$0xff]
        %v742 = vld [vmem:[%s689 + $0x48] sm:$0xff]
        %v743 = vld [vmem:[%s689 + $0x50] sm:$0xff]
        %v744 = vld [vmem:[%s689 + $0x58] sm:$0xff]
        %v745 = vld [vmem:[%s689 + $0x60] sm:$0xff]
        %v746 = vld [vmem:[%s689 + $0x68] sm:$0xff]
        %v747 = vld [vmem:[%s689 + $0x70] sm:$0xff]
        %v748 = vld [vmem:[%s689 + $0x78] sm:$0xff]
        %v749 = vld [vmem:[%s689 + $0x80] sm:$0xff]
        %v750 = vld [vmem:[%s689 + $0x88] sm:$0xff]
        %v751 = vld [vmem:[%s689 + $0x90] sm:$0xff]
        %v752 = vld [vmem:[%s689 + $0x98] sm:$0xff]
        %v753 = vld [vmem:[%s689 + $0xa0] sm:$0xff]
        %v754 = vld [vmem:[%s689 + $0xa8] sm:$0xff]
        %v755 = vld [vmem:[%s689 + $0xb0] sm:$0xff]
        %v756 = vld [vmem:[%s689 + $0xb8] sm:$0xff]
        %v757 = vld [vmem:[%s689 + $0xc0] sm:$0xff]
        %v758 = vld [vmem:[%s689 + $0xc8] sm:$0xff]
        %v759 = vld [vmem:[%s689 + $0xd0] sm:$0xff]
        %v760 = vld [vmem:[%s689 + $0xd8] sm:$0xff]
        %v761 = vld [vmem:[%s689 + $0xe0] sm:$0xff]
        %v762 = vld [vmem:[%s689 + $0xe8] sm:$0xff]
        %v763 = vld [vmem:[%s689 + $0xf0] sm:$0xff]
        %v764 = vld [vmem:[%s689 + $0xf8] sm:$0xff]
        %765 = vmatpush.msra.mxu0 %v732
        %766 = vmatpush.msra.mxu0 %v731
        %767 = vmatpush.msra.mxu0 %v730
        %768 = vmatpush.msra.mxu0 %v729
        %769 = vmatpush.msra.mxu0 %v728
        %770 = vmatpush.msra.mxu0 %v727
        %771 = vmatpush.msra.mxu0 %v726
        %772 = vmatpush.msra.mxu0 %v725
        %773 = vmatpush.msra.mxu0 %v724
        %774 = vmatpush.msra.mxu0 %v723
        %775 = vmatpush.msra.mxu0 %v722
        %776 = vmatpush.msra.mxu0 %v721
        %777 = vmatpush.msra.mxu0 %v720
        %778 = vmatpush.msra.mxu0 %v719
        %779 = vmatpush.msra.mxu0 %v718
        %780 = vmatpush.msra.mxu0 %v717
        %781 = vmatmul.f32.gmra.mxu0 %v733
        %v782 = vpop.f32.mrf.mxu0
        %v783 = vadd.f32 0.0, %v782
        %784 = vmatmul.f32.gmra.mxu0 %v734
        %v785 = vpop.f32.mrf.mxu0
        %v786 = vadd.f32 0.0, %v785
        %787 = vmatmul.f32.gmra.mxu0 %v735
        %v788 = vpop.f32.mrf.mxu0
        %v789 = vadd.f32 0.0, %v788
        %790 = vmatmul.f32.gmra.mxu0 %v736
        %v791 = vpop.f32.mrf.mxu0
        %v792 = vadd.f32 0.0, %v791
        %793 = vmatmul.f32.gmra.mxu0 %v737
        %v794 = vpop.f32.mrf.mxu0
        %v795 = vadd.f32 0.0, %v794
        %796 = vmatmul.f32.gmra.mxu0 %v738
        %v797 = vpop.f32.mrf.mxu0
        %v798 = vadd.f32 0.0, %v797
        %799 = vmatmul.f32.gmra.mxu0 %v739
        %v800 = vpop.f32.mrf.mxu0
        %v801 = vadd.f32 0.0, %v800
        %802 = vmatmul.f32.gmra.mxu0 %v740
        %v803 = vpop.f32.mrf.mxu0
        %v804 = vadd.f32 0.0, %v803
        %805 = vmatmul.f32.gmra.mxu0 %v741
        %v806 = vpop.f32.mrf.mxu0
        %v807 = vadd.f32 0.0, %v806
        %808 = vmatmul.f32.gmra.mxu0 %v742
        %v809 = vpop.f32.mrf.mxu0
        %v810 = vadd.f32 0.0, %v809
        %811 = vmatmul.f32.gmra.mxu0 %v743
        %v812 = vpop.f32.mrf.mxu0
        %v813 = vadd.f32 0.0, %v812
        %814 = vmatmul.f32.gmra.mxu0 %v744
        %v815 = vpop.f32.mrf.mxu0
        %v816 = vadd.f32 0.0, %v815
        %817 = vmatmul.f32.gmra.mxu0 %v745
        %v818 = vpop.f32.mrf.mxu0
        %v819 = vadd.f32 0.0, %v818
        %820 = vmatmul.f32.gmra.mxu0 %v746
        %v821 = vpop.f32.mrf.mxu0
        %v822 = vadd.f32 0.0, %v821
        %823 = vmatmul.f32.gmra.mxu0 %v747
        %v824 = vpop.f32.mrf.mxu0
        %v825 = vadd.f32 0.0, %v824
        %826 = vmatmul.f32.gmra.mxu0 %v748
        %v827 = vpop.f32.mrf.mxu0
        %v828 = vadd.f32 0.0, %v827
        %829 = vmatmul.f32.gmra.mxu0 %v749
        %v830 = vpop.f32.mrf.mxu0
        %v831 = vadd.f32 0.0, %v830
        %832 = vmatmul.f32.gmra.mxu0 %v750
        %v833 = vpop.f32.mrf.mxu0
        %v834 = vadd.f32 0.0, %v833
        %835 = vmatmul.f32.gmra.mxu0 %v751
        %v836 = vpop.f32.mrf.mxu0
        %v837 = vadd.f32 0.0, %v836
        %838 = vmatmul.f32.gmra.mxu0 %v752
        %v839 = vpop.f32.mrf.mxu0
        %v840 = vadd.f32 0.0, %v839
        %841 = vmatmul.f32.gmra.mxu0 %v753
        %v842 = vpop.f32.mrf.mxu0
        %v843 = vadd.f32 0.0, %v842
        %844 = vmatmul.f32.gmra.mxu0 %v754
        %v845 = vpop.f32.mrf.mxu0
        %v846 = vadd.f32 0.0, %v845
        %847 = vmatmul.f32.gmra.mxu0 %v755
        %v848 = vpop.f32.mrf.mxu0
        %v849 = vadd.f32 0.0, %v848
        %850 = vmatmul.f32.gmra.mxu0 %v756
        %v851 = vpop.f32.mrf.mxu0
        %v852 = vadd.f32 0.0, %v851
        %853 = vmatmul.f32.gmra.mxu0 %v757
        %v854 = vpop.f32.mrf.mxu0
        %v855 = vadd.f32 0.0, %v854
        %856 = vmatmul.f32.gmra.mxu0 %v758
        %v857 = vpop.f32.mrf.mxu0
        %v858 = vadd.f32 0.0, %v857
        %859 = vmatmul.f32.gmra.mxu0 %v759
        %v860 = vpop.f32.mrf.mxu0
        %v861 = vadd.f32 0.0, %v860
        %862 = vmatmul.f32.gmra.mxu0 %v760
        %v863 = vpop.f32.mrf.mxu0
        %v864 = vadd.f32 0.0, %v863
        %865 = vmatmul.f32.gmra.mxu0 %v761
        %v866 = vpop.f32.mrf.mxu0
        %v867 = vadd.f32 0.0, %v866
        %868 = vmatmul.f32.gmra.mxu0 %v762
        %v869 = vpop.f32.mrf.mxu0
        %v870 = vadd.f32 0.0, %v869
        %871 = vmatmul.f32.gmra.mxu0 %v763
        %v872 = vpop.f32.mrf.mxu0
        %v873 = vadd.f32 0.0, %v872
        %874 = vmatmul.f32.gmra.mxu0 %v764
        %v875 = vpop.f32.mrf.mxu0
        %v876 = vadd.f32 0.0, %v875
        %877 = vdwg.mxu0
        %s878 = scalar_lea.vmem %s689, 256 [#allocation2]
        %v879 = vld [vmem:[%s878] sm:$0xff]
        %v880 = vld [vmem:[%s878 + $0x8] sm:$0xff]
        %v881 = vld [vmem:[%s878 + $0x10] sm:$0xff]
        %v882 = vld [vmem:[%s878 + $0x18] sm:$0xff]
        %v883 = vld [vmem:[%s878 + $0x20] sm:$0xff]
        %v884 = vld [vmem:[%s878 + $0x28] sm:$0xff]
        %v885 = vld [vmem:[%s878 + $0x30] sm:$0xff]
        %v886 = vld [vmem:[%s878 + $0x38] sm:$0xff]
        %v887 = vld [vmem:[%s878 + $0x40] sm:$0xff]
        %v888 = vld [vmem:[%s878 + $0x48] sm:$0xff]
        %v889 = vld [vmem:[%s878 + $0x50] sm:$0xff]
        %v890 = vld [vmem:[%s878 + $0x58] sm:$0xff]
        %v891 = vld [vmem:[%s878 + $0x60] sm:$0xff]
        %v892 = vld [vmem:[%s878 + $0x68] sm:$0xff]
        %v893 = vld [vmem:[%s878 + $0x70] sm:$0xff]
        %v894 = vld [vmem:[%s878 + $0x78] sm:$0xff]
        %v895 = vld [vmem:[%s878 + $0x80] sm:$0xff]
        %v896 = vld [vmem:[%s878 + $0x88] sm:$0xff]
        %v897 = vld [vmem:[%s878 + $0x90] sm:$0xff]
        %v898 = vld [vmem:[%s878 + $0x98] sm:$0xff]
        %v899 = vld [vmem:[%s878 + $0xa0] sm:$0xff]
        %v900 = vld [vmem:[%s878 + $0xa8] sm:$0xff]
        %v901 = vld [vmem:[%s878 + $0xb0] sm:$0xff]
        %v902 = vld [vmem:[%s878 + $0xb8] sm:$0xff]
        %v903 = vld [vmem:[%s878 + $0xc0] sm:$0xff]
        %v904 = vld [vmem:[%s878 + $0xc8] sm:$0xff]
        %v905 = vld [vmem:[%s878 + $0xd0] sm:$0xff]
        %v906 = vld [vmem:[%s878 + $0xd8] sm:$0xff]
        %v907 = vld [vmem:[%s878 + $0xe0] sm:$0xff]
        %v908 = vld [vmem:[%s878 + $0xe8] sm:$0xff]
        %v909 = vld [vmem:[%s878 + $0xf0] sm:$0xff]
        %v910 = vld [vmem:[%s878 + $0xf8] sm:$0xff]
        %911 = vmatpush.msra.mxu0 %v732
        %912 = vmatpush.msra.mxu0 %v731
        %913 = vmatpush.msra.mxu0 %v730
        %914 = vmatpush.msra.mxu0 %v729
        %915 = vmatpush.msra.mxu0 %v728
        %916 = vmatpush.msra.mxu0 %v727
        %917 = vmatpush.msra.mxu0 %v726
        %918 = vmatpush.msra.mxu0 %v725
        %919 = vmatpush.msra.mxu0 %v724
        %920 = vmatpush.msra.mxu0 %v723
        %921 = vmatpush.msra.mxu0 %v722
        %922 = vmatpush.msra.mxu0 %v721
        %923 = vmatpush.msra.mxu0 %v720
        %924 = vmatpush.msra.mxu0 %v719
        %925 = vmatpush.msra.mxu0 %v718
        %926 = vmatpush.msra.mxu0 %v717
        %927 = vmatmul.f32.gmra.mxu0 %v879
        %v928 = vpop.f32.mrf.mxu0
        %v929 = vadd.f32 0.0, %v928
        %930 = vmatmul.f32.gmra.mxu0 %v880
        %v931 = vpop.f32.mrf.mxu0
        %v932 = vadd.f32 0.0, %v931
        %933 = vmatmul.f32.gmra.mxu0 %v881
        %v934 = vpop.f32.mrf.mxu0
        %v935 = vadd.f32 0.0, %v934
        %936 = vmatmul.f32.gmra.mxu0 %v882
        %v937 = vpop.f32.mrf.mxu0
        %v938 = vadd.f32 0.0, %v937
        %939 = vmatmul.f32.gmra.mxu0 %v883
        %v940 = vpop.f32.mrf.mxu0
        %v941 = vadd.f32 0.0, %v940
        %942 = vmatmul.f32.gmra.mxu0 %v884
        %v943 = vpop.f32.mrf.mxu0
        %v944 = vadd.f32 0.0, %v943
        %945 = vmatmul.f32.gmra.mxu0 %v885
        %v946 = vpop.f32.mrf.mxu0
        %v947 = vadd.f32 0.0, %v946
        %948 = vmatmul.f32.gmra.mxu0 %v886
        %v949 = vpop.f32.mrf.mxu0
        %v950 = vadd.f32 0.0, %v949
        %951 = vmatmul.f32.gmra.mxu0 %v887
        %v952 = vpop.f32.mrf.mxu0
        %v953 = vadd.f32 0.0, %v952
        %954 = vmatmul.f32.gmra.mxu0 %v888
        %v955 = vpop.f32.mrf.mxu0
        %v956 = vadd.f32 0.0, %v955
        %957 = vmatmul.f32.gmra.mxu0 %v889
        %v958 = vpop.f32.mrf.mxu0
        %v959 = vadd.f32 0.0, %v958
        %960 = vmatmul.f32.gmra.mxu0 %v890
        %v961 = vpop.f32.mrf.mxu0
        %v962 = vadd.f32 0.0, %v961
        %963 = vmatmul.f32.gmra.mxu0 %v891
        %v964 = vpop.f32.mrf.mxu0
        %v965 = vadd.f32 0.0, %v964
        %966 = vmatmul.f32.gmra.mxu0 %v892
        %v967 = vpop.f32.mrf.mxu0
        %v968 = vadd.f32 0.0, %v967
        %969 = vmatmul.f32.gmra.mxu0 %v893
        %v970 = vpop.f32.mrf.mxu0
        %v971 = vadd.f32 0.0, %v970
        %972 = vmatmul.f32.gmra.mxu0 %v894
        %v973 = vpop.f32.mrf.mxu0
        %v974 = vadd.f32 0.0, %v973
        %975 = vmatmul.f32.gmra.mxu0 %v895
        %v976 = vpop.f32.mrf.mxu0
        %v977 = vadd.f32 0.0, %v976
        %978 = vmatmul.f32.gmra.mxu0 %v896
        %v979 = vpop.f32.mrf.mxu0
        %v980 = vadd.f32 0.0, %v979
        %981 = vmatmul.f32.gmra.mxu0 %v897
        %v982 = vpop.f32.mrf.mxu0
        %v983 = vadd.f32 0.0, %v982
        %984 = vmatmul.f32.gmra.mxu0 %v898
        %v985 = vpop.f32.mrf.mxu0
        %v986 = vadd.f32 0.0, %v985
        %987 = vmatmul.f32.gmra.mxu0 %v899
        %v988 = vpop.f32.mrf.mxu0
        %v989 = vadd.f32 0.0, %v988
        %990 = vmatmul.f32.gmra.mxu0 %v900
        %v991 = vpop.f32.mrf.mxu0
        %v992 = vadd.f32 0.0, %v991
        %993 = vmatmul.f32.gmra.mxu0 %v901
        %v994 = vpop.f32.mrf.mxu0
        %v995 = vadd.f32 0.0, %v994
        %996 = vmatmul.f32.gmra.mxu0 %v902
        %v997 = vpop.f32.mrf.mxu0
        %v998 = vadd.f32 0.0, %v997
        %999 = vmatmul.f32.gmra.mxu0 %v903
        %v1000 = vpop.f32.mrf.mxu0
        %v1001 = vadd.f32 0.0, %v1000
        %1002 = vmatmul.f32.gmra.mxu0 %v904
        %v1003 = vpop.f32.mrf.mxu0
        %v1004 = vadd.f32 0.0, %v1003
        %1005 = vmatmul.f32.gmra.mxu0 %v905
        %v1006 = vpop.f32.mrf.mxu0
        %v1007 = vadd.f32 0.0, %v1006
        %1008 = vmatmul.f32.gmra.mxu0 %v906
        %v1009 = vpop.f32.mrf.mxu0
        %v1010 = vadd.f32 0.0, %v1009
        %1011 = vmatmul.f32.gmra.mxu0 %v907
        %v1012 = vpop.f32.mrf.mxu0
        %v1013 = vadd.f32 0.0, %v1012
        %1014 = vmatmul.f32.gmra.mxu0 %v908
        %v1015 = vpop.f32.mrf.mxu0
        %v1016 = vadd.f32 0.0, %v1015
        %1017 = vmatmul.f32.gmra.mxu0 %v909
        %v1018 = vpop.f32.mrf.mxu0
        %v1019 = vadd.f32 0.0, %v1018
        %1020 = vmatmul.f32.gmra.mxu0 %v910
        %v1021 = vpop.f32.mrf.mxu0
        %v1022 = vadd.f32 0.0, %v1021
        %1023 = vdwg.mxu0
        %s1024 = scalar_lea.vmem %s689, 512 [#allocation2]
        %v1025 = vld [vmem:[%s1024] sm:$0xff]
        %v1026 = vld [vmem:[%s1024 + $0x8] sm:$0xff]
        %v1027 = vld [vmem:[%s1024 + $0x10] sm:$0xff]
        %v1028 = vld [vmem:[%s1024 + $0x18] sm:$0xff]
        %v1029 = vld [vmem:[%s1024 + $0x20] sm:$0xff]
        %v1030 = vld [vmem:[%s1024 + $0x28] sm:$0xff]
        %v1031 = vld [vmem:[%s1024 + $0x30] sm:$0xff]
        %v1032 = vld [vmem:[%s1024 + $0x38] sm:$0xff]
        %v1033 = vld [vmem:[%s1024 + $0x40] sm:$0xff]
        %v1034 = vld [vmem:[%s1024 + $0x48] sm:$0xff]
        %v1035 = vld [vmem:[%s1024 + $0x50] sm:$0xff]
        %v1036 = vld [vmem:[%s1024 + $0x58] sm:$0xff]
        %v1037 = vld [vmem:[%s1024 + $0x60] sm:$0xff]
        %v1038 = vld [vmem:[%s1024 + $0x68] sm:$0xff]
        %v1039 = vld [vmem:[%s1024 + $0x70] sm:$0xff]
        %v1040 = vld [vmem:[%s1024 + $0x78] sm:$0xff]
        %v1041 = vld [vmem:[%s1024 + $0x80] sm:$0xff]
        %v1042 = vld [vmem:[%s1024 + $0x88] sm:$0xff]
        %v1043 = vld [vmem:[%s1024 + $0x90] sm:$0xff]
        %v1044 = vld [vmem:[%s1024 + $0x98] sm:$0xff]
        %v1045 = vld [vmem:[%s1024 + $0xa0] sm:$0xff]
        %v1046 = vld [vmem:[%s1024 + $0xa8] sm:$0xff]
        %v1047 = vld [vmem:[%s1024 + $0xb0] sm:$0xff]
        %v1048 = vld [vmem:[%s1024 + $0xb8] sm:$0xff]
        %v1049 = vld [vmem:[%s1024 + $0xc0] sm:$0xff]
        %v1050 = vld [vmem:[%s1024 + $0xc8] sm:$0xff]
        %v1051 = vld [vmem:[%s1024 + $0xd0] sm:$0xff]
        %v1052 = vld [vmem:[%s1024 + $0xd8] sm:$0xff]
        %v1053 = vld [vmem:[%s1024 + $0xe0] sm:$0xff]
        %v1054 = vld [vmem:[%s1024 + $0xe8] sm:$0xff]
        %v1055 = vld [vmem:[%s1024 + $0xf0] sm:$0xff]
        %v1056 = vld [vmem:[%s1024 + $0xf8] sm:$0xff]
        %1057 = vmatpush.msra.mxu0 %v732
        %1058 = vmatpush.msra.mxu0 %v731
        %1059 = vmatpush.msra.mxu0 %v730
        %1060 = vmatpush.msra.mxu0 %v729
        %1061 = vmatpush.msra.mxu0 %v728
        %1062 = vmatpush.msra.mxu0 %v727
        %1063 = vmatpush.msra.mxu0 %v726
        %1064 = vmatpush.msra.mxu0 %v725
        %1065 = vmatpush.msra.mxu0 %v724
        %1066 = vmatpush.msra.mxu0 %v723
        %1067 = vmatpush.msra.mxu0 %v722
        %1068 = vmatpush.msra.mxu0 %v721
        %1069 = vmatpush.msra.mxu0 %v720
        %1070 = vmatpush.msra.mxu0 %v719
        %1071 = vmatpush.msra.mxu0 %v718
        %1072 = vmatpush.msra.mxu0 %v717
        %1073 = vmatmul.f32.gmra.mxu0 %v1025
        %v1074 = vpop.f32.mrf.mxu0
        %v1075 = vadd.f32 0.0, %v1074
        %1076 = vmatmul.f32.gmra.mxu0 %v1026
        %v1077 = vpop.f32.mrf.mxu0
        %v1078 = vadd.f32 0.0, %v1077
        %1079 = vmatmul.f32.gmra.mxu0 %v1027
        %v1080 = vpop.f32.mrf.mxu0
        %v1081 = vadd.f32 0.0, %v1080
        %1082 = vmatmul.f32.gmra.mxu0 %v1028
        %v1083 = vpop.f32.mrf.mxu0
        %v1084 = vadd.f32 0.0, %v1083
        %1085 = vmatmul.f32.gmra.mxu0 %v1029
        %v1086 = vpop.f32.mrf.mxu0
        %v1087 = vadd.f32 0.0, %v1086
        %1088 = vmatmul.f32.gmra.mxu0 %v1030
        %v1089 = vpop.f32.mrf.mxu0
        %v1090 = vadd.f32 0.0, %v1089
        %1091 = vmatmul.f32.gmra.mxu0 %v1031
        %v1092 = vpop.f32.mrf.mxu0
        %v1093 = vadd.f32 0.0, %v1092
        %1094 = vmatmul.f32.gmra.mxu0 %v1032
        %v1095 = vpop.f32.mrf.mxu0
        %v1096 = vadd.f32 0.0, %v1095
        %1097 = vmatmul.f32.gmra.mxu0 %v1033
        %v1098 = vpop.f32.mrf.mxu0
        %v1099 = vadd.f32 0.0, %v1098
        %1100 = vmatmul.f32.gmra.mxu0 %v1034
        %v1101 = vpop.f32.mrf.mxu0
        %v1102 = vadd.f32 0.0, %v1101
        %1103 = vmatmul.f32.gmra.mxu0 %v1035
        %v1104 = vpop.f32.mrf.mxu0
        %v1105 = vadd.f32 0.0, %v1104
        %1106 = vmatmul.f32.gmra.mxu0 %v1036
        %v1107 = vpop.f32.mrf.mxu0
        %v1108 = vadd.f32 0.0, %v1107
        %1109 = vmatmul.f32.gmra.mxu0 %v1037
        %v1110 = vpop.f32.mrf.mxu0
        %v1111 = vadd.f32 0.0, %v1110
        %1112 = vmatmul.f32.gmra.mxu0 %v1038
        %v1113 = vpop.f32.mrf.mxu0
        %v1114 = vadd.f32 0.0, %v1113
        %1115 = vmatmul.f32.gmra.mxu0 %v1039
        %v1116 = vpop.f32.mrf.mxu0
        %v1117 = vadd.f32 0.0, %v1116
        %1118 = vmatmul.f32.gmra.mxu0 %v1040
        %v1119 = vpop.f32.mrf.mxu0
        %v1120 = vadd.f32 0.0, %v1119
        %1121 = vmatmul.f32.gmra.mxu0 %v1041
        %v1122 = vpop.f32.mrf.mxu0
        %v1123 = vadd.f32 0.0, %v1122
        %1124 = vmatmul.f32.gmra.mxu0 %v1042
        %v1125 = vpop.f32.mrf.mxu0
        %v1126 = vadd.f32 0.0, %v1125
        %1127 = vmatmul.f32.gmra.mxu0 %v1043
        %v1128 = vpop.f32.mrf.mxu0
        %v1129 = vadd.f32 0.0, %v1128
        %1130 = vmatmul.f32.gmra.mxu0 %v1044
        %v1131 = vpop.f32.mrf.mxu0
        %v1132 = vadd.f32 0.0, %v1131
        %1133 = vmatmul.f32.gmra.mxu0 %v1045
        %v1134 = vpop.f32.mrf.mxu0
        %v1135 = vadd.f32 0.0, %v1134
        %1136 = vmatmul.f32.gmra.mxu0 %v1046
        %v1137 = vpop.f32.mrf.mxu0
        %v1138 = vadd.f32 0.0, %v1137
        %1139 = vmatmul.f32.gmra.mxu0 %v1047
        %v1140 = vpop.f32.mrf.mxu0
        %v1141 = vadd.f32 0.0, %v1140
        %1142 = vmatmul.f32.gmra.mxu0 %v1048
        %v1143 = vpop.f32.mrf.mxu0
        %v1144 = vadd.f32 0.0, %v1143
        %1145 = vmatmul.f32.gmra.mxu0 %v1049
        %v1146 = vpop.f32.mrf.mxu0
        %v1147 = vadd.f32 0.0, %v1146
        %1148 = vmatmul.f32.gmra.mxu0 %v1050
        %v1149 = vpop.f32.mrf.mxu0
        %v1150 = vadd.f32 0.0, %v1149
        %1151 = vmatmul.f32.gmra.mxu0 %v1051
        %v1152 = vpop.f32.mrf.mxu0
        %v1153 = vadd.f32 0.0, %v1152
        %1154 = vmatmul.f32.gmra.mxu0 %v1052
        %v1155 = vpop.f32.mrf.mxu0
        %v1156 = vadd.f32 0.0, %v1155
        %1157 = vmatmul.f32.gmra.mxu0 %v1053
        %v1158 = vpop.f32.mrf.mxu0
        %v1159 = vadd.f32 0.0, %v1158
        %1160 = vmatmul.f32.gmra.mxu0 %v1054
        %v1161 = vpop.f32.mrf.mxu0
        %v1162 = vadd.f32 0.0, %v1161
        %1163 = vmatmul.f32.gmra.mxu0 %v1055
        %v1164 = vpop.f32.mrf.mxu0
        %v1165 = vadd.f32 0.0, %v1164
        %1166 = vmatmul.f32.gmra.mxu0 %v1056
        %v1167 = vpop.f32.mrf.mxu0
        %v1168 = vadd.f32 0.0, %v1167
        %1169 = vdwg.mxu0
        %s1170 = scalar_lea.vmem %s689, 768 [#allocation2]
        %v1171 = vld [vmem:[%s1170] sm:$0xff]
        %v1172 = vld [vmem:[%s1170 + $0x8] sm:$0xff]
        %v1173 = vld [vmem:[%s1170 + $0x10] sm:$0xff]
        %v1174 = vld [vmem:[%s1170 + $0x18] sm:$0xff]
        %v1175 = vld [vmem:[%s1170 + $0x20] sm:$0xff]
        %v1176 = vld [vmem:[%s1170 + $0x28] sm:$0xff]
        %v1177 = vld [vmem:[%s1170 + $0x30] sm:$0xff]
        %v1178 = vld [vmem:[%s1170 + $0x38] sm:$0xff]
        %v1179 = vld [vmem:[%s1170 + $0x40] sm:$0xff]
        %v1180 = vld [vmem:[%s1170 + $0x48] sm:$0xff]
        %v1181 = vld [vmem:[%s1170 + $0x50] sm:$0xff]
        %v1182 = vld [vmem:[%s1170 + $0x58] sm:$0xff]
        %v1183 = vld [vmem:[%s1170 + $0x60] sm:$0xff]
        %v1184 = vld [vmem:[%s1170 + $0x68] sm:$0xff]
        %v1185 = vld [vmem:[%s1170 + $0x70] sm:$0xff]
        %v1186 = vld [vmem:[%s1170 + $0x78] sm:$0xff]
        %v1187 = vld [vmem:[%s1170 + $0x80] sm:$0xff]
        %v1188 = vld [vmem:[%s1170 + $0x88] sm:$0xff]
        %v1189 = vld [vmem:[%s1170 + $0x90] sm:$0xff]
        %v1190 = vld [vmem:[%s1170 + $0x98] sm:$0xff]
        %v1191 = vld [vmem:[%s1170 + $0xa0] sm:$0xff]
        %v1192 = vld [vmem:[%s1170 + $0xa8] sm:$0xff]
        %v1193 = vld [vmem:[%s1170 + $0xb0] sm:$0xff]
        %v1194 = vld [vmem:[%s1170 + $0xb8] sm:$0xff]
        %v1195 = vld [vmem:[%s1170 + $0xc0] sm:$0xff]
        %v1196 = vld [vmem:[%s1170 + $0xc8] sm:$0xff]
        %v1197 = vld [vmem:[%s1170 + $0xd0] sm:$0xff]
        %v1198 = vld [vmem:[%s1170 + $0xd8] sm:$0xff]
        %v1199 = vld [vmem:[%s1170 + $0xe0] sm:$0xff]
        %v1200 = vld [vmem:[%s1170 + $0xe8] sm:$0xff]
        %v1201 = vld [vmem:[%s1170 + $0xf0] sm:$0xff]
        %v1202 = vld [vmem:[%s1170 + $0xf8] sm:$0xff]
        %1203 = vmatpush.msra.mxu0 %v732
        %1204 = vmatpush.msra.mxu0 %v731
        %1205 = vmatpush.msra.mxu0 %v730
        %1206 = vmatpush.msra.mxu0 %v729
        %1207 = vmatpush.msra.mxu0 %v728
        %1208 = vmatpush.msra.mxu0 %v727
        %1209 = vmatpush.msra.mxu0 %v726
        %1210 = vmatpush.msra.mxu0 %v725
        %1211 = vmatpush.msra.mxu0 %v724
        %1212 = vmatpush.msra.mxu0 %v723
        %1213 = vmatpush.msra.mxu0 %v722
        %1214 = vmatpush.msra.mxu0 %v721
        %1215 = vmatpush.msra.mxu0 %v720
        %1216 = vmatpush.msra.mxu0 %v719
        %1217 = vmatpush.msra.mxu0 %v718
        %1218 = vmatpush.msra.mxu0 %v717
        %1219 = vmatmul.f32.gmra.mxu0 %v1171
        %v1220 = vpop.f32.mrf.mxu0
        %v1221 = vadd.f32 0.0, %v1220
        %1222 = vmatmul.f32.gmra.mxu0 %v1172
        %v1223 = vpop.f32.mrf.mxu0
        %v1224 = vadd.f32 0.0, %v1223
        %1225 = vmatmul.f32.gmra.mxu0 %v1173
        %v1226 = vpop.f32.mrf.mxu0
        %v1227 = vadd.f32 0.0, %v1226
        %1228 = vmatmul.f32.gmra.mxu0 %v1174
        %v1229 = vpop.f32.mrf.mxu0
        %v1230 = vadd.f32 0.0, %v1229
        %1231 = vmatmul.f32.gmra.mxu0 %v1175
        %v1232 = vpop.f32.mrf.mxu0
        %v1233 = vadd.f32 0.0, %v1232
        %1234 = vmatmul.f32.gmra.mxu0 %v1176
        %v1235 = vpop.f32.mrf.mxu0
        %v1236 = vadd.f32 0.0, %v1235
        %1237 = vmatmul.f32.gmra.mxu0 %v1177
        %v1238 = vpop.f32.mrf.mxu0
        %v1239 = vadd.f32 0.0, %v1238
        %1240 = vmatmul.f32.gmra.mxu0 %v1178
        %v1241 = vpop.f32.mrf.mxu0
        %v1242 = vadd.f32 0.0, %v1241
        %1243 = vmatmul.f32.gmra.mxu0 %v1179
        %v1244 = vpop.f32.mrf.mxu0
        %v1245 = vadd.f32 0.0, %v1244
        %1246 = vmatmul.f32.gmra.mxu0 %v1180
        %v1247 = vpop.f32.mrf.mxu0
        %v1248 = vadd.f32 0.0, %v1247
        %1249 = vmatmul.f32.gmra.mxu0 %v1181
        %v1250 = vpop.f32.mrf.mxu0
        %v1251 = vadd.f32 0.0, %v1250
        %1252 = vmatmul.f32.gmra.mxu0 %v1182
        %v1253 = vpop.f32.mrf.mxu0
        %v1254 = vadd.f32 0.0, %v1253
        %1255 = vmatmul.f32.gmra.mxu0 %v1183
        %v1256 = vpop.f32.mrf.mxu0
        %v1257 = vadd.f32 0.0, %v1256
        %1258 = vmatmul.f32.gmra.mxu0 %v1184
        %v1259 = vpop.f32.mrf.mxu0
        %v1260 = vadd.f32 0.0, %v1259
        %1261 = vmatmul.f32.gmra.mxu0 %v1185
        %v1262 = vpop.f32.mrf.mxu0
        %v1263 = vadd.f32 0.0, %v1262
        %1264 = vmatmul.f32.gmra.mxu0 %v1186
        %v1265 = vpop.f32.mrf.mxu0
        %v1266 = vadd.f32 0.0, %v1265
        %1267 = vmatmul.f32.gmra.mxu0 %v1187
        %v1268 = vpop.f32.mrf.mxu0
        %v1269 = vadd.f32 0.0, %v1268
        %1270 = vmatmul.f32.gmra.mxu0 %v1188
        %v1271 = vpop.f32.mrf.mxu0
        %v1272 = vadd.f32 0.0, %v1271
        %1273 = vmatmul.f32.gmra.mxu0 %v1189
        %v1274 = vpop.f32.mrf.mxu0
        %v1275 = vadd.f32 0.0, %v1274
        %1276 = vmatmul.f32.gmra.mxu0 %v1190
        %v1277 = vpop.f32.mrf.mxu0
        %v1278 = vadd.f32 0.0, %v1277
        %1279 = vmatmul.f32.gmra.mxu0 %v1191
        %v1280 = vpop.f32.mrf.mxu0
        %v1281 = vadd.f32 0.0, %v1280
        %1282 = vmatmul.f32.gmra.mxu0 %v1192
        %v1283 = vpop.f32.mrf.mxu0
        %v1284 = vadd.f32 0.0, %v1283
        %1285 = vmatmul.f32.gmra.mxu0 %v1193
        %v1286 = vpop.f32.mrf.mxu0
        %v1287 = vadd.f32 0.0, %v1286
        %1288 = vmatmul.f32.gmra.mxu0 %v1194
        %v1289 = vpop.f32.mrf.mxu0
        %v1290 = vadd.f32 0.0, %v1289
        %1291 = vmatmul.f32.gmra.mxu0 %v1195
        %v1292 = vpop.f32.mrf.mxu0
        %v1293 = vadd.f32 0.0, %v1292
        %1294 = vmatmul.f32.gmra.mxu0 %v1196
        %v1295 = vpop.f32.mrf.mxu0
        %v1296 = vadd.f32 0.0, %v1295
        %1297 = vmatmul.f32.gmra.mxu0 %v1197
        %v1298 = vpop.f32.mrf.mxu0
        %v1299 = vadd.f32 0.0, %v1298
        %1300 = vmatmul.f32.gmra.mxu0 %v1198
        %v1301 = vpop.f32.mrf.mxu0
        %v1302 = vadd.f32 0.0, %v1301
        %1303 = vmatmul.f32.gmra.mxu0 %v1199
        %v1304 = vpop.f32.mrf.mxu0
        %v1305 = vadd.f32 0.0, %v1304
        %1306 = vmatmul.f32.gmra.mxu0 %v1200
        %v1307 = vpop.f32.mrf.mxu0
        %v1308 = vadd.f32 0.0, %v1307
        %1309 = vmatmul.f32.gmra.mxu0 %v1201
        %v1310 = vpop.f32.mrf.mxu0
        %v1311 = vadd.f32 0.0, %v1310
        %1312 = vmatmul.f32.gmra.mxu0 %v1202
        %v1313 = vpop.f32.mrf.mxu0
        %v1314 = vadd.f32 0.0, %v1313
        %1315 = vdwg.mxu0
        %v1316 = vmax.f32 %v783, %v929
        %v1317 = vmax.f32 %v786, %v932
        %v1318 = vmax.f32 %v789, %v935
        %v1319 = vmax.f32 %v792, %v938
        %v1320 = vmax.f32 %v795, %v941
        %v1321 = vmax.f32 %v798, %v944
        %v1322 = vmax.f32 %v801, %v947
        %v1323 = vmax.f32 %v804, %v950
        %v1324 = vmax.f32 %v807, %v953
        %v1325 = vmax.f32 %v810, %v956
        %v1326 = vmax.f32 %v813, %v959
        %v1327 = vmax.f32 %v816, %v962
        %v1328 = vmax.f32 %v819, %v965
        %v1329 = vmax.f32 %v822, %v968
        %v1330 = vmax.f32 %v825, %v971
        %v1331 = vmax.f32 %v828, %v974
        %v1332 = vmax.f32 %v831, %v977
        %v1333 = vmax.f32 %v834, %v980
        %v1334 = vmax.f32 %v837, %v983
        %v1335 = vmax.f32 %v840, %v986
        %v1336 = vmax.f32 %v843, %v989
        %v1337 = vmax.f32 %v846, %v992
        %v1338 = vmax.f32 %v849, %v995
        %v1339 = vmax.f32 %v852, %v998
        %v1340 = vmax.f32 %v855, %v1001
        %v1341 = vmax.f32 %v858, %v1004
        %v1342 = vmax.f32 %v861, %v1007
        %v1343 = vmax.f32 %v864, %v1010
        %v1344 = vmax.f32 %v867, %v1013
        %v1345 = vmax.f32 %v870, %v1016
        %v1346 = vmax.f32 %v873, %v1019
        %v1347 = vmax.f32 %v876, %v1022
        %v1348 = vmax.f32 %v1075, %v1221
        %v1349 = vmax.f32 %v1078, %v1224
        %v1350 = vmax.f32 %v1081, %v1227
        %v1351 = vmax.f32 %v1084, %v1230
        %v1352 = vmax.f32 %v1087, %v1233
        %v1353 = vmax.f32 %v1090, %v1236
        %v1354 = vmax.f32 %v1093, %v1239
        %v1355 = vmax.f32 %v1096, %v1242
        %v1356 = vmax.f32 %v1099, %v1245
        %v1357 = vmax.f32 %v1102, %v1248
        %v1358 = vmax.f32 %v1105, %v1251
        %v1359 = vmax.f32 %v1108, %v1254
        %v1360 = vmax.f32 %v1111, %v1257
        %v1361 = vmax.f32 %v1114, %v1260
        %v1362 = vmax.f32 %v1117, %v1263
        %v1363 = vmax.f32 %v1120, %v1266
        %v1364 = vmax.f32 %v1123, %v1269
        %v1365 = vmax.f32 %v1126, %v1272
        %v1366 = vmax.f32 %v1129, %v1275
        %v1367 = vmax.f32 %v1132, %v1278
        %v1368 = vmax.f32 %v1135, %v1281
        %v1369 = vmax.f32 %v1138, %v1284
        %v1370 = vmax.f32 %v1141, %v1287
        %v1371 = vmax.f32 %v1144, %v1290
        %v1372 = vmax.f32 %v1147, %v1293
        %v1373 = vmax.f32 %v1150, %v1296
        %v1374 = vmax.f32 %v1153, %v1299
        %v1375 = vmax.f32 %v1156, %v1302
        %v1376 = vmax.f32 %v1159, %v1305
        %v1377 = vmax.f32 %v1162, %v1308
        %v1378 = vmax.f32 %v1165, %v1311
        %v1379 = vmax.f32 %v1168, %v1314
        %v1380 = vmax.f32 %v1316, %v1348
        %v1381 = vmax.f32 %v1317, %v1349
        %v1382 = vmax.f32 %v1318, %v1350
        %v1383 = vmax.f32 %v1319, %v1351
        %v1384 = vmax.f32 %v1320, %v1352
        %v1385 = vmax.f32 %v1321, %v1353
        %v1386 = vmax.f32 %v1322, %v1354
        %v1387 = vmax.f32 %v1323, %v1355
        %v1388 = vmax.f32 %v1324, %v1356
        %v1389 = vmax.f32 %v1325, %v1357
        %v1390 = vmax.f32 %v1326, %v1358
        %v1391 = vmax.f32 %v1327, %v1359
        %v1392 = vmax.f32 %v1328, %v1360
        %v1393 = vmax.f32 %v1329, %v1361
        %v1394 = vmax.f32 %v1330, %v1362
        %v1395 = vmax.f32 %v1331, %v1363
        %v1396 = vmax.f32 %v1332, %v1364
        %v1397 = vmax.f32 %v1333, %v1365
        %v1398 = vmax.f32 %v1334, %v1366
        %v1399 = vmax.f32 %v1335, %v1367
        %v1400 = vmax.f32 %v1336, %v1368
        %v1401 = vmax.f32 %v1337, %v1369
        %v1402 = vmax.f32 %v1338, %v1370
        %v1403 = vmax.f32 %v1339, %v1371
        %v1404 = vmax.f32 %v1340, %v1372
        %v1405 = vmax.f32 %v1341, %v1373
        %v1406 = vmax.f32 %v1342, %v1374
        %v1407 = vmax.f32 %v1343, %v1375
        %v1408 = vmax.f32 %v1344, %v1376
        %v1409 = vmax.f32 %v1345, %v1377
        %v1410 = vmax.f32 %v1346, %v1378
        %v1411 = vmax.f32 %v1347, %v1379
        %v1412 = vld [vmem:[%s2] sm:$0x1]
        %v1414 = vperm.slane %v1412, 0
        %v1416 = vadd.f32 %v1380, %v1414
        %v1417 = vadd.f32 %v1381, %v1414
        %v1418 = vadd.f32 %v1382, %v1414
        %v1419 = vadd.f32 %v1383, %v1414
        %v1420 = vadd.f32 %v1384, %v1414
        %v1421 = vadd.f32 %v1385, %v1414
        %v1422 = vadd.f32 %v1386, %v1414
        %v1423 = vadd.f32 %v1387, %v1414
        %v1424 = vadd.f32 %v1388, %v1414
        %v1425 = vadd.f32 %v1389, %v1414
        %v1426 = vadd.f32 %v1390, %v1414
        %v1427 = vadd.f32 %v1391, %v1414
        %v1428 = vadd.f32 %v1392, %v1414
        %v1429 = vadd.f32 %v1393, %v1414
        %v1430 = vadd.f32 %v1394, %v1414
        %v1431 = vadd.f32 %v1395, %v1414
        %v1432 = vadd.f32 %v1396, %v1414
        %v1433 = vadd.f32 %v1397, %v1414
        %v1434 = vadd.f32 %v1398, %v1414
        %v1435 = vadd.f32 %v1399, %v1414
        %v1436 = vadd.f32 %v1400, %v1414
        %v1437 = vadd.f32 %v1401, %v1414
        %v1438 = vadd.f32 %v1402, %v1414
        %v1439 = vadd.f32 %v1403, %v1414
        %v1440 = vadd.f32 %v1404, %v1414
        %v1441 = vadd.f32 %v1405, %v1414
        %v1442 = vadd.f32 %v1406, %v1414
        %v1443 = vadd.f32 %v1407, %v1414
        %v1444 = vadd.f32 %v1408, %v1414
        %v1445 = vadd.f32 %v1409, %v1414
        %v1446 = vadd.f32 %v1410, %v1414
        %v1447 = vadd.f32 %v1411, %v1414
        %vm1448 = vcmask 261120
        %1449 = vst.msk [vmem:[%s715] sm:$0xff] %vm1448, %v1416
        %1450 = vst.msk [vmem:[%s715 + $0x8] sm:$0xff] %vm1448, %v1417
        %1451 = vst.msk [vmem:[%s715 + $0x10] sm:$0xff] %vm1448, %v1418
        %1452 = vst.msk [vmem:[%s715 + $0x18] sm:$0xff] %vm1448, %v1419
        %1453 = vst.msk [vmem:[%s715 + $0x20] sm:$0xff] %vm1448, %v1420
        %1454 = vst.msk [vmem:[%s715 + $0x28] sm:$0xff] %vm1448, %v1421
        %1455 = vst.msk [vmem:[%s715 + $0x30] sm:$0xff] %vm1448, %v1422
        %1456 = vst.msk [vmem:[%s715 + $0x38] sm:$0xff] %vm1448, %v1423
        %1457 = vst.msk [vmem:[%s715 + $0x40] sm:$0xff] %vm1448, %v1424
        %1458 = vst.msk [vmem:[%s715 + $0x48] sm:$0xff] %vm1448, %v1425
        %1459 = vst.msk [vmem:[%s715 + $0x50] sm:$0xff] %vm1448, %v1426
        %1460 = vst.msk [vmem:[%s715 + $0x58] sm:$0xff] %vm1448, %v1427
        %1461 = vst.msk [vmem:[%s715 + $0x60] sm:$0xff] %vm1448, %v1428
        %1462 = vst.msk [vmem:[%s715 + $0x68] sm:$0xff] %vm1448, %v1429
        %1463 = vst.msk [vmem:[%s715 + $0x70] sm:$0xff] %vm1448, %v1430
        %1464 = vst.msk [vmem:[%s715 + $0x78] sm:$0xff] %vm1448, %v1431
        %1465 = vst.msk [vmem:[%s715 + $0x80] sm:$0xff] %vm1448, %v1432
        %1466 = vst.msk [vmem:[%s715 + $0x88] sm:$0xff] %vm1448, %v1433
        %1467 = vst.msk [vmem:[%s715 + $0x90] sm:$0xff] %vm1448, %v1434
        %1468 = vst.msk [vmem:[%s715 + $0x98] sm:$0xff] %vm1448, %v1435
        %1469 = vst.msk [vmem:[%s715 + $0xa0] sm:$0xff] %vm1448, %v1436
        %1470 = vst.msk [vmem:[%s715 + $0xa8] sm:$0xff] %vm1448, %v1437
        %1471 = vst.msk [vmem:[%s715 + $0xb0] sm:$0xff] %vm1448, %v1438
        %1472 = vst.msk [vmem:[%s715 + $0xb8] sm:$0xff] %vm1448, %v1439
        %1473 = vst.msk [vmem:[%s715 + $0xc0] sm:$0xff] %vm1448, %v1440
        %1474 = vst.msk [vmem:[%s715 + $0xc8] sm:$0xff] %vm1448, %v1441
        %1475 = vst.msk [vmem:[%s715 + $0xd0] sm:$0xff] %vm1448, %v1442
        %1476 = vst.msk [vmem:[%s715 + $0xd8] sm:$0xff] %vm1448, %v1443
        %1477 = vst.msk [vmem:[%s715 + $0xe0] sm:$0xff] %vm1448, %v1444
        %1478 = vst.msk [vmem:[%s715 + $0xe8] sm:$0xff] %vm1448, %v1445
        %1479 = vst.msk [vmem:[%s715 + $0xf0] sm:$0xff] %vm1448, %v1446
        %1480 = vst.msk [vmem:[%s715 + $0xf8] sm:$0xff] %vm1448, %v1447
        %s1481 = smul.u32 32, %s14
        %p1482 = scmp.lt.s32.totalorder %s1481, 63
        %s1483 = scalar_select %p1482, %s1481, 63
        %s1484 = smul.addr %s1483, 8
        %s1485 = scalar_lea.vmem %s3, %s1484
        // Predicated region
        $region71: #{net_forward.4} parent=65 // pred_check
          %p1486 = pneg %p100
        $region72: #{net_forward.4} parent=65 // pred_check_branch
          %1488 = sbr.rel (%p1486) target = $region74
        $region73: #{net_forward.4} parent=65 // pred_region
          %s1489 = smul.u32 32, %s14
        $region74: #{net_forward.4} parent=65 // pred_fallthru
          _
      $region66: #{net_forward.4} parent=5 // pred_fallthru
        _
      %p1490 = scmp.le.s32.totalorder 2, %s9
      // Predicated region
      $region75: #{net_forward.4} parent=5 // pred_check
        %p1491 = pneg %p1490
      $region76: #{net_forward.4} parent=5 // pred_check_branch
        %1493 = sbr.rel (%p1491) target = $region78
      $region77: #{net_forward.4} parent=5 // pred_region
        %s1494 = ssub.s32 %s9, 2
        // Predicated region
        $region79: #{net_forward.4} parent=77 // pred_check
          %p1495 = pneg %p106
        $region80: #{net_forward.4} parent=77 // pred_check_branch
          %1497 = sbr.rel (%p1495) target = $region82
        $region81: #{net_forward.4} parent=77 // pred_region
          %s1498 = smul.u32 32, %s15
          %p1499 = scmp.lt.s32.totalorder %s1498, 63
          %s1500 = scalar_select %p1499, %s1498, 63
          %s1501 = smul.addr %s1500, 8
          %s1502 = scalar_lea.vmem %s3, %s1501
        $region82: #{net_forward.4} parent=77 // pred_fallthru
          _
      $region78: #{net_forward.4} parent=5 // pred_fallthru
        _
    $region6: #{net_forward.4} parent=1 // loop_footer
      %s13 = sadd.s32 1, %s9
    $region7: #{net_forward.4} parent=1 // loop_footer_branch
      %8 = sbr.rel target = $region3
    $region8: #{net_forward.4} parent=1 // loop_exit
      _

// kernel: net_forward.5
$region0: #{net_forward.5}
  #allocation0 [shape = 'u32[]', space=smem, size = 0x4, offset = 0x4, fixed_abs, tag = 'smem constant byte address 0x4 - core index']
  #allocation1 [shape = 'u32[72,128]{1,0:T(1,128)}', space=vmem, size = 0x9000, scoped, tag = 'internal scratch']
  %s0 = inlined_call_operand.vmem [shape: f32[4,128,896], index: 0, kind: input, shape index: {}]
  %s1 = inlined_call_operand.vmem [shape: f32[896,32], index: 1, kind: input, shape index: {}]
  %s2 = inlined_call_operand.vmem [shape: f32[1,32], index: 2, kind: input, shape index: {}]
  %s3 = inlined_call_operand.vmem [shape: f32[128,32], index: 3, kind: output, shape index: {}]
  %s4 = sld [smem:[#allocation0]]
  $region68: #{net_forward.5} parent=0
    _
  %s6 = ssub.s32 1, %s4
  %s7 = scalar_select 0, %s6, %s4
  $region1: #{net_forward.5} parent=0
    #allocation2 [shape = 'u8[1835008]{0}', space=vmem, size = 0x1c0000, scoped, tag = 'input window, operand 0']
    loop: start=0, step=1, limit=4
    $region2: #{net_forward.5} parent=1 // loop_pre_header
      _
    $region3: #{net_forward.5} parent=1 // loop_header
      %s9 = sphi 0, %s13
      %p10 = scmp.ge.s32.totalorder %s9, 4
      %s19 = sphi 0, %s21
      %s22 = sphi 0, %s19
      %s23 = sphi 0, %s22
      %s39 = sphi 0, %s23
      %s43 = sphi 0, %s43
      %s45 = sphi 0, %s43
      %s46 = sphi 0, %s45
      %s60 = sphi 0, %s46
      %s64 = sphi 0, %s64
      %s66 = sphi 0, %s64
      %s67 = sphi 0, %s66
      %s81 = sphi 0, %s67
      %s87 = sphi 0, %s89
      %s90 = sphi 0, %s87
      %s91 = sphi 0, %s90
      %s107 = sphi 0, %s91
    $region4: #{net_forward.5} parent=1 // loop_header_branch
      %12 = sbr.rel (%p10) target = $region8
    $region5: #{net_forward.5} parent=1 // loop_body
      %s14 = ssub.s32 %s9, 1
      %s15 = ssub.s32 %s9, 2
      %s16 = sadd.s32 %s9, 1
      %s17 = ssub.s32 %s9, %s16
      %p18 = scmp.eq.s32.totalorder %s17, 0
      %s20 = sadd.s32 %s19, 1
      %s21 = scalar_select %p18, %s19, %s20
      %p24 = pneg %p18
      %p25 = scmp.eq.s32.totalorder %s9, 1
      %p26 = por %p24, %p25
      %p27 = scmp.ne.s32.totalorder %s19, %s22
      %p28 = scmp.eq.s32.totalorder %s9, 0
      %p29 = por %p27, %p28
      %p30 = scmp.ne.s32.totalorder %s19, %s22
      %p31 = scmp.eq.s32.totalorder %s14, 1
      %p32 = por %p30, %p31
      %p33 = scmp.ne.s32.totalorder %s22, %s23
      %p34 = scmp.eq.s32.totalorder %s14, 0
      %p35 = por %p33, %p34
      %p36 = scmp.ne.s32.totalorder %s22, %s23
      %p37 = scmp.eq.s32.totalorder %s15, 1
      %p38 = por %p36, %p37
      %p40 = scmp.ne.s32.totalorder %s23, %s39
      %p41 = scmp.eq.s32.totalorder %s15, 0
      %p42 = por %p40, %p41
      %s44 = sadd.s32 %s43, 1
      %p47 = scmp.eq.s32.totalorder %s9, 1
      %p48 = scmp.ne.s32.totalorder %s43, %s45
      %p49 = scmp.eq.s32.totalorder %s9, 0
      %p50 = por %p48, %p49
      %p51 = scmp.ne.s32.totalorder %s43, %s45
      %p52 = scmp.eq.s32.totalorder %s14, 1
      %p53 = por %p51, %p52
      %p54 = scmp.ne.s32.totalorder %s45, %s46
      %p55 = scmp.eq.s32.totalorder %s14, 0
      %p56 = por %p54, %p55
      %p57 = scmp.ne.s32.totalorder %s45, %s46
      %p58 = scmp.eq.s32.totalorder %s15, 1
      %p59 = por %p57, %p58
      %p61 = scmp.ne.s32.totalorder %s46, %s60
      %p62 = scmp.eq.s32.totalorder %s15, 0
      %p63 = por %p61, %p62
      %s65 = sadd.s32 %s64, 1
      %p68 = scmp.eq.s32.totalorder %s9, 1
      %p69 = scmp.ne.s32.totalorder %s64, %s66
      %p70 = scmp.eq.s32.totalorder %s9, 0
      %p71 = por %p69, %p70
      %p72 = scmp.ne.s32.totalorder %s64, %s66
      %p73 = scmp.eq.s32.totalorder %s14, 1
      %p74 = por %p72, %p73
      %p75 = scmp.ne.s32.totalorder %s66, %s67
      %p76 = scmp.eq.s32.totalorder %s14, 0
      %p77 = por %p75, %p76
      %p78 = scmp.ne.s32.totalorder %s66, %s67
      %p79 = scmp.eq.s32.totalorder %s15, 1
      %p80 = por %p78, %p79
      %p82 = scmp.ne.s32.totalorder %s67, %s81
      %p83 = scmp.eq.s32.totalorder %s15, 0
      %p84 = por %p82, %p83
      %s85 = ssub.s32 %s9, %s16
      %p86 = scmp.eq.s32.totalorder %s85, 0
      %s88 = sadd.s32 %s87, 1
      %s89 = scalar_select %p86, %s87, %s88
      %p92 = pneg %p86
      %p93 = scmp.eq.s32.totalorder %s9, 1
      %p94 = por %p92, %p93
      %p95 = scmp.ne.s32.totalorder %s87, %s90
      %p96 = scmp.eq.s32.totalorder %s9, 0
      %p97 = por %p95, %p96
      %p98 = scmp.ne.s32.totalorder %s87, %s90
      %p99 = scmp.eq.s32.totalorder %s14, 1
      %p100 = por %p98, %p99
      %p101 = scmp.ne.s32.totalorder %s90, %s91
      %p102 = scmp.eq.s32.totalorder %s14, 0
      %p103 = por %p101, %p102
      %p104 = scmp.ne.s32.totalorder %s90, %s91
      %p105 = scmp.eq.s32.totalorder %s15, 1
      %p106 = por %p104, %p105
      %p108 = scmp.ne.s32.totalorder %s91, %s107
      %p109 = scmp.eq.s32.totalorder %s15, 0
      %p110 = por %p108, %p109
      %p111 = scmp.le.s32.totalorder 1, %s9
      %p112 = scmp.lt.s32.totalorder %s9, 3
      %p113 = pnand %p111, %p112
      %p114 = pneg %p113
      // Predicated region
      $region9: #{net_forward.5} parent=5 // pred_check
        _
      $region10: #{net_forward.5} parent=5 // pred_check_branch
        %116 = sbr.rel (%p113) target = $region12
      $region11: #{net_forward.5} parent=5 // pred_region
        %s117 = ssub.s32 %s9, 1
        // Predicated region
        $region13: #{net_forward.5} parent=11 // pred_check
          %p118 = pneg %p56
        $region14: #{net_forward.5} parent=11 // pred_check_branch
          %120 = sbr.rel (%p118) target = $region16
        $region15: #{net_forward.5} parent=11 // pred_region
          _
        $region16: #{net_forward.5} parent=11 // pred_fallthru
          _
        // Predicated region
        $region17: #{net_forward.5} parent=11 // pred_check
          %p121 = pneg %p77
        $region18: #{net_forward.5} parent=11 // pred_check_branch
          %123 = sbr.rel (%p121) target = $region20
        $region19: #{net_forward.5} parent=11 // pred_region
          _
        $region20: #{net_forward.5} parent=11 // pred_fallthru
          _
      $region12: #{net_forward.5} parent=5 // pred_fallthru
        _
      %p124 = scmp.lt.s32.totalorder %s9, 2
      // Predicated region
      $region21: #{net_forward.5} parent=5 // pred_check
        %p125 = pneg %p124
      $region22: #{net_forward.5} parent=5 // pred_check_branch
        %127 = sbr.rel (%p125) target = $region24
      $region23: #{net_forward.5} parent=5 // pred_region
        // Predicated region
        $region25: #{net_forward.5} parent=23 // pred_check
          %p128 = pneg %p29
        $region26: #{net_forward.5} parent=23 // pred_check_branch
          %130 = sbr.rel (%p128) target = $region28
        $region27: #{net_forward.5} parent=23 // pred_region
          %s131 = sand.u32 %s19, 1
          %s132 = sand.u32 %s19, 1
          %s133 = smul.addr %s132, 1792
          %s134 = scalar_lea.vmem [#allocation2], %s133
          %s135 = smul.u32 8, %s9
          %s136 = smul.addr %s135, 7
          %s137 = smul.addr %s136, 8
          %s138 = scalar_lea.vmem %s0, %s137
          // Predicated region
          $region29: #{net_forward.5} parent=27 // pred_check
            _
          $region30: #{net_forward.5} parent=27 // pred_check_branch
            %140 = sbr.rel (0) target = $region32
          $region31: #{net_forward.5} parent=27 // pred_region
            // Predicated region
            $region33: #{net_forward.5} parent=31 // pred_check
              _
            $region34: #{net_forward.5} parent=31 // pred_check_branch
              %142 = sbr.rel (0) target = $region36
            $region35: #{net_forward.5} parent=31 // pred_region
              loop: start=0, step=1, limit=1
              $region37: #{net_forward.5} parent=35 // loop_pre_header
                _
              $region38: #{net_forward.5} parent=35 // loop_header
                %s144 = sphi 0, %s148
                %p145 = scmp.ge.s32.totalorder %s144, 1
                %s149 = sphi %s138, %s138
                %s150 = sphi %s134, %s134
              $region39: #{net_forward.5} parent=35 // loop_header_branch
                %147 = sbr.rel (%p145) target = $region43
              $region40: #{net_forward.5} parent=35 // loop_body
                %v151 = vld [vmem:[%s149] sm:$0xff]
                %152 = vst [vmem:[%s150] sm:$0xff] %v151
                %v153 = vld [vmem:[%s149 + $0x8] sm:$0xff]
                %154 = vst [vmem:[%s150 + $0x8] sm:$0xff] %v153
                %v155 = vld [vmem:[%s149 + $0x10] sm:$0xff]
                %156 = vst [vmem:[%s150 + $0x10] sm:$0xff] %v155
                %v157 = vld [vmem:[%s149 + $0x18] sm:$0xff]
                %158 = vst [vmem:[%s150 + $0x18] sm:$0xff] %v157
                %v159 = vld [vmem:[%s149 + $0x20] sm:$0xff]
                %160 = vst [vmem:[%s150 + $0x20] sm:$0xff] %v159
                %v161 = vld [vmem:[%s149 + $0x28] sm:$0xff]
                %162 = vst [vmem:[%s150 + $0x28] sm:$0xff] %v161
                %v163 = vld [vmem:[%s149 + $0x30] sm:$0xff]
                %164 = vst [vmem:[%s150 + $0x30] sm:$0xff] %v163
                %v165 = vld [vmem:[%s149 + $0x38] sm:$0xff]
                %166 = vst [vmem:[%s150 + $0x38] sm:$0xff] %v165
                %v167 = vld [vmem:[%s149 + $0x40] sm:$0xff]
                %168 = vst [vmem:[%s150 + $0x40] sm:$0xff] %v167
                %v169 = vld [vmem:[%s149 + $0x48] sm:$0xff]
                %170 = vst [vmem:[%s150 + $0x48] sm:$0xff] %v169
                %v171 = vld [vmem:[%s149 + $0x50] sm:$0xff]
                %172 = vst [vmem:[%s150 + $0x50] sm:$0xff] %v171
                %v173 = vld [vmem:[%s149 + $0x58] sm:$0xff]
                %174 = vst [vmem:[%s150 + $0x58] sm:$0xff] %v173
                %v175 = vld [vmem:[%s149 + $0x60] sm:$0xff]
                %176 = vst [vmem:[%s150 + $0x60] sm:$0xff] %v175
                %v177 = vld [vmem:[%s149 + $0x68] sm:$0xff]
                %178 = vst [vmem:[%s150 + $0x68] sm:$0xff] %v177
                %v179 = vld [vmem:[%s149 + $0x70] sm:$0xff]
                %180 = vst [vmem:[%s150 + $0x70] sm:$0xff] %v179
                %v181 = vld [vmem:[%s149 + $0x78] sm:$0xff]
                %182 = vst [vmem:[%s150 + $0x78] sm:$0xff] %v181
                %v183 = vld [vmem:[%s149 + $0x80] sm:$0xff]
                %184 = vst [vmem:[%s150 + $0x80] sm:$0xff] %v183
                %v185 = vld [vmem:[%s149 + $0x88] sm:$0xff]
                %186 = vst [vmem:[%s150 + $0x88] sm:$0xff] %v185
                %v187 = vld [vmem:[%s149 + $0x90] sm:$0xff]
                %188 = vst [vmem:[%s150 + $0x90] sm:$0xff] %v187
                %v189 = vld [vmem:[%s149 + $0x98] sm:$0xff]
                %190 = vst [vmem:[%s150 + $0x98] sm:$0xff] %v189
                %v191 = vld [vmem:[%s149 + $0xa0] sm:$0xff]
                %192 = vst [vmem:[%s150 + $0xa0] sm:$0xff] %v191
                %v193 = vld [vmem:[%s149 + $0xa8] sm:$0xff]
                %194 = vst [vmem:[%s150 + $0xa8] sm:$0xff] %v193
                %v195 = vld [vmem:[%s149 + $0xb0] sm:$0xff]
                %196 = vst [vmem:[%s150 + $0xb0] sm:$0xff] %v195
                %v197 = vld [vmem:[%s149 + $0xb8] sm:$0xff]
                %198 = vst [vmem:[%s150 + $0xb8] sm:$0xff] %v197
                %v199 = vld [vmem:[%s149 + $0xc0] sm:$0xff]
                %200 = vst [vmem:[%s150 + $0xc0] sm:$0xff] %v199
                %v201 = vld [vmem:[%s149 + $0xc8] sm:$0xff]
                %202 = vst [vmem:[%s150 + $0xc8] sm:$0xff] %v201
                %v203 = vld [vmem:[%s149 + $0xd0] sm:$0xff]
                %204 = vst [vmem:[%s150 + $0xd0] sm:$0xff] %v203
                %v205 = vld [vmem:[%s149 + $0xd8] sm:$0xff]
                %206 = vst [vmem:[%s150 + $0xd8] sm:$0xff] %v205
                %v207 = vld [vmem:[%s149 + $0xe0] sm:$0xff]
                %208 = vst [vmem:[%s150 + $0xe0] sm:$0xff] %v207
                %v209 = vld [vmem:[%s149 + $0xe8] sm:$0xff]
                %210 = vst [vmem:[%s150 + $0xe8] sm:$0xff] %v209
                %v211 = vld [vmem:[%s149 + $0xf0] sm:$0xff]
                %212 = vst [vmem:[%s150 + $0xf0] sm:$0xff] %v211
                %v213 = vld [vmem:[%s149 + $0xf8] sm:$0xff]
                %214 = vst [vmem:[%s150 + $0xf8] sm:$0xff] %v213
                %v215 = vld [vmem:[%s149 + $0x100] sm:$0xff]
                %216 = vst [vmem:[%s150 + $0x100] sm:$0xff] %v215
                %v217 = vld [vmem:[%s149 + $0x108] sm:$0xff]
                %218 = vst [vmem:[%s150 + $0x108] sm:$0xff] %v217
                %v219 = vld [vmem:[%s149 + $0x110] sm:$0xff]
                %220 = vst [vmem:[%s150 + $0x110] sm:$0xff] %v219
                %v221 = vld [vmem:[%s149 + $0x118] sm:$0xff]
                %222 = vst [vmem:[%s150 + $0x118] sm:$0xff] %v221
                %v223 = vld [vmem:[%s149 + $0x120] sm:$0xff]
                %224 = vst [vmem:[%s150 + $0x120] sm:$0xff] %v223
                %v225 = vld [vmem:[%s149 + $0x128] sm:$0xff]
                %226 = vst [vmem:[%s150 + $0x128] sm:$0xff] %v225
                %v227 = vld [vmem:[%s149 + $0x130] sm:$0xff]
                %228 = vst [vmem:[%s150 + $0x130] sm:$0xff] %v227
                %v229 = vld [vmem:[%s149 + $0x138] sm:$0xff]
                %230 = vst [vmem:[%s150 + $0x138] sm:$0xff] %v229
                %v231 = vld [vmem:[%s149 + $0x140] sm:$0xff]
                %232 = vst [vmem:[%s150 + $0x140] sm:$0xff] %v231
                %v233 = vld [vmem:[%s149 + $0x148] sm:$0xff]
                %234 = vst [vmem:[%s150 + $0x148] sm:$0xff] %v233
                %v235 = vld [vmem:[%s149 + $0x150] sm:$0xff]
                %236 = vst [vmem:[%s150 + $0x150] sm:$0xff] %v235
                %v237 = vld [vmem:[%s149 + $0x158] sm:$0xff]
                %238 = vst [vmem:[%s150 + $0x158] sm:$0xff] %v237
                %v239 = vld [vmem:[%s149 + $0x160] sm:$0xff]
                %240 = vst [vmem:[%s150 + $0x160] sm:$0xff] %v239
                %v241 = vld [vmem:[%s149 + $0x168] sm:$0xff]
                %242 = vst [vmem:[%s150 + $0x168] sm:$0xff] %v241
                %v243 = vld [vmem:[%s149 + $0x170] sm:$0xff]
                %244 = vst [vmem:[%s150 + $0x170] sm:$0xff] %v243
                %v245 = vld [vmem:[%s149 + $0x178] sm:$0xff]
                %246 = vst [vmem:[%s150 + $0x178] sm:$0xff] %v245
                %v247 = vld [vmem:[%s149 + $0x180] sm:$0xff]
                %248 = vst [vmem:[%s150 + $0x180] sm:$0xff] %v247
                %v249 = vld [vmem:[%s149 + $0x188] sm:$0xff]
                %250 = vst [vmem:[%s150 + $0x188] sm:$0xff] %v249
                %v251 = vld [vmem:[%s149 + $0x190] sm:$0xff]
                %252 = vst [vmem:[%s150 + $0x190] sm:$0xff] %v251
                %v253 = vld [vmem:[%s149 + $0x198] sm:$0xff]
                %254 = vst [vmem:[%s150 + $0x198] sm:$0xff] %v253
                %v255 = vld [vmem:[%s149 + $0x1a0] sm:$0xff]
                %256 = vst [vmem:[%s150 + $0x1a0] sm:$0xff] %v255
                %v257 = vld [vmem:[%s149 + $0x1a8] sm:$0xff]
                %258 = vst [vmem:[%s150 + $0x1a8] sm:$0xff] %v257
                %v259 = vld [vmem:[%s149 + $0x1b0] sm:$0xff]
                %260 = vst [vmem:[%s150 + $0x1b0] sm:$0xff] %v259
                %v261 = vld [vmem:[%s149 + $0x1b8] sm:$0xff]
                %262 = vst [vmem:[%s150 + $0x1b8] sm:$0xff] %v261
                %v263 = vld [vmem:[%s149 + $0x380] sm:$0xff]
                %264 = vst [vmem:[%s150 + $0x1c0] sm:$0xff] %v263
                %v265 = vld [vmem:[%s149 + $0x388] sm:$0xff]
                %266 = vst [vmem:[%s150 + $0x1c8] sm:$0xff] %v265
                %v267 = vld [vmem:[%s149 + $0x390] sm:$0xff]
                %268 = vst [vmem:[%s150 + $0x1d0] sm:$0xff] %v267
                %v269 = vld [vmem:[%s149 + $0x398] sm:$0xff]
                %270 = vst [vmem:[%s150 + $0x1d8] sm:$0xff] %v269
                %v271 = vld [vmem:[%s149 + $0x3a0] sm:$0xff]
                %272 = vst [vmem:[%s150 + $0x1e0] sm:$0xff] %v271
                %v273 = vld [vmem:[%s149 + $0x3a8] sm:$0xff]
                %274 = vst [vmem:[%s150 + $0x1e8] sm:$0xff] %v273
                %v275 = vld [vmem:[%s149 + $0x3b0] sm:$0xff]
                %276 = vst [vmem:[%s150 + $0x1f0] sm:$0xff] %v275
                %v277 = vld [vmem:[%s149 + $0x3b8] sm:$0xff]
                %278 = vst [vmem:[%s150 + $0x1f8] sm:$0xff] %v277
                %v279 = vld [vmem:[%s149 + $0x3c0] sm:$0xff]
                %280 = vst [vmem:[%s150 + $0x200] sm:$0xff] %v279
                %v281 = vld [vmem:[%s149 + $0x3c8] sm:$0xff]
                %282 = vst [vmem:[%s150 + $0x208] sm:$0xff] %v281
                %v283 = vld [vmem:[%s149 + $0x3d0] sm:$0xff]
                %284 = vst [vmem:[%s150 + $0x210] sm:$0xff] %v283
                %v285 = vld [vmem:[%s149 + $0x3d8] sm:$0xff]
                %286 = vst [vmem:[%s150 + $0x218] sm:$0xff] %v285
                %v287 = vld [vmem:[%s149 + $0x3e0] sm:$0xff]
                %288 = vst [vmem:[%s150 + $0x220] sm:$0xff] %v287
                %v289 = vld [vmem:[%s149 + $0x3e8] sm:$0xff]
                %290 = vst [vmem:[%s150 + $0x228] sm:$0xff] %v289
                %v291 = vld [vmem:[%s149 + $0x3f0] sm:$0xff]
                %292 = vst [vmem:[%s150 + $0x230] sm:$0xff] %v291
                %v293 = vld [vmem:[%s149 + $0x3f8] sm:$0xff]
                %294 = vst [vmem:[%s150 + $0x238] sm:$0xff] %v293
                %v295 = vld [vmem:[%s149 + $0x400] sm:$0xff]
                %296 = vst [vmem:[%s150 + $0x240] sm:$0xff] %v295
                %v297 = vld [vmem:[%s149 + $0x408] sm:$0xff]
                %298 = vst [vmem:[%s150 + $0x248] sm:$0xff] %v297
                %v299 = vld [vmem:[%s149 + $0x410] sm:$0xff]
                %300 = vst [vmem:[%s150 + $0x250] sm:$0xff] %v299
                %v301 = vld [vmem:[%s149 + $0x418] sm:$0xff]
                %302 = vst [vmem:[%s150 + $0x258] sm:$0xff] %v301
                %v303 = vld [vmem:[%s149 + $0x420] sm:$0xff]
                %304 = vst [vmem:[%s150 + $0x260] sm:$0xff] %v303
                %v305 = vld [vmem:[%s149 + $0x428] sm:$0xff]
                %306 = vst [vmem:[%s150 + $0x268] sm:$0xff] %v305
                %v307 = vld [vmem:[%s149 + $0x430] sm:$0xff]
                %308 = vst [vmem:[%s150 + $0x270] sm:$0xff] %v307
                %v309 = vld [vmem:[%s149 + $0x438] sm:$0xff]
                %310 = vst [vmem:[%s150 + $0x278] sm:$0xff] %v309
                %v311 = vld [vmem:[%s149 + $0x440] sm:$0xff]
                %312 = vst [vmem:[%s150 + $0x280] sm:$0xff] %v311
                %v313 = vld [vmem:[%s149 + $0x448] sm:$0xff]
                %314 = vst [vmem:[%s150 + $0x288] sm:$0xff] %v313
                %v315 = vld [vmem:[%s149 + $0x450] sm:$0xff]
                %316 = vst [vmem:[%s150 + $0x290] sm:$0xff] %v315
                %v317 = vld [vmem:[%s149 + $0x458] sm:$0xff]
                %318 = vst [vmem:[%s150 + $0x298] sm:$0xff] %v317
                %v319 = vld [vmem:[%s149 + $0x460] sm:$0xff]
                %320 = vst [vmem:[%s150 + $0x2a0] sm:$0xff] %v319
                %v321 = vld [vmem:[%s149 + $0x468] sm:$0xff]
                %322 = vst [vmem:[%s150 + $0x2a8] sm:$0xff] %v321
                %v323 = vld [vmem:[%s149 + $0x470] sm:$0xff]
                %324 = vst [vmem:[%s150 + $0x2b0] sm:$0xff] %v323
                %v325 = vld [vmem:[%s149 + $0x478] sm:$0xff]
                %326 = vst [vmem:[%s150 + $0x2b8] sm:$0xff] %v325
                %v327 = vld [vmem:[%s149 + $0x480] sm:$0xff]
                %328 = vst [vmem:[%s150 + $0x2c0] sm:$0xff] %v327
                %v329 = vld [vmem:[%s149 + $0x488] sm:$0xff]
                %330 = vst [vmem:[%s150 + $0x2c8] sm:$0xff] %v329
                %v331 = vld [vmem:[%s149 + $0x490] sm:$0xff]
                %332 = vst [vmem:[%s150 + $0x2d0] sm:$0xff] %v331
                %v333 = vld [vmem:[%s149 + $0x498] sm:$0xff]
                %334 = vst [vmem:[%s150 + $0x2d8] sm:$0xff] %v333
                %v335 = vld [vmem:[%s149 + $0x4a0] sm:$0xff]
                %336 = vst [vmem:[%s150 + $0x2e0] sm:$0xff] %v335
                %v337 = vld [vmem:[%s149 + $0x4a8] sm:$0xff]
                %338 = vst [vmem:[%s150 + $0x2e8] sm:$0xff] %v337
                %v339 = vld [vmem:[%s149 + $0x4b0] sm:$0xff]
                %340 = vst [vmem:[%s150 + $0x2f0] sm:$0xff] %v339
                %v341 = vld [vmem:[%s149 + $0x4b8] sm:$0xff]
                %342 = vst [vmem:[%s150 + $0x2f8] sm:$0xff] %v341
                %v343 = vld [vmem:[%s149 + $0x4c0] sm:$0xff]
                %344 = vst [vmem:[%s150 + $0x300] sm:$0xff] %v343
                %v345 = vld [vmem:[%s149 + $0x4c8] sm:$0xff]
                %346 = vst [vmem:[%s150 + $0x308] sm:$0xff] %v345
                %v347 = vld [vmem:[%s149 + $0x4d0] sm:$0xff]
                %348 = vst [vmem:[%s150 + $0x310] sm:$0xff] %v347
                %v349 = vld [vmem:[%s149 + $0x4d8] sm:$0xff]
                %350 = vst [vmem:[%s150 + $0x318] sm:$0xff] %v349
                %v351 = vld [vmem:[%s149 + $0x4e0] sm:$0xff]
                %352 = vst [vmem:[%s150 + $0x320] sm:$0xff] %v351
                %v353 = vld [vmem:[%s149 + $0x4e8] sm:$0xff]
                %354 = vst [vmem:[%s150 + $0x328] sm:$0xff] %v353
                %v355 = vld [vmem:[%s149 + $0x4f0] sm:$0xff]
                %356 = vst [vmem:[%s150 + $0x330] sm:$0xff] %v355
                %v357 = vld [vmem:[%s149 + $0x4f8] sm:$0xff]
                %358 = vst [vmem:[%s150 + $0x338] sm:$0xff] %v357
                %v359 = vld [vmem:[%s149 + $0x500] sm:$0xff]
                %360 = vst [vmem:[%s150 + $0x340] sm:$0xff] %v359
                %v361 = vld [vmem:[%s149 + $0x508] sm:$0xff]
                %362 = vst [vmem:[%s150 + $0x348] sm:$0xff] %v361
                %v363 = vld [vmem:[%s149 + $0x510] sm:$0xff]
                %364 = vst [vmem:[%s150 + $0x350] sm:$0xff] %v363
                %v365 = vld [vmem:[%s149 + $0x518] sm:$0xff]
                %366 = vst [vmem:[%s150 + $0x358] sm:$0xff] %v365
                %v367 = vld [vmem:[%s149 + $0x520] sm:$0xff]
                %368 = vst [vmem:[%s150 + $0x360] sm:$0xff] %v367
                %v369 = vld [vmem:[%s149 + $0x528] sm:$0xff]
                %370 = vst [vmem:[%s150 + $0x368] sm:$0xff] %v369
                %v371 = vld [vmem:[%s149 + $0x530] sm:$0xff]
                %372 = vst [vmem:[%s150 + $0x370] sm:$0xff] %v371
                %v373 = vld [vmem:[%s149 + $0x538] sm:$0xff]
                %374 = vst [vmem:[%s150 + $0x378] sm:$0xff] %v373
                %v375 = vld [vmem:[%s149 + $0x700] sm:$0xff]
                %376 = vst [vmem:[%s150 + $0x380] sm:$0xff] %v375
                %v377 = vld [vmem:[%s149 + $0x708] sm:$0xff]
                %378 = vst [vmem:[%s150 + $0x388] sm:$0xff] %v377
                %v379 = vld [vmem:[%s149 + $0x710] sm:$0xff]
                %380 = vst [vmem:[%s150 + $0x390] sm:$0xff] %v379
                %v381 = vld [vmem:[%s149 + $0x718] sm:$0xff]
                %382 = vst [vmem:[%s150 + $0x398] sm:$0xff] %v381
                %v383 = vld [vmem:[%s149 + $0x720] sm:$0xff]
                %384 = vst [vmem:[%s150 + $0x3a0] sm:$0xff] %v383
                %v385 = vld [vmem:[%s149 + $0x728] sm:$0xff]
                %386 = vst [vmem:[%s150 + $0x3a8] sm:$0xff] %v385
                %v387 = vld [vmem:[%s149 + $0x730] sm:$0xff]
                %388 = vst [vmem:[%s150 + $0x3b0] sm:$0xff] %v387
                %v389 = vld [vmem:[%s149 + $0x738] sm:$0xff]
                %390 = vst [vmem:[%s150 + $0x3b8] sm:$0xff] %v389
                %v391 = vld [vmem:[%s149 + $0x740] sm:$0xff]
                %392 = vst [vmem:[%s150 + $0x3c0] sm:$0xff] %v391
                %v393 = vld [vmem:[%s149 + $0x748] sm:$0xff]
                %394 = vst [vmem:[%s150 + $0x3c8] sm:$0xff] %v393
                %v395 = vld [vmem:[%s149 + $0x750] sm:$0xff]
                %396 = vst [vmem:[%s150 + $0x3d0] sm:$0xff] %v395
                %v397 = vld [vmem:[%s149 + $0x758] sm:$0xff]
                %398 = vst [vmem:[%s150 + $0x3d8] sm:$0xff] %v397
                %v399 = vld [vmem:[%s149 + $0x760] sm:$0xff]
                %400 = vst [vmem:[%s150 + $0x3e0] sm:$0xff] %v399
                %v401 = vld [vmem:[%s149 + $0x768] sm:$0xff]
                %402 = vst [vmem:[%s150 + $0x3e8] sm:$0xff] %v401
                %v403 = vld [vmem:[%s149 + $0x770] sm:$0xff]
                %404 = vst [vmem:[%s150 + $0x3f0] sm:$0xff] %v403
                %v405 = vld [vmem:[%s149 + $0x778] sm:$0xff]
                %406 = vst [vmem:[%s150 + $0x3f8] sm:$0xff] %v405
                %v407 = vld [vmem:[%s149 + $0x780] sm:$0xff]
                %408 = vst [vmem:[%s150 + $0x400] sm:$0xff] %v407
                %v409 = vld [vmem:[%s149 + $0x788] sm:$0xff]
                %410 = vst [vmem:[%s150 + $0x408] sm:$0xff] %v409
                %v411 = vld [vmem:[%s149 + $0x790] sm:$0xff]
                %412 = vst [vmem:[%s150 + $0x410] sm:$0xff] %v411
                %v413 = vld [vmem:[%s149 + $0x798] sm:$0xff]
                %414 = vst [vmem:[%s150 + $0x418] sm:$0xff] %v413
                %v415 = vld [vmem:[%s149 + $0x7a0] sm:$0xff]
                %416 = vst [vmem:[%s150 + $0x420] sm:$0xff] %v415
                %v417 = vld [vmem:[%s149 + $0x7a8] sm:$0xff]
                %418 = vst [vmem:[%s150 + $0x428] sm:$0xff] %v417
                %v419 = vld [vmem:[%s149 + $0x7b0] sm:$0xff]
                %420 = vst [vmem:[%s150 + $0x430] sm:$0xff] %v419
                %v421 = vld [vmem:[%s149 + $0x7b8] sm:$0xff]
                %422 = vst [vmem:[%s150 + $0x438] sm:$0xff] %v421
                %v423 = vld [vmem:[%s149 + $0x7c0] sm:$0xff]
                %424 = vst [vmem:[%s150 + $0x440] sm:$0xff] %v423
                %v425 = vld [vmem:[%s149 + $0x7c8] sm:$0xff]
                %426 = vst [vmem:[%s150 + $0x448] sm:$0xff] %v425
                %v427 = vld [vmem:[%s149 + $0x7d0] sm:$0xff]
                %428 = vst [vmem:[%s150 + $0x450] sm:$0xff] %v427
                %v429 = vld [vmem:[%s149 + $0x7d8] sm:$0xff]
                %430 = vst [vmem:[%s150 + $0x458] sm:$0xff] %v429
                %v431 = vld [vmem:[%s149 + $0x7e0] sm:$0xff]
                %432 = vst [vmem:[%s150 + $0x460] sm:$0xff] %v431
                %v433 = vld [vmem:[%s149 + $0x7e8] sm:$0xff]
                %434 = vst [vmem:[%s150 + $0x468] sm:$0xff] %v433
                %v435 = vld [vmem:[%s149 + $0x7f0] sm:$0xff]
                %436 = vst [vmem:[%s150 + $0x470] sm:$0xff] %v435
                %v437 = vld [vmem:[%s149 + $0x7f8] sm:$0xff]
                %438 = vst [vmem:[%s150 + $0x478] sm:$0xff] %v437
                %v439 = vld [vmem:[%s149 + $0x800] sm:$0xff]
                %440 = vst [vmem:[%s150 + $0x480] sm:$0xff] %v439
                %v441 = vld [vmem:[%s149 + $0x808] sm:$0xff]
                %442 = vst [vmem:[%s150 + $0x488] sm:$0xff] %v441
                %v443 = vld [vmem:[%s149 + $0x810] sm:$0xff]
                %444 = vst [vmem:[%s150 + $0x490] sm:$0xff] %v443
                %v445 = vld [vmem:[%s149 + $0x818] sm:$0xff]
                %446 = vst [vmem:[%s150 + $0x498] sm:$0xff] %v445
                %v447 = vld [vmem:[%s149 + $0x820] sm:$0xff]
                %448 = vst [vmem:[%s150 + $0x4a0] sm:$0xff] %v447
                %v449 = vld [vmem:[%s149 + $0x828] sm:$0xff]
                %450 = vst [vmem:[%s150 + $0x4a8] sm:$0xff] %v449
                %v451 = vld [vmem:[%s149 + $0x830] sm:$0xff]
                %452 = vst [vmem:[%s150 + $0x4b0] sm:$0xff] %v451
                %v453 = vld [vmem:[%s149 + $0x838] sm:$0xff]
                %454 = vst [vmem:[%s150 + $0x4b8] sm:$0xff] %v453
                %v455 = vld [vmem:[%s149 + $0x840] sm:$0xff]
                %456 = vst [vmem:[%s150 + $0x4c0] sm:$0xff] %v455
                %v457 = vld [vmem:[%s149 + $0x848] sm:$0xff]
                %458 = vst [vmem:[%s150 + $0x4c8] sm:$0xff] %v457
                %v459 = vld [vmem:[%s149 + $0x850] sm:$0xff]
                %460 = vst [vmem:[%s150 + $0x4d0] sm:$0xff] %v459
                %v461 = vld [vmem:[%s149 + $0x858] sm:$0xff]
                %462 = vst [vmem:[%s150 + $0x4d8] sm:$0xff] %v461
                %v463 = vld [vmem:[%s149 + $0x860] sm:$0xff]
                %464 = vst [vmem:[%s150 + $0x4e0] sm:$0xff] %v463
                %v465 = vld [vmem:[%s149 + $0x868] sm:$0xff]
                %466 = vst [vmem:[%s150 + $0x4e8] sm:$0xff] %v465
                %v467 = vld [vmem:[%s149 + $0x870] sm:$0xff]
                %468 = vst [vmem:[%s150 + $0x4f0] sm:$0xff] %v467
                %v469 = vld [vmem:[%s149 + $0x878] sm:$0xff]
                %470 = vst [vmem:[%s150 + $0x4f8] sm:$0xff] %v469
                %v471 = vld [vmem:[%s149 + $0x880] sm:$0xff]
                %472 = vst [vmem:[%s150 + $0x500] sm:$0xff] %v471
                %v473 = vld [vmem:[%s149 + $0x888] sm:$0xff]
                %474 = vst [vmem:[%s150 + $0x508] sm:$0xff] %v473
                %v475 = vld [vmem:[%s149 + $0x890] sm:$0xff]
                %476 = vst [vmem:[%s150 + $0x510] sm:$0xff] %v475
                %v477 = vld [vmem:[%s149 + $0x898] sm:$0xff]
                %478 = vst [vmem:[%s150 + $0x518] sm:$0xff] %v477
                %v479 = vld [vmem:[%s149 + $0x8a0] sm:$0xff]
                %480 = vst [vmem:[%s150 + $0x520] sm:$0xff] %v479
                %v481 = vld [vmem:[%s149 + $0x8a8] sm:$0xff]
                %482 = vst [vmem:[%s150 + $0x528] sm:$0xff] %v481
                %v483 = vld [vmem:[%s149 + $0x8b0] sm:$0xff]
                %484 = vst [vmem:[%s150 + $0x530] sm:$0xff] %v483
                %v485 = vld [vmem:[%s149 + $0x8b8] sm:$0xff]
                %486 = vst [vmem:[%s150 + $0x538] sm:$0xff] %v485
                %v487 = vld [vmem:[%s149 + $0xa80] sm:$0xff]
                %488 = vst [vmem:[%s150 + $0x540] sm:$0xff] %v487
                %v489 = vld [vmem:[%s149 + $0xa88] sm:$0xff]
                %490 = vst [vmem:[%s150 + $0x548] sm:$0xff] %v489
                %v491 = vld [vmem:[%s149 + $0xa90] sm:$0xff]
                %492 = vst [vmem:[%s150 + $0x550] sm:$0xff] %v491
                %v493 = vld [vmem:[%s149 + $0xa98] sm:$0xff]
                %494 = vst [vmem:[%s150 + $0x558] sm:$0xff] %v493
                %v495 = vld [vmem:[%s149 + $0xaa0] sm:$0xff]
                %496 = vst [vmem:[%s150 + $0x560] sm:$0xff] %v495
                %v497 = vld [vmem:[%s149 + $0xaa8] sm:$0xff]
                %498 = vst [vmem:[%s150 + $0x568] sm:$0xff] %v497
                %v499 = vld [vmem:[%s149 + $0xab0] sm:$0xff]
                %500 = vst [vmem:[%s150 + $0x570] sm:$0xff] %v499
                %v501 = vld [vmem:[%s149 + $0xab8] sm:$0xff]
                %502 = vst [vmem:[%s150 + $0x578] sm:$0xff] %v501
                %v503 = vld [vmem:[%s149 + $0xac0] sm:$0xff]
                %504 = vst [vmem:[%s150 + $0x580] sm:$0xff] %v503
                %v505 = vld [vmem:[%s149 + $0xac8] sm:$0xff]
                %506 = vst [vmem:[%s150 + $0x588] sm:$0xff] %v505
                %v507 = vld [vmem:[%s149 + $0xad0] sm:$0xff]
                %508 = vst [vmem:[%s150 + $0x590] sm:$0xff] %v507
                %v509 = vld [vmem:[%s149 + $0xad8] sm:$0xff]
                %510 = vst [vmem:[%s150 + $0x598] sm:$0xff] %v509
                %v511 = vld [vmem:[%s149 + $0xae0] sm:$0xff]
                %512 = vst [vmem:[%s150 + $0x5a0] sm:$0xff] %v511
                %v513 = vld [vmem:[%s149 + $0xae8] sm:$0xff]
                %514 = vst [vmem:[%s150 + $0x5a8] sm:$0xff] %v513
                %v515 = vld [vmem:[%s149 + $0xaf0] sm:$0xff]
                %516 = vst [vmem:[%s150 + $0x5b0] sm:$0xff] %v515
                %v517 = vld [vmem:[%s149 + $0xaf8] sm:$0xff]
                %518 = vst [vmem:[%s150 + $0x5b8] sm:$0xff] %v517
                %v519 = vld [vmem:[%s149 + $0xb00] sm:$0xff]
                %520 = vst [vmem:[%s150 + $0x5c0] sm:$0xff] %v519
                %v521 = vld [vmem:[%s149 + $0xb08] sm:$0xff]
                %522 = vst [vmem:[%s150 + $0x5c8] sm:$0xff] %v521
                %v523 = vld [vmem:[%s149 + $0xb10] sm:$0xff]
                %524 = vst [vmem:[%s150 + $0x5d0] sm:$0xff] %v523
                %v525 = vld [vmem:[%s149 + $0xb18] sm:$0xff]
                %526 = vst [vmem:[%s150 + $0x5d8] sm:$0xff] %v525
                %v527 = vld [vmem:[%s149 + $0xb20] sm:$0xff]
                %528 = vst [vmem:[%s150 + $0x5e0] sm:$0xff] %v527
                %v529 = vld [vmem:[%s149 + $0xb28] sm:$0xff]
                %530 = vst [vmem:[%s150 + $0x5e8] sm:$0xff] %v529
                %v531 = vld [vmem:[%s149 + $0xb30] sm:$0xff]
                %532 = vst [vmem:[%s150 + $0x5f0] sm:$0xff] %v531
                %v533 = vld [vmem:[%s149 + $0xb38] sm:$0xff]
                %534 = vst [vmem:[%s150 + $0x5f8] sm:$0xff] %v533
                %v535 = vld [vmem:[%s149 + $0xb40] sm:$0xff]
                %536 = vst [vmem:[%s150 + $0x600] sm:$0xff] %v535
                %v537 = vld [vmem:[%s149 + $0xb48] sm:$0xff]
                %538 = vst [vmem:[%s150 + $0x608] sm:$0xff] %v537
                %v539 = vld [vmem:[%s149 + $0xb50] sm:$0xff]
                %540 = vst [vmem:[%s150 + $0x610] sm:$0xff] %v539
                %v541 = vld [vmem:[%s149 + $0xb58] sm:$0xff]
                %542 = vst [vmem:[%s150 + $0x618] sm:$0xff] %v541
                %v543 = vld [vmem:[%s149 + $0xb60] sm:$0xff]
                %544 = vst [vmem:[%s150 + $0x620] sm:$0xff] %v543
                %v545 = vld [vmem:[%s149 + $0xb68] sm:$0xff]
                %546 = vst [vmem:[%s150 + $0x628] sm:$0xff] %v545
                %v547 = vld [vmem:[%s149 + $0xb70] sm:$0xff]
                %548 = vst [vmem:[%s150 + $0x630] sm:$0xff] %v547
                %v549 = vld [vmem:[%s149 + $0xb78] sm:$0xff]
                %550 = vst [vmem:[%s150 + $0x638] sm:$0xff] %v549
                %v551 = vld [vmem:[%s149 + $0xb80] sm:$0xff]
                %552 = vst [vmem:[%s150 + $0x640] sm:$0xff] %v551
                %v553 = vld [vmem:[%s149 + $0xb88] sm:$0xff]
                %554 = vst [vmem:[%s150 + $0x648] sm:$0xff] %v553
                %v555 = vld [vmem:[%s149 + $0xb90] sm:$0xff]
                %556 = vst [vmem:[%s150 + $0x650] sm:$0xff] %v555
                %v557 = vld [vmem:[%s149 + $0xb98] sm:$0xff]
                %558 = vst [vmem:[%s150 + $0x658] sm:$0xff] %v557
                %v559 = vld [vmem:[%s149 + $0xba0] sm:$0xff]
                %560 = vst [vmem:[%s150 + $0x660] sm:$0xff] %v559
                %v561 = vld [vmem:[%s149 + $0xba8] sm:$0xff]
                %562 = vst [vmem:[%s150 + $0x668] sm:$0xff] %v561
                %v563 = vld [vmem:[%s149 + $0xbb0] sm:$0xff]
                %564 = vst [vmem:[%s150 + $0x670] sm:$0xff] %v563
                %v565 = vld [vmem:[%s149 + $0xbb8] sm:$0xff]
                %566 = vst [vmem:[%s150 + $0x678] sm:$0xff] %v565
                %v567 = vld [vmem:[%s149 + $0xbc0] sm:$0xff]
                %568 = vst [vmem:[%s150 + $0x680] sm:$0xff] %v567
                %v569 = vld [vmem:[%s149 + $0xbc8] sm:$0xff]
                %570 = vst [vmem:[%s150 + $0x688] sm:$0xff] %v569
                %v571 = vld [vmem:[%s149 + $0xbd0] sm:$0xff]
                %572 = vst [vmem:[%s150 + $0x690] sm:$0xff] %v571
                %v573 = vld [vmem:[%s149 + $0xbd8] sm:$0xff]
                %574 = vst [vmem:[%s150 + $0x698] sm:$0xff] %v573
                %v575 = vld [vmem:[%s149 + $0xbe0] sm:$0xff]
                %576 = vst [vmem:[%s150 + $0x6a0] sm:$0xff] %v575
                %v577 = vld [vmem:[%s149 + $0xbe8] sm:$0xff]
                %578 = vst [vmem:[%s150 + $0x6a8] sm:$0xff] %v577
                %v579 = vld [vmem:[%s149 + $0xbf0] sm:$0xff]
                %580 = vst [vmem:[%s150 + $0x6b0] sm:$0xff] %v579
                %v581 = vld [vmem:[%s149 + $0xbf8] sm:$0xff]
                %582 = vst [vmem:[%s150 + $0x6b8] sm:$0xff] %v581
                %v583 = vld [vmem:[%s149 + $0xc00] sm:$0xff]
                %584 = vst [vmem:[%s150 + $0x6c0] sm:$0xff] %v583
                %v585 = vld [vmem:[%s149 + $0xc08] sm:$0xff]
                %586 = vst [vmem:[%s150 + $0x6c8] sm:$0xff] %v585
                %v587 = vld [vmem:[%s149 + $0xc10] sm:$0xff]
                %588 = vst [vmem:[%s150 + $0x6d0] sm:$0xff] %v587
                %v589 = vld [vmem:[%s149 + $0xc18] sm:$0xff]
                %590 = vst [vmem:[%s150 + $0x6d8] sm:$0xff] %v589
                %v591 = vld [vmem:[%s149 + $0xc20] sm:$0xff]
                %592 = vst [vmem:[%s150 + $0x6e0] sm:$0xff] %v591
                %v593 = vld [vmem:[%s149 + $0xc28] sm:$0xff]
                %594 = vst [vmem:[%s150 + $0x6e8] sm:$0xff] %v593
                %v595 = vld [vmem:[%s149 + $0xc30] sm:$0xff]
                %596 = vst [vmem:[%s150 + $0x6f0] sm:$0xff] %v595
                %v597 = vld [vmem:[%s149 + $0xc38] sm:$0xff]
                %598 = vst [vmem:[%s150 + $0x6f8] sm:$0xff] %v597
              $region41: #{net_forward.5} parent=35 // loop_footer
                %s148 = sadd.s32 1, %s144
              $region42: #{net_forward.5} parent=35 // loop_footer_branch
                %143 = sbr.rel target = $region38
              $region43: #{net_forward.5} parent=35 // loop_exit
                _
            $region36: #{net_forward.5} parent=31 // pred_fallthru
              _
            // Predicated region
            $region44: #{net_forward.5} parent=31 // pred_check
              _
            $region45: #{net_forward.5} parent=31 // pred_check_branch
              %600 = sbr.rel target = $region47
            $region46: #{net_forward.5} parent=31 // pred_region
              _
            $region47: #{net_forward.5} parent=31 // pred_fallthru
              _
          $region32: #{net_forward.5} parent=27 // pred_fallthru
            _
          %601 = vnop
        $region28: #{net_forward.5} parent=23 // pred_fallthru
          _
      $region24: #{net_forward.5} parent=5 // pred_fallthru
        _
      %p602 = scmp.le.s32.totalorder 1, %s9
      %p603 = scmp.lt.s32.totalorder %s9, 3
      %p604 = pnand %p602, %p603
      %p605 = pneg %p604
      // Predicated region
      $region48: #{net_forward.5} parent=5 // pred_check
        _
      $region49: #{net_forward.5} parent=5 // pred_check_branch
        %607 = sbr.rel (%p604) target = $region51
      $region50: #{net_forward.5} parent=5 // pred_region
        %s608 = ssub.s32 %s9, 1
        %s609 = sand.u32 %s22, 1
        %s610 = sand.u32 %s22, 1
        %s611 = smul.addr %s610, 1792
        %s612 = scalar_lea.vmem [#allocation2], %s611
        // Predicated region
        $region52: #{net_forward.5} parent=50 // pred_check
          %p613 = pneg %p35
        $region53: #{net_forward.5} parent=50 // pred_check_branch
          %615 = sbr.rel (%p613) target = $region55
        $region54: #{net_forward.5} parent=50 // pred_region
          _
        $region55: #{net_forward.5} parent=50 // pred_fallthru
          _
        %s616 = sand.u32 %s22, 1
        %s617 = sand.u32 %s22, 1
        %s618 = smul.addr %s617, 1792
        %s619 = scalar_lea.vmem [#allocation2], %s618
        %p620 = pneg %p35
        %p621 = pneg %p32
        %p622 = pneg %p56
        %p623 = pneg %p53
        %p624 = pneg %p77
        %p625 = pneg %p74
        %p626 = pneg %p103
        %p627 = pneg %p100
        %s628 = smul.u32 8, %s14
        %p629 = scmp.lt.s32.totalorder %s628, 15
        %s630 = scalar_select %p629, %s628, 15
        %s631 = smul.addr %s630, 8
        %s632 = scalar_lea.vmem %s3, %s631
        %s633 = smul.u32 8, %s14
        %s634 = smul.u32 8, %s14
        %p635 = scmp.lt.s32.totalorder %s634, 15
        %s636 = scalar_select %p635, %s634, 15
        %s637 = smul.addr %s636, 8
        %s638 = scalar_lea.vmem %s3, %s637
        %s639 = smul.u32 8, %s14
        %v640 = vld [vmem:[%s1] sm:$0xff]
        %v641 = vld [vmem:[%s1 + $0x8] sm:$0xff]
        %v642 = vld [vmem:[%s1 + $0x10] sm:$0xff]
        %v643 = vld [vmem:[%s1 + $0x18] sm:$0xff]
        %v644 = vld [vmem:[%s1 + $0x20] sm:$0xff]
        %v645 = vld [vmem:[%s1 + $0x28] sm:$0xff]
        %v646 = vld [vmem:[%s1 + $0x30] sm:$0xff]
        %v647 = vld [vmem:[%s1 + $0x38] sm:$0xff]
        %v648 = vld [vmem:[%s1 + $0x40] sm:$0xff]
        %v649 = vld [vmem:[%s1 + $0x48] sm:$0xff]
        %v650 = vld [vmem:[%s1 + $0x50] sm:$0xff]
        %v651 = vld [vmem:[%s1 + $0x58] sm:$0xff]
        %v652 = vld [vmem:[%s1 + $0x60] sm:$0xff]
        %v653 = vld [vmem:[%s1 + $0x68] sm:$0xff]
        %v654 = vld [vmem:[%s1 + $0x70] sm:$0xff]
        %v655 = vld [vmem:[%s1 + $0x78] sm:$0xff]
        %v656 = vld [vmem:[%s1 + $0x80] sm:$0xff]
        %v657 = vld [vmem:[%s1 + $0x88] sm:$0xff]
        %v658 = vld [vmem:[%s1 + $0x90] sm:$0xff]
        %v659 = vld [vmem:[%s1 + $0x98] sm:$0xff]
        %v660 = vld [vmem:[%s1 + $0xa0] sm:$0xff]
        %v661 = vld [vmem:[%s1 + $0xa8] sm:$0xff]
        %v662 = vld [vmem:[%s1 + $0xb0] sm:$0xff]
        %v663 = vld [vmem:[%s1 + $0xb8] sm:$0xff]
        %v664 = vld [vmem:[%s1 + $0xc0] sm:$0xff]
        %v665 = vld [vmem:[%s1 + $0xc8] sm:$0xff]
        %v666 = vld [vmem:[%s1 + $0xd0] sm:$0xff]
        %v667 = vld [vmem:[%s1 + $0xd8] sm:$0xff]
        %v668 = vld [vmem:[%s1 + $0xe0] sm:$0xff]
        %v669 = vld [vmem:[%s1 + $0xe8] sm:$0xff]
        %v670 = vld [vmem:[%s1 + $0xf0] sm:$0xff]
        %v671 = vld [vmem:[%s1 + $0xf8] sm:$0xff]
        %v672 = vld [vmem:[%s1 + $0x100] sm:$0xff]
        %v673 = vld [vmem:[%s1 + $0x108] sm:$0xff]
        %v674 = vld [vmem:[%s1 + $0x110] sm:$0xff]
        %v675 = vld [vmem:[%s1 + $0x118] sm:$0xff]
        %v676 = vld [vmem:[%s1 + $0x120] sm:$0xff]
        %v677 = vld [vmem:[%s1 + $0x128] sm:$0xff]
        %v678 = vld [vmem:[%s1 + $0x130] sm:$0xff]
        %v679 = vld [vmem:[%s1 + $0x138] sm:$0xff]
        %v680 = vld [vmem:[%s1 + $0x140] sm:$0xff]
        %v681 = vld [vmem:[%s1 + $0x148] sm:$0xff]
        %v682 = vld [vmem:[%s1 + $0x150] sm:$0xff]
        %v683 = vld [vmem:[%s1 + $0x158] sm:$0xff]
        %v684 = vld [vmem:[%s1 + $0x160] sm:$0xff]
        %v685 = vld [vmem:[%s1 + $0x168] sm:$0xff]
        %v686 = vld [vmem:[%s1 + $0x170] sm:$0xff]
        %v687 = vld [vmem:[%s1 + $0x178] sm:$0xff]
        %v688 = vld [vmem:[%s1 + $0x180] sm:$0xff]
        %v689 = vld [vmem:[%s1 + $0x188] sm:$0xff]
        %v690 = vld [vmem:[%s1 + $0x190] sm:$0xff]
        %v691 = vld [vmem:[%s1 + $0x198] sm:$0xff]
        %v692 = vld [vmem:[%s1 + $0x1a0] sm:$0xff]
        %v693 = vld [vmem:[%s1 + $0x1a8] sm:$0xff]
        %v694 = vld [vmem:[%s1 + $0x1b0] sm:$0xff]
        %v695 = vld [vmem:[%s1 + $0x1b8] sm:$0xff]
        %v696 = vld [vmem:[%s1 + $0x1c0] sm:$0xff]
        %v697 = vld [vmem:[%s1 + $0x1c8] sm:$0xff]
        %v698 = vld [vmem:[%s1 + $0x1d0] sm:$0xff]
        %v699 = vld [vmem:[%s1 + $0x1d8] sm:$0xff]
        %v700 = vld [vmem:[%s1 + $0x1e0] sm:$0xff]
        %v701 = vld [vmem:[%s1 + $0x1e8] sm:$0xff]
        %v702 = vld [vmem:[%s1 + $0x1f0] sm:$0xff]
        %v703 = vld [vmem:[%s1 + $0x1f8] sm:$0xff]
        %v704 = vld [vmem:[%s1 + $0x200] sm:$0xff]
        %v705 = vld [vmem:[%s1 + $0x208] sm:$0xff]
        %v706 = vld [vmem:[%s1 + $0x210] sm:$0xff]
        %v707 = vld [vmem:[%s1 + $0x218] sm:$0xff]
        %v708 = vld [vmem:[%s1 + $0x220] sm:$0xff]
        %v709 = vld [vmem:[%s1 + $0x228] sm:$0xff]
        %v710 = vld [vmem:[%s1 + $0x230] sm:$0xff]
        %v711 = vld [vmem:[%s1 + $0x238] sm:$0xff]
        %v712 = vld [vmem:[%s1 + $0x240] sm:$0xff]
        %v713 = vld [vmem:[%s1 + $0x248] sm:$0xff]
        %v714 = vld [vmem:[%s1 + $0x250] sm:$0xff]
        %v715 = vld [vmem:[%s1 + $0x258] sm:$0xff]
        %v716 = vld [vmem:[%s1 + $0x260] sm:$0xff]
        %v717 = vld [vmem:[%s1 + $0x268] sm:$0xff]
        %v718 = vld [vmem:[%s1 + $0x270] sm:$0xff]
        %v719 = vld [vmem:[%s1 + $0x278] sm:$0xff]
        %v720 = vld [vmem:[%s1 + $0x280] sm:$0xff]
        %v721 = vld [vmem:[%s1 + $0x288] sm:$0xff]
        %v722 = vld [vmem:[%s1 + $0x290] sm:$0xff]
        %v723 = vld [vmem:[%s1 + $0x298] sm:$0xff]
        %v724 = vld [vmem:[%s1 + $0x2a0] sm:$0xff]
        %v725 = vld [vmem:[%s1 + $0x2a8] sm:$0xff]
        %v726 = vld [vmem:[%s1 + $0x2b0] sm:$0xff]
        %v727 = vld [vmem:[%s1 + $0x2b8] sm:$0xff]
        %v728 = vld [vmem:[%s1 + $0x2c0] sm:$0xff]
        %v729 = vld [vmem:[%s1 + $0x2c8] sm:$0xff]
        %v730 = vld [vmem:[%s1 + $0x2d0] sm:$0xff]
        %v731 = vld [vmem:[%s1 + $0x2d8] sm:$0xff]
        %v732 = vld [vmem:[%s1 + $0x2e0] sm:$0xff]
        %v733 = vld [vmem:[%s1 + $0x2e8] sm:$0xff]
        %v734 = vld [vmem:[%s1 + $0x2f0] sm:$0xff]
        %v735 = vld [vmem:[%s1 + $0x2f8] sm:$0xff]
        %v736 = vld [vmem:[%s1 + $0x300] sm:$0xff]
        %v737 = vld [vmem:[%s1 + $0x308] sm:$0xff]
        %v738 = vld [vmem:[%s1 + $0x310] sm:$0xff]
        %v739 = vld [vmem:[%s1 + $0x318] sm:$0xff]
        %v740 = vld [vmem:[%s1 + $0x320] sm:$0xff]
        %v741 = vld [vmem:[%s1 + $0x328] sm:$0xff]
        %v742 = vld [vmem:[%s1 + $0x330] sm:$0xff]
        %v743 = vld [vmem:[%s1 + $0x338] sm:$0xff]
        %v744 = vld [vmem:[%s1 + $0x340] sm:$0xff]
        %v745 = vld [vmem:[%s1 + $0x348] sm:$0xff]
        %v746 = vld [vmem:[%s1 + $0x350] sm:$0xff]
        %v747 = vld [vmem:[%s1 + $0x358] sm:$0xff]
        %v748 = vld [vmem:[%s1 + $0x360] sm:$0xff]
        %v749 = vld [vmem:[%s1 + $0x368] sm:$0xff]
        %v750 = vld [vmem:[%s1 + $0x370] sm:$0xff]
        %v751 = vld [vmem:[%s1 + $0x378] sm:$0xff]
        %v752 = vld [vmem:[%s612] sm:$0xff]
        %v753 = vld [vmem:[%s612 + $0x8] sm:$0xff]
        %v754 = vld [vmem:[%s612 + $0x10] sm:$0xff]
        %v755 = vld [vmem:[%s612 + $0x18] sm:$0xff]
        %v756 = vld [vmem:[%s612 + $0x20] sm:$0xff]
        %v757 = vld [vmem:[%s612 + $0x28] sm:$0xff]
        %v758 = vld [vmem:[%s612 + $0x30] sm:$0xff]
        %v759 = vld [vmem:[%s612 + $0x38] sm:$0xff]
        %v760 = vld [vmem:[%s612 + $0x40] sm:$0xff]
        %v761 = vld [vmem:[%s612 + $0x48] sm:$0xff]
        %v762 = vld [vmem:[%s612 + $0x50] sm:$0xff]
        %v763 = vld [vmem:[%s612 + $0x58] sm:$0xff]
        %v764 = vld [vmem:[%s612 + $0x60] sm:$0xff]
        %v765 = vld [vmem:[%s612 + $0x68] sm:$0xff]
        %v766 = vld [vmem:[%s612 + $0x70] sm:$0xff]
        %v767 = vld [vmem:[%s612 + $0x78] sm:$0xff]
        %v768 = vld [vmem:[%s612 + $0x80] sm:$0xff]
        %v769 = vld [vmem:[%s612 + $0x88] sm:$0xff]
        %v770 = vld [vmem:[%s612 + $0x90] sm:$0xff]
        %v771 = vld [vmem:[%s612 + $0x98] sm:$0xff]
        %v772 = vld [vmem:[%s612 + $0xa0] sm:$0xff]
        %v773 = vld [vmem:[%s612 + $0xa8] sm:$0xff]
        %v774 = vld [vmem:[%s612 + $0xb0] sm:$0xff]
        %v775 = vld [vmem:[%s612 + $0xb8] sm:$0xff]
        %v776 = vld [vmem:[%s612 + $0xc0] sm:$0xff]
        %v777 = vld [vmem:[%s612 + $0xc8] sm:$0xff]
        %v778 = vld [vmem:[%s612 + $0xd0] sm:$0xff]
        %v779 = vld [vmem:[%s612 + $0xd8] sm:$0xff]
        %v780 = vld [vmem:[%s612 + $0xe0] sm:$0xff]
        %v781 = vld [vmem:[%s612 + $0xe8] sm:$0xff]
        %v782 = vld [vmem:[%s612 + $0xf0] sm:$0xff]
        %v783 = vld [vmem:[%s612 + $0xf8] sm:$0xff]
        %v784 = vld [vmem:[%s612 + $0x100] sm:$0xff]
        %v785 = vld [vmem:[%s612 + $0x108] sm:$0xff]
        %v786 = vld [vmem:[%s612 + $0x110] sm:$0xff]
        %v787 = vld [vmem:[%s612 + $0x118] sm:$0xff]
        %v788 = vld [vmem:[%s612 + $0x120] sm:$0xff]
        %v789 = vld [vmem:[%s612 + $0x128] sm:$0xff]
        %v790 = vld [vmem:[%s612 + $0x130] sm:$0xff]
        %v791 = vld [vmem:[%s612 + $0x138] sm:$0xff]
        %v792 = vld [vmem:[%s612 + $0x140] sm:$0xff]
        %v793 = vld [vmem:[%s612 + $0x148] sm:$0xff]
        %v794 = vld [vmem:[%s612 + $0x150] sm:$0xff]
        %v795 = vld [vmem:[%s612 + $0x158] sm:$0xff]
        %v796 = vld [vmem:[%s612 + $0x160] sm:$0xff]
        %v797 = vld [vmem:[%s612 + $0x168] sm:$0xff]
        %v798 = vld [vmem:[%s612 + $0x170] sm:$0xff]
        %v799 = vld [vmem:[%s612 + $0x178] sm:$0xff]
        %v800 = vld [vmem:[%s612 + $0x180] sm:$0xff]
        %v801 = vld [vmem:[%s612 + $0x188] sm:$0xff]
        %v802 = vld [vmem:[%s612 + $0x190] sm:$0xff]
        %v803 = vld [vmem:[%s612 + $0x198] sm:$0xff]
        %v804 = vld [vmem:[%s612 + $0x1a0] sm:$0xff]
        %v805 = vld [vmem:[%s612 + $0x1a8] sm:$0xff]
        %v806 = vld [vmem:[%s612 + $0x1b0] sm:$0xff]
        %v807 = vld [vmem:[%s612 + $0x1b8] sm:$0xff]
        %808 = vmatpush.msra.mxu0 %v655
        %809 = vmatpush.msra.mxu0 %v654
        %810 = vmatpush.msra.mxu0 %v653
        %811 = vmatpush.msra.mxu0 %v652
        %812 = vmatpush.msra.mxu0 %v651
        %813 = vmatpush.msra.mxu0 %v650
        %814 = vmatpush.msra.mxu0 %v649
        %815 = vmatpush.msra.mxu0 %v648
        %816 = vmatpush.msra.mxu0 %v647
        %817 = vmatpush.msra.mxu0 %v646
        %818 = vmatpush.msra.mxu0 %v645
        %819 = vmatpush.msra.mxu0 %v644
        %820 = vmatpush.msra.mxu0 %v643
        %821 = vmatpush.msra.mxu0 %v642
        %822 = vmatpush.msra.mxu0 %v641
        %823 = vmatpush.msra.mxu0 %v640
        %824 = vmatmul.f32.gmra.mxu0 %v752
        %v825 = vpop.f32.mrf.mxu0
        %v826 = vadd.f32 0.0, %v825
        %827 = vmatmul.f32.gmra.mxu0 %v759
        %v828 = vpop.f32.mrf.mxu0
        %v829 = vadd.f32 0.0, %v828
        %830 = vmatmul.f32.gmra.mxu0 %v766
        %v831 = vpop.f32.mrf.mxu0
        %v832 = vadd.f32 0.0, %v831
        %833 = vmatmul.f32.gmra.mxu0 %v773
        %v834 = vpop.f32.mrf.mxu0
        %v835 = vadd.f32 0.0, %v834
        %836 = vmatmul.f32.gmra.mxu0 %v780
        %v837 = vpop.f32.mrf.mxu0
        %v838 = vadd.f32 0.0, %v837
        %839 = vmatmul.f32.gmra.mxu0 %v787
        %v840 = vpop.f32.mrf.mxu0
        %v841 = vadd.f32 0.0, %v840
        %842 = vmatmul.f32.gmra.mxu0 %v794
        %v843 = vpop.f32.mrf.mxu0
        %v844 = vadd.f32 0.0, %v843
        %845 = vmatmul.f32.gmra.mxu0 %v801
        %v846 = vpop.f32.mrf.mxu0
        %v847 = vadd.f32 0.0, %v846
        %848 = vdwg.mxu0
        %849 = vmatpush.msra.mxu0 %v671
        %850 = vmatpush.msra.mxu0 %v670
        %851 = vmatpush.msra.mxu0 %v669
        %852 = vmatpush.msra.mxu0 %v668
        %853 = vmatpush.msra.mxu0 %v667
        %854 = vmatpush.msra.mxu0 %v666
        %855 = vmatpush.msra.mxu0 %v665
        %856 = vmatpush.msra.mxu0 %v664
        %857 = vmatpush.msra.mxu0 %v663
        %858 = vmatpush.msra.mxu0 %v662
        %859 = vmatpush.msra.mxu0 %v661
        %860 = vmatpush.msra.mxu0 %v660
        %861 = vmatpush.msra.mxu0 %v659
        %862 = vmatpush.msra.mxu0 %v658
        %863 = vmatpush.msra.mxu0 %v657
        %864 = vmatpush.msra.mxu0 %v656
        %865 = vmatmul.f32.gmra.mxu0 %v753
        %v866 = vpop.f32.mrf.mxu0
        %v867 = vadd.f32 %v826, %v866
        %868 = vmatmul.f32.gmra.mxu0 %v760
        %v869 = vpop.f32.mrf.mxu0
        %v870 = vadd.f32 %v829, %v869
        %871 = vmatmul.f32.gmra.mxu0 %v767
        %v872 = vpop.f32.mrf.mxu0
        %v873 = vadd.f32 %v832, %v872
        %874 = vmatmul.f32.gmra.mxu0 %v774
        %v875 = vpop.f32.mrf.mxu0
        %v876 = vadd.f32 %v835, %v875
        %877 = vmatmul.f32.gmra.mxu0 %v781
        %v878 = vpop.f32.mrf.mxu0
        %v879 = vadd.f32 %v838, %v878
        %880 = vmatmul.f32.gmra.mxu0 %v788
        %v881 = vpop.f32.mrf.mxu0
        %v882 = vadd.f32 %v841, %v881
        %883 = vmatmul.f32.gmra.mxu0 %v795
        %v884 = vpop.f32.mrf.mxu0
        %v885 = vadd.f32 %v844, %v884
        %886 = vmatmul.f32.gmra.mxu0 %v802
        %v887 = vpop.f32.mrf.mxu0
        %v888 = vadd.f32 %v847, %v887
        %889 = vdwg.mxu0
        %890 = vmatpush.msra.mxu0 %v687
        %891 = vmatpush.msra.mxu0 %v686
        %892 = vmatpush.msra.mxu0 %v685
        %893 = vmatpush.msra.mxu0 %v684
        %894 = vmatpush.msra.mxu0 %v683
        %895 = vmatpush.msra.mxu0 %v682
        %896 = vmatpush.msra.mxu0 %v681
        %897 = vmatpush.msra.mxu0 %v680
        %898 = vmatpush.msra.mxu0 %v679
        %899 = vmatpush.msra.mxu0 %v678
        %900 = vmatpush.msra.mxu0 %v677
        %901 = vmatpush.msra.mxu0 %v676
        %902 = vmatpush.msra.mxu0 %v675
        %903 = vmatpush.msra.mxu0 %v674
        %904 = vmatpush.msra.mxu0 %v673
        %905 = vmatpush.msra.mxu0 %v672
        %906 = vmatmul.f32.gmra.mxu0 %v754
        %v907 = vpop.f32.mrf.mxu0
        %v908 = vadd.f32 %v867, %v907
        %909 = vmatmul.f32.gmra.mxu0 %v761
        %v910 = vpop.f32.mrf.mxu0
        %v911 = vadd.f32 %v870, %v910
        %912 = vmatmul.f32.gmra.mxu0 %v768
        %v913 = vpop.f32.mrf.mxu0
        %v914 = vadd.f32 %v873, %v913
        %915 = vmatmul.f32.gmra.mxu0 %v775
        %v916 = vpop.f32.mrf.mxu0
        %v917 = vadd.f32 %v876, %v916
        %918 = vmatmul.f32.gmra.mxu0 %v782
        %v919 = vpop.f32.mrf.mxu0
        %v920 = vadd.f32 %v879, %v919
        %921 = vmatmul.f32.gmra.mxu0 %v789
        %v922 = vpop.f32.mrf.mxu0
        %v923 = vadd.f32 %v882, %v922
        %924 = vmatmul.f32.gmra.mxu0 %v796
        %v925 = vpop.f32.mrf.mxu0
        %v926 = vadd.f32 %v885, %v925
        %927 = vmatmul.f32.gmra.mxu0 %v803
        %v928 = vpop.f32.mrf.mxu0
        %v929 = vadd.f32 %v888, %v928
        %930 = vdwg.mxu0
        %931 = vmatpush.msra.mxu0 %v703
        %932 = vmatpush.msra.mxu0 %v702
        %933 = vmatpush.msra.mxu0 %v701
        %934 = vmatpush.msra.mxu0 %v700
        %935 = vmatpush.msra.mxu0 %v699
        %936 = vmatpush.msra.mxu0 %v698
        %937 = vmatpush.msra.mxu0 %v697
        %938 = vmatpush.msra.mxu0 %v696
        %939 = vmatpush.msra.mxu0 %v695
        %940 = vmatpush.msra.mxu0 %v694
        %941 = vmatpush.msra.mxu0 %v693
        %942 = vmatpush.msra.mxu0 %v692
        %943 = vmatpush.msra.mxu0 %v691
        %944 = vmatpush.msra.mxu0 %v690
        %945 = vmatpush.msra.mxu0 %v689
        %946 = vmatpush.msra.mxu0 %v688
        %947 = vmatmul.f32.gmra.mxu0 %v755
        %v948 = vpop.f32.mrf.mxu0
        %v949 = vadd.f32 %v908, %v948
        %950 = vmatmul.f32.gmra.mxu0 %v762
        %v951 = vpop.f32.mrf.mxu0
        %v952 = vadd.f32 %v911, %v951
        %953 = vmatmul.f32.gmra.mxu0 %v769
        %v954 = vpop.f32.mrf.mxu0
        %v955 = vadd.f32 %v914, %v954
        %956 = vmatmul.f32.gmra.mxu0 %v776
        %v957 = vpop.f32.mrf.mxu0
        %v958 = vadd.f32 %v917, %v957
        %959 = vmatmul.f32.gmra.mxu0 %v783
        %v960 = vpop.f32.mrf.mxu0
        %v961 = vadd.f32 %v920, %v960
        %962 = vmatmul.f32.gmra.mxu0 %v790
        %v963 = vpop.f32.mrf.mxu0
        %v964 = vadd.f32 %v923, %v963
        %965 = vmatmul.f32.gmra.mxu0 %v797
        %v966 = vpop.f32.mrf.mxu0
        %v967 = vadd.f32 %v926, %v966
        %968 = vmatmul.f32.gmra.mxu0 %v804
        %v969 = vpop.f32.mrf.mxu0
        %v970 = vadd.f32 %v929, %v969
        %971 = vdwg.mxu0
        %972 = vmatpush.msra.mxu0 %v719
        %973 = vmatpush.msra.mxu0 %v718
        %974 = vmatpush.msra.mxu0 %v717
        %975 = vmatpush.msra.mxu0 %v716
        %976 = vmatpush.msra.mxu0 %v715
        %977 = vmatpush.msra.mxu0 %v714
        %978 = vmatpush.msra.mxu0 %v713
        %979 = vmatpush.msra.mxu0 %v712
        %980 = vmatpush.msra.mxu0 %v711
        %981 = vmatpush.msra.mxu0 %v710
        %982 = vmatpush.msra.mxu0 %v709
        %983 = vmatpush.msra.mxu0 %v708
        %984 = vmatpush.msra.mxu0 %v707
        %985 = vmatpush.msra.mxu0 %v706
        %986 = vmatpush.msra.mxu0 %v705
        %987 = vmatpush.msra.mxu0 %v704
        %988 = vmatmul.f32.gmra.mxu0 %v756
        %v989 = vpop.f32.mrf.mxu0
        %v990 = vadd.f32 %v949, %v989
        %991 = vmatmul.f32.gmra.mxu0 %v763
        %v992 = vpop.f32.mrf.mxu0
        %v993 = vadd.f32 %v952, %v992
        %994 = vmatmul.f32.gmra.mxu0 %v770
        %v995 = vpop.f32.mrf.mxu0
        %v996 = vadd.f32 %v955, %v995
        %997 = vmatmul.f32.gmra.mxu0 %v777
        %v998 = vpop.f32.mrf.mxu0
        %v999 = vadd.f32 %v958, %v998
        %1000 = vmatmul.f32.gmra.mxu0 %v784
        %v1001 = vpop.f32.mrf.mxu0
        %v1002 = vadd.f32 %v961, %v1001
        %1003 = vmatmul.f32.gmra.mxu0 %v791
        %v1004 = vpop.f32.mrf.mxu0
        %v1005 = vadd.f32 %v964, %v1004
        %1006 = vmatmul.f32.gmra.mxu0 %v798
        %v1007 = vpop.f32.mrf.mxu0
        %v1008 = vadd.f32 %v967, %v1007
        %1009 = vmatmul.f32.gmra.mxu0 %v805
        %v1010 = vpop.f32.mrf.mxu0
        %v1011 = vadd.f32 %v970, %v1010
        %1012 = vdwg.mxu0
        %1013 = vmatpush.msra.mxu0 %v735
        %1014 = vmatpush.msra.mxu0 %v734
        %1015 = vmatpush.msra.mxu0 %v733
        %1016 = vmatpush.msra.mxu0 %v732
        %1017 = vmatpush.msra.mxu0 %v731
        %1018 = vmatpush.msra.mxu0 %v730
        %1019 = vmatpush.msra.mxu0 %v729
        %1020 = vmatpush.msra.mxu0 %v728
        %1021 = vmatpush.msra.mxu0 %v727
        %1022 = vmatpush.msra.mxu0 %v726
        %1023 = vmatpush.msra.mxu0 %v725
        %1024 = vmatpush.msra.mxu0 %v724
        %1025 = vmatpush.msra.mxu0 %v723
        %1026 = vmatpush.msra.mxu0 %v722
        %1027 = vmatpush.msra.mxu0 %v721
        %1028 = vmatpush.msra.mxu0 %v720
        %1029 = vmatmul.f32.gmra.mxu0 %v757
        %v1030 = vpop.f32.mrf.mxu0
        %v1031 = vadd.f32 %v990, %v1030
        %1032 = vmatmul.f32.gmra.mxu0 %v764
        %v1033 = vpop.f32.mrf.mxu0
        %v1034 = vadd.f32 %v993, %v1033
        %1035 = vmatmul.f32.gmra.mxu0 %v771
        %v1036 = vpop.f32.mrf.mxu0
        %v1037 = vadd.f32 %v996, %v1036
        %1038 = vmatmul.f32.gmra.mxu0 %v778
        %v1039 = vpop.f32.mrf.mxu0
        %v1040 = vadd.f32 %v999, %v1039
        %1041 = vmatmul.f32.gmra.mxu0 %v785
        %v1042 = vpop.f32.mrf.mxu0
        %v1043 = vadd.f32 %v1002, %v1042
        %1044 = vmatmul.f32.gmra.mxu0 %v792
        %v1045 = vpop.f32.mrf.mxu0
        %v1046 = vadd.f32 %v1005, %v1045
        %1047 = vmatmul.f32.gmra.mxu0 %v799
        %v1048 = vpop.f32.mrf.mxu0
        %v1049 = vadd.f32 %v1008, %v1048
        %1050 = vmatmul.f32.gmra.mxu0 %v806
        %v1051 = vpop.f32.mrf.mxu0
        %v1052 = vadd.f32 %v1011, %v1051
        %1053 = vdwg.mxu0
        %1054 = vmatpush.msra.mxu0 %v751
        %1055 = vmatpush.msra.mxu0 %v750
        %1056 = vmatpush.msra.mxu0 %v749
        %1057 = vmatpush.msra.mxu0 %v748
        %1058 = vmatpush.msra.mxu0 %v747
        %1059 = vmatpush.msra.mxu0 %v746
        %1060 = vmatpush.msra.mxu0 %v745
        %1061 = vmatpush.msra.mxu0 %v744
        %1062 = vmatpush.msra.mxu0 %v743
        %1063 = vmatpush.msra.mxu0 %v742
        %1064 = vmatpush.msra.mxu0 %v741
        %1065 = vmatpush.msra.mxu0 %v740
        %1066 = vmatpush.msra.mxu0 %v739
        %1067 = vmatpush.msra.mxu0 %v738
        %1068 = vmatpush.msra.mxu0 %v737
        %1069 = vmatpush.msra.mxu0 %v736
        %1070 = vmatmul.f32.gmra.mxu0 %v758
        %v1071 = vpop.f32.mrf.mxu0
        %v1072 = vadd.f32 %v1031, %v1071
        %1073 = vmatmul.f32.gmra.mxu0 %v765
        %v1074 = vpop.f32.mrf.mxu0
        %v1075 = vadd.f32 %v1034, %v1074
        %1076 = vmatmul.f32.gmra.mxu0 %v772
        %v1077 = vpop.f32.mrf.mxu0
        %v1078 = vadd.f32 %v1037, %v1077
        %1079 = vmatmul.f32.gmra.mxu0 %v779
        %v1080 = vpop.f32.mrf.mxu0
        %v1081 = vadd.f32 %v1040, %v1080
        %1082 = vmatmul.f32.gmra.mxu0 %v786
        %v1083 = vpop.f32.mrf.mxu0
        %v1084 = vadd.f32 %v1043, %v1083
        %1085 = vmatmul.f32.gmra.mxu0 %v793
        %v1086 = vpop.f32.mrf.mxu0
        %v1087 = vadd.f32 %v1046, %v1086
        %1088 = vmatmul.f32.gmra.mxu0 %v800
        %v1089 = vpop.f32.mrf.mxu0
        %v1090 = vadd.f32 %v1049, %v1089
        %1091 = vmatmul.f32.gmra.mxu0 %v807
        %v1092 = vpop.f32.mrf.mxu0
        %v1093 = vadd.f32 %v1052, %v1092
        %1094 = vdwg.mxu0
        %s1095 = scalar_lea.vmem %s612, 448 [#allocation2]
        %v1096 = vld [vmem:[%s1095] sm:$0xff]
        %v1097 = vld [vmem:[%s1095 + $0x8] sm:$0xff]
        %v1098 = vld [vmem:[%s1095 + $0x10] sm:$0xff]
        %v1099 = vld [vmem:[%s1095 + $0x18] sm:$0xff]
        %v1100 = vld [vmem:[%s1095 + $0x20] sm:$0xff]
        %v1101 = vld [vmem:[%s1095 + $0x28] sm:$0xff]
        %v1102 = vld [vmem:[%s1095 + $0x30] sm:$0xff]
        %v1103 = vld [vmem:[%s1095 + $0x38] sm:$0xff]
        %v1104 = vld [vmem:[%s1095 + $0x40] sm:$0xff]
        %v1105 = vld [vmem:[%s1095 + $0x48] sm:$0xff]
        %v1106 = vld [vmem:[%s1095 + $0x50] sm:$0xff]
        %v1107 = vld [vmem:[%s1095 + $0x58] sm:$0xff]
        %v1108 = vld [vmem:[%s1095 + $0x60] sm:$0xff]
        %v1109 = vld [vmem:[%s1095 + $0x68] sm:$0xff]
        %v1110 = vld [vmem:[%s1095 + $0x70] sm:$0xff]
        %v1111 = vld [vmem:[%s1095 + $0x78] sm:$0xff]
        %v1112 = vld [vmem:[%s1095 + $0x80] sm:$0xff]
        %v1113 = vld [vmem:[%s1095 + $0x88] sm:$0xff]
        %v1114 = vld [vmem:[%s1095 + $0x90] sm:$0xff]
        %v1115 = vld [vmem:[%s1095 + $0x98] sm:$0xff]
        %v1116 = vld [vmem:[%s1095 + $0xa0] sm:$0xff]
        %v1117 = vld [vmem:[%s1095 + $0xa8] sm:$0xff]
        %v1118 = vld [vmem:[%s1095 + $0xb0] sm:$0xff]
        %v1119 = vld [vmem:[%s1095 + $0xb8] sm:$0xff]
        %v1120 = vld [vmem:[%s1095 + $0xc0] sm:$0xff]
        %v1121 = vld [vmem:[%s1095 + $0xc8] sm:$0xff]
        %v1122 = vld [vmem:[%s1095 + $0xd0] sm:$0xff]
        %v1123 = vld [vmem:[%s1095 + $0xd8] sm:$0xff]
        %v1124 = vld [vmem:[%s1095 + $0xe0] sm:$0xff]
        %v1125 = vld [vmem:[%s1095 + $0xe8] sm:$0xff]
        %v1126 = vld [vmem:[%s1095 + $0xf0] sm:$0xff]
        %v1127 = vld [vmem:[%s1095 + $0xf8] sm:$0xff]
        %v1128 = vld [vmem:[%s1095 + $0x100] sm:$0xff]
        %v1129 = vld [vmem:[%s1095 + $0x108] sm:$0xff]
        %v1130 = vld [vmem:[%s1095 + $0x110] sm:$0xff]
        %v1131 = vld [vmem:[%s1095 + $0x118] sm:$0xff]
        %v1132 = vld [vmem:[%s1095 + $0x120] sm:$0xff]
        %v1133 = vld [vmem:[%s1095 + $0x128] sm:$0xff]
        %v1134 = vld [vmem:[%s1095 + $0x130] sm:$0xff]
        %v1135 = vld [vmem:[%s1095 + $0x138] sm:$0xff]
        %v1136 = vld [vmem:[%s1095 + $0x140] sm:$0xff]
        %v1137 = vld [vmem:[%s1095 + $0x148] sm:$0xff]
        %v1138 = vld [vmem:[%s1095 + $0x150] sm:$0xff]
        %v1139 = vld [vmem:[%s1095 + $0x158] sm:$0xff]
        %v1140 = vld [vmem:[%s1095 + $0x160] sm:$0xff]
        %v1141 = vld [vmem:[%s1095 + $0x168] sm:$0xff]
        %v1142 = vld [vmem:[%s1095 + $0x170] sm:$0xff]
        %v1143 = vld [vmem:[%s1095 + $0x178] sm:$0xff]
        %v1144 = vld [vmem:[%s1095 + $0x180] sm:$0xff]
        %v1145 = vld [vmem:[%s1095 + $0x188] sm:$0xff]
        %v1146 = vld [vmem:[%s1095 + $0x190] sm:$0xff]
        %v1147 = vld [vmem:[%s1095 + $0x198] sm:$0xff]
        %v1148 = vld [vmem:[%s1095 + $0x1a0] sm:$0xff]
        %v1149 = vld [vmem:[%s1095 + $0x1a8] sm:$0xff]
        %v1150 = vld [vmem:[%s1095 + $0x1b0] sm:$0xff]
        %v1151 = vld [vmem:[%s1095 + $0x1b8] sm:$0xff]
        %1152 = vmatpush.msra.mxu0 %v655
        %1153 = vmatpush.msra.mxu0 %v654
        %1154 = vmatpush.msra.mxu0 %v653
        %1155 = vmatpush.msra.mxu0 %v652
        %1156 = vmatpush.msra.mxu0 %v651
        %1157 = vmatpush.msra.mxu0 %v650
        %1158 = vmatpush.msra.mxu0 %v649
        %1159 = vmatpush.msra.mxu0 %v648
        %1160 = vmatpush.msra.mxu0 %v647
        %1161 = vmatpush.msra.mxu0 %v646
        %1162 = vmatpush.msra.mxu0 %v645
        %1163 = vmatpush.msra.mxu0 %v644
        %1164 = vmatpush.msra.mxu0 %v643
        %1165 = vmatpush.msra.mxu0 %v642
        %1166 = vmatpush.msra.mxu0 %v641
        %1167 = vmatpush.msra.mxu0 %v640
        %1168 = vmatmul.f32.gmra.mxu0 %v1096
        %v1169 = vpop.f32.mrf.mxu0
        %v1170 = vadd.f32 0.0, %v1169
        %1171 = vmatmul.f32.gmra.mxu0 %v1103
        %v1172 = vpop.f32.mrf.mxu0
        %v1173 = vadd.f32 0.0, %v1172
        %1174 = vmatmul.f32.gmra.mxu0 %v1110
        %v1175 = vpop.f32.mrf.mxu0
        %v1176 = vadd.f32 0.0, %v1175
        %1177 = vmatmul.f32.gmra.mxu0 %v1117
        %v1178 = vpop.f32.mrf.mxu0
        %v1179 = vadd.f32 0.0, %v1178
        %1180 = vmatmul.f32.gmra.mxu0 %v1124
        %v1181 = vpop.f32.mrf.mxu0
        %v1182 = vadd.f32 0.0, %v1181
        %1183 = vmatmul.f32.gmra.mxu0 %v1131
        %v1184 = vpop.f32.mrf.mxu0
        %v1185 = vadd.f32 0.0, %v1184
        %1186 = vmatmul.f32.gmra.mxu0 %v1138
        %v1187 = vpop.f32.mrf.mxu0
        %v1188 = vadd.f32 0.0, %v1187
        %1189 = vmatmul.f32.gmra.mxu0 %v1145
        %v1190 = vpop.f32.mrf.mxu0
        %v1191 = vadd.f32 0.0, %v1190
        %1192 = vdwg.mxu0
        %1193 = vmatpush.msra.mxu0 %v671
        %1194 = vmatpush.msra.mxu0 %v670
        %1195 = vmatpush.msra.mxu0 %v669
        %1196 = vmatpush.msra.mxu0 %v668
        %1197 = vmatpush.msra.mxu0 %v667
        %1198 = vmatpush.msra.mxu0 %v666
        %1199 = vmatpush.msra.mxu0 %v665
        %1200 = vmatpush.msra.mxu0 %v664
        %1201 = vmatpush.msra.mxu0 %v663
        %1202 = vmatpush.msra.mxu0 %v662
        %1203 = vmatpush.msra.mxu0 %v661
        %1204 = vmatpush.msra.mxu0 %v660
        %1205 = vmatpush.msra.mxu0 %v659
        %1206 = vmatpush.msra.mxu0 %v658
        %1207 = vmatpush.msra.mxu0 %v657
        %1208 = vmatpush.msra.mxu0 %v656
        %1209 = vmatmul.f32.gmra.mxu0 %v1097
        %v1210 = vpop.f32.mrf.mxu0
        %v1211 = vadd.f32 %v1170, %v1210
        %1212 = vmatmul.f32.gmra.mxu0 %v1104
        %v1213 = vpop.f32.mrf.mxu0
        %v1214 = vadd.f32 %v1173, %v1213
        %1215 = vmatmul.f32.gmra.mxu0 %v1111
        %v1216 = vpop.f32.mrf.mxu0
        %v1217 = vadd.f32 %v1176, %v1216
        %1218 = vmatmul.f32.gmra.mxu0 %v1118
        %v1219 = vpop.f32.mrf.mxu0
        %v1220 = vadd.f32 %v1179, %v1219
        %1221 = vmatmul.f32.gmra.mxu0 %v1125
        %v1222 = vpop.f32.mrf.mxu0
        %v1223 = vadd.f32 %v1182, %v1222
        %1224 = vmatmul.f32.gmra.mxu0 %v1132
        %v1225 = vpop.f32.mrf.mxu0
        %v1226 = vadd.f32 %v1185, %v1225
        %1227 = vmatmul.f32.gmra.mxu0 %v1139
        %v1228 = vpop.f32.mrf.mxu0
        %v1229 = vadd.f32 %v1188, %v1228
        %1230 = vmatmul.f32.gmra.mxu0 %v1146
        %v1231 = vpop.f32.mrf.mxu0
        %v1232 = vadd.f32 %v1191, %v1231
        %1233 = vdwg.mxu0
        %1234 = vmatpush.msra.mxu0 %v687
        %1235 = vmatpush.msra.mxu0 %v686
        %1236 = vmatpush.msra.mxu0 %v685
        %1237 = vmatpush.msra.mxu0 %v684
        %1238 = vmatpush.msra.mxu0 %v683
        %1239 = vmatpush.msra.mxu0 %v682
        %1240 = vmatpush.msra.mxu0 %v681
        %1241 = vmatpush.msra.mxu0 %v680
        %1242 = vmatpush.msra.mxu0 %v679
        %1243 = vmatpush.msra.mxu0 %v678
        %1244 = vmatpush.msra.mxu0 %v677
        %1245 = vmatpush.msra.mxu0 %v676
        %1246 = vmatpush.msra.mxu0 %v675
        %1247 = vmatpush.msra.mxu0 %v674
        %1248 = vmatpush.msra.mxu0 %v673
        %1249 = vmatpush.msra.mxu0 %v672
        %1250 = vmatmul.f32.gmra.mxu0 %v1098
        %v1251 = vpop.f32.mrf.mxu0
        %v1252 = vadd.f32 %v1211, %v1251
        %1253 = vmatmul.f32.gmra.mxu0 %v1105
        %v1254 = vpop.f32.mrf.mxu0
        %v1255 = vadd.f32 %v1214, %v1254
        %1256 = vmatmul.f32.gmra.mxu0 %v1112
        %v1257 = vpop.f32.mrf.mxu0
        %v1258 = vadd.f32 %v1217, %v1257
        %1259 = vmatmul.f32.gmra.mxu0 %v1119
        %v1260 = vpop.f32.mrf.mxu0
        %v1261 = vadd.f32 %v1220, %v1260
        %1262 = vmatmul.f32.gmra.mxu0 %v1126
        %v1263 = vpop.f32.mrf.mxu0
        %v1264 = vadd.f32 %v1223, %v1263
        %1265 = vmatmul.f32.gmra.mxu0 %v1133
        %v1266 = vpop.f32.mrf.mxu0
        %v1267 = vadd.f32 %v1226, %v1266
        %1268 = vmatmul.f32.gmra.mxu0 %v1140
        %v1269 = vpop.f32.mrf.mxu0
        %v1270 = vadd.f32 %v1229, %v1269
        %1271 = vmatmul.f32.gmra.mxu0 %v1147
        %v1272 = vpop.f32.mrf.mxu0
        %v1273 = vadd.f32 %v1232, %v1272
        %1274 = vdwg.mxu0
        %1275 = vmatpush.msra.mxu0 %v703
        %1276 = vmatpush.msra.mxu0 %v702
        %1277 = vmatpush.msra.mxu0 %v701
        %1278 = vmatpush.msra.mxu0 %v700
        %1279 = vmatpush.msra.mxu0 %v699
        %1280 = vmatpush.msra.mxu0 %v698
        %1281 = vmatpush.msra.mxu0 %v697
        %1282 = vmatpush.msra.mxu0 %v696
        %1283 = vmatpush.msra.mxu0 %v695
        %1284 = vmatpush.msra.mxu0 %v694
        %1285 = vmatpush.msra.mxu0 %v693
        %1286 = vmatpush.msra.mxu0 %v692
        %1287 = vmatpush.msra.mxu0 %v691
        %1288 = vmatpush.msra.mxu0 %v690
        %1289 = vmatpush.msra.mxu0 %v689
        %1290 = vmatpush.msra.mxu0 %v688
        %1291 = vmatmul.f32.gmra.mxu0 %v1099
        %v1292 = vpop.f32.mrf.mxu0
        %v1293 = vadd.f32 %v1252, %v1292
        %1294 = vmatmul.f32.gmra.mxu0 %v1106
        %v1295 = vpop.f32.mrf.mxu0
        %v1296 = vadd.f32 %v1255, %v1295
        %1297 = vmatmul.f32.gmra.mxu0 %v1113
        %v1298 = vpop.f32.mrf.mxu0
        %v1299 = vadd.f32 %v1258, %v1298
        %1300 = vmatmul.f32.gmra.mxu0 %v1120
        %v1301 = vpop.f32.mrf.mxu0
        %v1302 = vadd.f32 %v1261, %v1301
        %1303 = vmatmul.f32.gmra.mxu0 %v1127
        %v1304 = vpop.f32.mrf.mxu0
        %v1305 = vadd.f32 %v1264, %v1304
        %1306 = vmatmul.f32.gmra.mxu0 %v1134
        %v1307 = vpop.f32.mrf.mxu0
        %v1308 = vadd.f32 %v1267, %v1307
        %1309 = vmatmul.f32.gmra.mxu0 %v1141
        %v1310 = vpop.f32.mrf.mxu0
        %v1311 = vadd.f32 %v1270, %v1310
        %1312 = vmatmul.f32.gmra.mxu0 %v1148
        %v1313 = vpop.f32.mrf.mxu0
        %v1314 = vadd.f32 %v1273, %v1313
        %1315 = vdwg.mxu0
        %1316 = vmatpush.msra.mxu0 %v719
        %1317 = vmatpush.msra.mxu0 %v718
        %1318 = vmatpush.msra.mxu0 %v717
        %1319 = vmatpush.msra.mxu0 %v716
        %1320 = vmatpush.msra.mxu0 %v715
        %1321 = vmatpush.msra.mxu0 %v714
        %1322 = vmatpush.msra.mxu0 %v713
        %1323 = vmatpush.msra.mxu0 %v712
        %1324 = vmatpush.msra.mxu0 %v711
        %1325 = vmatpush.msra.mxu0 %v710
        %1326 = vmatpush.msra.mxu0 %v709
        %1327 = vmatpush.msra.mxu0 %v708
        %1328 = vmatpush.msra.mxu0 %v707
        %1329 = vmatpush.msra.mxu0 %v706
        %1330 = vmatpush.msra.mxu0 %v705
        %1331 = vmatpush.msra.mxu0 %v704
        %1332 = vmatmul.f32.gmra.mxu0 %v1100
        %v1333 = vpop.f32.mrf.mxu0
        %v1334 = vadd.f32 %v1293, %v1333
        %1335 = vmatmul.f32.gmra.mxu0 %v1107
        %v1336 = vpop.f32.mrf.mxu0
        %v1337 = vadd.f32 %v1296, %v1336
        %1338 = vmatmul.f32.gmra.mxu0 %v1114
        %v1339 = vpop.f32.mrf.mxu0
        %v1340 = vadd.f32 %v1299, %v1339
        %1341 = vmatmul.f32.gmra.mxu0 %v1121
        %v1342 = vpop.f32.mrf.mxu0
        %v1343 = vadd.f32 %v1302, %v1342
        %1344 = vmatmul.f32.gmra.mxu0 %v1128
        %v1345 = vpop.f32.mrf.mxu0
        %v1346 = vadd.f32 %v1305, %v1345
        %1347 = vmatmul.f32.gmra.mxu0 %v1135
        %v1348 = vpop.f32.mrf.mxu0
        %v1349 = vadd.f32 %v1308, %v1348
        %1350 = vmatmul.f32.gmra.mxu0 %v1142
        %v1351 = vpop.f32.mrf.mxu0
        %v1352 = vadd.f32 %v1311, %v1351
        %1353 = vmatmul.f32.gmra.mxu0 %v1149
        %v1354 = vpop.f32.mrf.mxu0
        %v1355 = vadd.f32 %v1314, %v1354
        %1356 = vdwg.mxu0
        %1357 = vmatpush.msra.mxu0 %v735
        %1358 = vmatpush.msra.mxu0 %v734
        %1359 = vmatpush.msra.mxu0 %v733
        %1360 = vmatpush.msra.mxu0 %v732
        %1361 = vmatpush.msra.mxu0 %v731
        %1362 = vmatpush.msra.mxu0 %v730
        %1363 = vmatpush.msra.mxu0 %v729
        %1364 = vmatpush.msra.mxu0 %v728
        %1365 = vmatpush.msra.mxu0 %v727
        %1366 = vmatpush.msra.mxu0 %v726
        %1367 = vmatpush.msra.mxu0 %v725
        %1368 = vmatpush.msra.mxu0 %v724
        %1369 = vmatpush.msra.mxu0 %v723
        %1370 = vmatpush.msra.mxu0 %v722
        %1371 = vmatpush.msra.mxu0 %v721
        %1372 = vmatpush.msra.mxu0 %v720
        %1373 = vmatmul.f32.gmra.mxu0 %v1101
        %v1374 = vpop.f32.mrf.mxu0
        %v1375 = vadd.f32 %v1334, %v1374
        %1376 = vmatmul.f32.gmra.mxu0 %v1108
        %v1377 = vpop.f32.mrf.mxu0
        %v1378 = vadd.f32 %v1337, %v1377
        %1379 = vmatmul.f32.gmra.mxu0 %v1115
        %v1380 = vpop.f32.mrf.mxu0
        %v1381 = vadd.f32 %v1340, %v1380
        %1382 = vmatmul.f32.gmra.mxu0 %v1122
        %v1383 = vpop.f32.mrf.mxu0
        %v1384 = vadd.f32 %v1343, %v1383
        %1385 = vmatmul.f32.gmra.mxu0 %v1129
        %v1386 = vpop.f32.mrf.mxu0
        %v1387 = vadd.f32 %v1346, %v1386
        %1388 = vmatmul.f32.gmra.mxu0 %v1136
        %v1389 = vpop.f32.mrf.mxu0
        %v1390 = vadd.f32 %v1349, %v1389
        %1391 = vmatmul.f32.gmra.mxu0 %v1143
        %v1392 = vpop.f32.mrf.mxu0
        %v1393 = vadd.f32 %v1352, %v1392
        %1394 = vmatmul.f32.gmra.mxu0 %v1150
        %v1395 = vpop.f32.mrf.mxu0
        %v1396 = vadd.f32 %v1355, %v1395
        %1397 = vdwg.mxu0
        %1398 = vmatpush.msra.mxu0 %v751
        %1399 = vmatpush.msra.mxu0 %v750
        %1400 = vmatpush.msra.mxu0 %v749
        %1401 = vmatpush.msra.mxu0 %v748
        %1402 = vmatpush.msra.mxu0 %v747
        %1403 = vmatpush.msra.mxu0 %v746
        %1404 = vmatpush.msra.mxu0 %v745
        %1405 = vmatpush.msra.mxu0 %v744
        %1406 = vmatpush.msra.mxu0 %v743
        %1407 = vmatpush.msra.mxu0 %v742
        %1408 = vmatpush.msra.mxu0 %v741
        %1409 = vmatpush.msra.mxu0 %v740
        %1410 = vmatpush.msra.mxu0 %v739
        %1411 = vmatpush.msra.mxu0 %v738
        %1412 = vmatpush.msra.mxu0 %v737
        %1413 = vmatpush.msra.mxu0 %v736
        %1414 = vmatmul.f32.gmra.mxu0 %v1102
        %v1415 = vpop.f32.mrf.mxu0
        %v1416 = vadd.f32 %v1375, %v1415
        %1417 = vmatmul.f32.gmra.mxu0 %v1109
        %v1418 = vpop.f32.mrf.mxu0
        %v1419 = vadd.f32 %v1378, %v1418
        %1420 = vmatmul.f32.gmra.mxu0 %v1116
        %v1421 = vpop.f32.mrf.mxu0
        %v1422 = vadd.f32 %v1381, %v1421
        %1423 = vmatmul.f32.gmra.mxu0 %v1123
        %v1424 = vpop.f32.mrf.mxu0
        %v1425 = vadd.f32 %v1384, %v1424
        %1426 = vmatmul.f32.gmra.mxu0 %v1130
        %v1427 = vpop.f32.mrf.mxu0
        %v1428 = vadd.f32 %v1387, %v1427
        %1429 = vmatmul.f32.gmra.mxu0 %v1137
        %v1430 = vpop.f32.mrf.mxu0
        %v1431 = vadd.f32 %v1390, %v1430
        %1432 = vmatmul.f32.gmra.mxu0 %v1144
        %v1433 = vpop.f32.mrf.mxu0
        %v1434 = vadd.f32 %v1393, %v1433
        %1435 = vmatmul.f32.gmra.mxu0 %v1151
        %v1436 = vpop.f32.mrf.mxu0
        %v1437 = vadd.f32 %v1396, %v1436
        %1438 = vdwg.mxu0
        %s1439 = scalar_lea.vmem %s612, 896 [#allocation2]
        %v1440 = vld [vmem:[%s1439] sm:$0xff]
        %v1441 = vld [vmem:[%s1439 + $0x8] sm:$0xff]
        %v1442 = vld [vmem:[%s1439 + $0x10] sm:$0xff]
        %v1443 = vld [vmem:[%s1439 + $0x18] sm:$0xff]
        %v1444 = vld [vmem:[%s1439 + $0x20] sm:$0xff]
        %v1445 = vld [vmem:[%s1439 + $0x28] sm:$0xff]
        %v1446 = vld [vmem:[%s1439 + $0x30] sm:$0xff]
        %v1447 = vld [vmem:[%s1439 + $0x38] sm:$0xff]
        %v1448 = vld [vmem:[%s1439 + $0x40] sm:$0xff]
        %v1449 = vld [vmem:[%s1439 + $0x48] sm:$0xff]
        %v1450 = vld [vmem:[%s1439 + $0x50] sm:$0xff]
        %v1451 = vld [vmem:[%s1439 + $0x58] sm:$0xff]
        %v1452 = vld [vmem:[%s1439 + $0x60] sm:$0xff]
        %v1453 = vld [vmem:[%s1439 + $0x68] sm:$0xff]
        %v1454 = vld [vmem:[%s1439 + $0x70] sm:$0xff]
        %v1455 = vld [vmem:[%s1439 + $0x78] sm:$0xff]
        %v1456 = vld [vmem:[%s1439 + $0x80] sm:$0xff]
        %v1457 = vld [vmem:[%s1439 + $0x88] sm:$0xff]
        %v1458 = vld [vmem:[%s1439 + $0x90] sm:$0xff]
        %v1459 = vld [vmem:[%s1439 + $0x98] sm:$0xff]
        %v1460 = vld [vmem:[%s1439 + $0xa0] sm:$0xff]
        %v1461 = vld [vmem:[%s1439 + $0xa8] sm:$0xff]
        %v1462 = vld [vmem:[%s1439 + $0xb0] sm:$0xff]
        %v1463 = vld [vmem:[%s1439 + $0xb8] sm:$0xff]
        %v1464 = vld [vmem:[%s1439 + $0xc0] sm:$0xff]
        %v1465 = vld [vmem:[%s1439 + $0xc8] sm:$0xff]
        %v1466 = vld [vmem:[%s1439 + $0xd0] sm:$0xff]
        %v1467 = vld [vmem:[%s1439 + $0xd8] sm:$0xff]
        %v1468 = vld [vmem:[%s1439 + $0xe0] sm:$0xff]
        %v1469 = vld [vmem:[%s1439 + $0xe8] sm:$0xff]
        %v1470 = vld [vmem:[%s1439 + $0xf0] sm:$0xff]
        %v1471 = vld [vmem:[%s1439 + $0xf8] sm:$0xff]
        %v1472 = vld [vmem:[%s1439 + $0x100] sm:$0xff]
        %v1473 = vld [vmem:[%s1439 + $0x108] sm:$0xff]
        %v1474 = vld [vmem:[%s1439 + $0x110] sm:$0xff]
        %v1475 = vld [vmem:[%s1439 + $0x118] sm:$0xff]
        %v1476 = vld [vmem:[%s1439 + $0x120] sm:$0xff]
        %v1477 = vld [vmem:[%s1439 + $0x128] sm:$0xff]
        %v1478 = vld [vmem:[%s1439 + $0x130] sm:$0xff]
        %v1479 = vld [vmem:[%s1439 + $0x138] sm:$0xff]
        %v1480 = vld [vmem:[%s1439 + $0x140] sm:$0xff]
        %v1481 = vld [vmem:[%s1439 + $0x148] sm:$0xff]
        %v1482 = vld [vmem:[%s1439 + $0x150] sm:$0xff]
        %v1483 = vld [vmem:[%s1439 + $0x158] sm:$0xff]
        %v1484 = vld [vmem:[%s1439 + $0x160] sm:$0xff]
        %v1485 = vld [vmem:[%s1439 + $0x168] sm:$0xff]
        %v1486 = vld [vmem:[%s1439 + $0x170] sm:$0xff]
        %v1487 = vld [vmem:[%s1439 + $0x178] sm:$0xff]
        %v1488 = vld [vmem:[%s1439 + $0x180] sm:$0xff]
        %v1489 = vld [vmem:[%s1439 + $0x188] sm:$0xff]
        %v1490 = vld [vmem:[%s1439 + $0x190] sm:$0xff]
        %v1491 = vld [vmem:[%s1439 + $0x198] sm:$0xff]
        %v1492 = vld [vmem:[%s1439 + $0x1a0] sm:$0xff]
        %v1493 = vld [vmem:[%s1439 + $0x1a8] sm:$0xff]
        %v1494 = vld [vmem:[%s1439 + $0x1b0] sm:$0xff]
        %v1495 = vld [vmem:[%s1439 + $0x1b8] sm:$0xff]
        %1496 = vmatpush.msra.mxu0 %v655
        %1497 = vmatpush.msra.mxu0 %v654
        %1498 = vmatpush.msra.mxu0 %v653
        %1499 = vmatpush.msra.mxu0 %v652
        %1500 = vmatpush.msra.mxu0 %v651
        %1501 = vmatpush.msra.mxu0 %v650
        %1502 = vmatpush.msra.mxu0 %v649
        %1503 = vmatpush.msra.mxu0 %v648
        %1504 = vmatpush.msra.mxu0 %v647
        %1505 = vmatpush.msra.mxu0 %v646
        %1506 = vmatpush.msra.mxu0 %v645
        %1507 = vmatpush.msra.mxu0 %v644
        %1508 = vmatpush.msra.mxu0 %v643
        %1509 = vmatpush.msra.mxu0 %v642
        %1510 = vmatpush.msra.mxu0 %v641
        %1511 = vmatpush.msra.mxu0 %v640
        %1512 = vmatmul.f32.gmra.mxu0 %v1440
        %v1513 = vpop.f32.mrf.mxu0
        %v1514 = vadd.f32 0.0, %v1513
        %1515 = vmatmul.f32.gmra.mxu0 %v1447
        %v1516 = vpop.f32.mrf.mxu0
        %v1517 = vadd.f32 0.0, %v1516
        %1518 = vmatmul.f32.gmra.mxu0 %v1454
        %v1519 = vpop.f32.mrf.mxu0
        %v1520 = vadd.f32 0.0, %v1519
        %1521 = vmatmul.f32.gmra.mxu0 %v1461
        %v1522 = vpop.f32.mrf.mxu0
        %v1523 = vadd.f32 0.0, %v1522
        %1524 = vmatmul.f32.gmra.mxu0 %v1468
        %v1525 = vpop.f32.mrf.mxu0
        %v1526 = vadd.f32 0.0, %v1525
        %1527 = vmatmul.f32.gmra.mxu0 %v1475
        %v1528 = vpop.f32.mrf.mxu0
        %v1529 = vadd.f32 0.0, %v1528
        %1530 = vmatmul.f32.gmra.mxu0 %v1482
        %v1531 = vpop.f32.mrf.mxu0
        %v1532 = vadd.f32 0.0, %v1531
        %1533 = vmatmul.f32.gmra.mxu0 %v1489
        %v1534 = vpop.f32.mrf.mxu0
        %v1535 = vadd.f32 0.0, %v1534
        %1536 = vdwg.mxu0
        %1537 = vmatpush.msra.mxu0 %v671
        %1538 = vmatpush.msra.mxu0 %v670
        %1539 = vmatpush.msra.mxu0 %v669
        %1540 = vmatpush.msra.mxu0 %v668
        %1541 = vmatpush.msra.mxu0 %v667
        %1542 = vmatpush.msra.mxu0 %v666
        %1543 = vmatpush.msra.mxu0 %v665
        %1544 = vmatpush.msra.mxu0 %v664
        %1545 = vmatpush.msra.mxu0 %v663
        %1546 = vmatpush.msra.mxu0 %v662
        %1547 = vmatpush.msra.mxu0 %v661
        %1548 = vmatpush.msra.mxu0 %v660
        %1549 = vmatpush.msra.mxu0 %v659
        %1550 = vmatpush.msra.mxu0 %v658
        %1551 = vmatpush.msra.mxu0 %v657
        %1552 = vmatpush.msra.mxu0 %v656
        %1553 = vmatmul.f32.gmra.mxu0 %v1441
        %v1554 = vpop.f32.mrf.mxu0
        %v1555 = vadd.f32 %v1514, %v1554
        %1556 = vmatmul.f32.gmra.mxu0 %v1448
        %v1557 = vpop.f32.mrf.mxu0
        %v1558 = vadd.f32 %v1517, %v1557
        %1559 = vmatmul.f32.gmra.mxu0 %v1455
        %v1560 = vpop.f32.mrf.mxu0
        %v1561 = vadd.f32 %v1520, %v1560
        %1562 = vmatmul.f32.gmra.mxu0 %v1462
        %v1563 = vpop.f32.mrf.mxu0
        %v1564 = vadd.f32 %v1523, %v1563
        %1565 = vmatmul.f32.gmra.mxu0 %v1469
        %v1566 = vpop.f32.mrf.mxu0
        %v1567 = vadd.f32 %v1526, %v1566
        %1568 = vmatmul.f32.gmra.mxu0 %v1476
        %v1569 = vpop.f32.mrf.mxu0
        %v1570 = vadd.f32 %v1529, %v1569
        %1571 = vmatmul.f32.gmra.mxu0 %v1483
        %v1572 = vpop.f32.mrf.mxu0
        %v1573 = vadd.f32 %v1532, %v1572
        %1574 = vmatmul.f32.gmra.mxu0 %v1490
        %v1575 = vpop.f32.mrf.mxu0
        %v1576 = vadd.f32 %v1535, %v1575
        %1577 = vdwg.mxu0
        %1578 = vmatpush.msra.mxu0 %v687
        %1579 = vmatpush.msra.mxu0 %v686
        %1580 = vmatpush.msra.mxu0 %v685
        %1581 = vmatpush.msra.mxu0 %v684
        %1582 = vmatpush.msra.mxu0 %v683
        %1583 = vmatpush.msra.mxu0 %v682
        %1584 = vmatpush.msra.mxu0 %v681
        %1585 = vmatpush.msra.mxu0 %v680
        %1586 = vmatpush.msra.mxu0 %v679
        %1587 = vmatpush.msra.mxu0 %v678
        %1588 = vmatpush.msra.mxu0 %v677
        %1589 = vmatpush.msra.mxu0 %v676
        %1590 = vmatpush.msra.mxu0 %v675
        %1591 = vmatpush.msra.mxu0 %v674
        %1592 = vmatpush.msra.mxu0 %v673
        %1593 = vmatpush.msra.mxu0 %v672
        %1594 = vmatmul.f32.gmra.mxu0 %v1442
        %v1595 = vpop.f32.mrf.mxu0
        %v1596 = vadd.f32 %v1555, %v1595
        %1597 = vmatmul.f32.gmra.mxu0 %v1449
        %v1598 = vpop.f32.mrf.mxu0
        %v1599 = vadd.f32 %v1558, %v1598
        %1600 = vmatmul.f32.gmra.mxu0 %v1456
        %v1601 = vpop.f32.mrf.mxu0
        %v1602 = vadd.f32 %v1561, %v1601
        %1603 = vmatmul.f32.gmra.mxu0 %v1463
        %v1604 = vpop.f32.mrf.mxu0
        %v1605 = vadd.f32 %v1564, %v1604
        %1606 = vmatmul.f32.gmra.mxu0 %v1470
        %v1607 = vpop.f32.mrf.mxu0
        %v1608 = vadd.f32 %v1567, %v1607
        %1609 = vmatmul.f32.gmra.mxu0 %v1477
        %v1610 = vpop.f32.mrf.mxu0
        %v1611 = vadd.f32 %v1570, %v1610
        %1612 = vmatmul.f32.gmra.mxu0 %v1484
        %v1613 = vpop.f32.mrf.mxu0
        %v1614 = vadd.f32 %v1573, %v1613
        %1615 = vmatmul.f32.gmra.mxu0 %v1491
        %v1616 = vpop.f32.mrf.mxu0
        %v1617 = vadd.f32 %v1576, %v1616
        %1618 = vdwg.mxu0
        %1619 = vmatpush.msra.mxu0 %v703
        %1620 = vmatpush.msra.mxu0 %v702
        %1621 = vmatpush.msra.mxu0 %v701
        %1622 = vmatpush.msra.mxu0 %v700
        %1623 = vmatpush.msra.mxu0 %v699
        %1624 = vmatpush.msra.mxu0 %v698
        %1625 = vmatpush.msra.mxu0 %v697
        %1626 = vmatpush.msra.mxu0 %v696
        %1627 = vmatpush.msra.mxu0 %v695
        %1628 = vmatpush.msra.mxu0 %v694
        %1629 = vmatpush.msra.mxu0 %v693
        %1630 = vmatpush.msra.mxu0 %v692
        %1631 = vmatpush.msra.mxu0 %v691
        %1632 = vmatpush.msra.mxu0 %v690
        %1633 = vmatpush.msra.mxu0 %v689
        %1634 = vmatpush.msra.mxu0 %v688
        %1635 = vmatmul.f32.gmra.mxu0 %v1443
        %v1636 = vpop.f32.mrf.mxu0
        %v1637 = vadd.f32 %v1596, %v1636
        %1638 = vmatmul.f32.gmra.mxu0 %v1450
        %v1639 = vpop.f32.mrf.mxu0
        %v1640 = vadd.f32 %v1599, %v1639
        %1641 = vmatmul.f32.gmra.mxu0 %v1457
        %v1642 = vpop.f32.mrf.mxu0
        %v1643 = vadd.f32 %v1602, %v1642
        %1644 = vmatmul.f32.gmra.mxu0 %v1464
        %v1645 = vpop.f32.mrf.mxu0
        %v1646 = vadd.f32 %v1605, %v1645
        %1647 = vmatmul.f32.gmra.mxu0 %v1471
        %v1648 = vpop.f32.mrf.mxu0
        %v1649 = vadd.f32 %v1608, %v1648
        %1650 = vmatmul.f32.gmra.mxu0 %v1478
        %v1651 = vpop.f32.mrf.mxu0
        %v1652 = vadd.f32 %v1611, %v1651
        %1653 = vmatmul.f32.gmra.mxu0 %v1485
        %v1654 = vpop.f32.mrf.mxu0
        %v1655 = vadd.f32 %v1614, %v1654
        %1656 = vmatmul.f32.gmra.mxu0 %v1492
        %v1657 = vpop.f32.mrf.mxu0
        %v1658 = vadd.f32 %v1617, %v1657
        %1659 = vdwg.mxu0
        %1660 = vmatpush.msra.mxu0 %v719
        %1661 = vmatpush.msra.mxu0 %v718
        %1662 = vmatpush.msra.mxu0 %v717
        %1663 = vmatpush.msra.mxu0 %v716
        %1664 = vmatpush.msra.mxu0 %v715
        %1665 = vmatpush.msra.mxu0 %v714
        %1666 = vmatpush.msra.mxu0 %v713
        %1667 = vmatpush.msra.mxu0 %v712
        %1668 = vmatpush.msra.mxu0 %v711
        %1669 = vmatpush.msra.mxu0 %v710
        %1670 = vmatpush.msra.mxu0 %v709
        %1671 = vmatpush.msra.mxu0 %v708
        %1672 = vmatpush.msra.mxu0 %v707
        %1673 = vmatpush.msra.mxu0 %v706
        %1674 = vmatpush.msra.mxu0 %v705
        %1675 = vmatpush.msra.mxu0 %v704
        %1676 = vmatmul.f32.gmra.mxu0 %v1444
        %v1677 = vpop.f32.mrf.mxu0
        %v1678 = vadd.f32 %v1637, %v1677
        %1679 = vmatmul.f32.gmra.mxu0 %v1451
        %v1680 = vpop.f32.mrf.mxu0
        %v1681 = vadd.f32 %v1640, %v1680
        %1682 = vmatmul.f32.gmra.mxu0 %v1458
        %v1683 = vpop.f32.mrf.mxu0
        %v1684 = vadd.f32 %v1643, %v1683
        %1685 = vmatmul.f32.gmra.mxu0 %v1465
        %v1686 = vpop.f32.mrf.mxu0
        %v1687 = vadd.f32 %v1646, %v1686
        %1688 = vmatmul.f32.gmra.mxu0 %v1472
        %v1689 = vpop.f32.mrf.mxu0
        %v1690 = vadd.f32 %v1649, %v1689
        %1691 = vmatmul.f32.gmra.mxu0 %v1479
        %v1692 = vpop.f32.mrf.mxu0
        %v1693 = vadd.f32 %v1652, %v1692
        %1694 = vmatmul.f32.gmra.mxu0 %v1486
        %v1695 = vpop.f32.mrf.mxu0
        %v1696 = vadd.f32 %v1655, %v1695
        %1697 = vmatmul.f32.gmra.mxu0 %v1493
        %v1698 = vpop.f32.mrf.mxu0
        %v1699 = vadd.f32 %v1658, %v1698
        %1700 = vdwg.mxu0
        %1701 = vmatpush.msra.mxu0 %v735
        %1702 = vmatpush.msra.mxu0 %v734
        %1703 = vmatpush.msra.mxu0 %v733
        %1704 = vmatpush.msra.mxu0 %v732
        %1705 = vmatpush.msra.mxu0 %v731
        %1706 = vmatpush.msra.mxu0 %v730
        %1707 = vmatpush.msra.mxu0 %v729
        %1708 = vmatpush.msra.mxu0 %v728
        %1709 = vmatpush.msra.mxu0 %v727
        %1710 = vmatpush.msra.mxu0 %v726
        %1711 = vmatpush.msra.mxu0 %v725
        %1712 = vmatpush.msra.mxu0 %v724
        %1713 = vmatpush.msra.mxu0 %v723
        %1714 = vmatpush.msra.mxu0 %v722
        %1715 = vmatpush.msra.mxu0 %v721
        %1716 = vmatpush.msra.mxu0 %v720
        %1717 = vmatmul.f32.gmra.mxu0 %v1445
        %v1718 = vpop.f32.mrf.mxu0
        %v1719 = vadd.f32 %v1678, %v1718
        %1720 = vmatmul.f32.gmra.mxu0 %v1452
        %v1721 = vpop.f32.mrf.mxu0
        %v1722 = vadd.f32 %v1681, %v1721
        %1723 = vmatmul.f32.gmra.mxu0 %v1459
        %v1724 = vpop.f32.mrf.mxu0
        %v1725 = vadd.f32 %v1684, %v1724
        %1726 = vmatmul.f32.gmra.mxu0 %v1466
        %v1727 = vpop.f32.mrf.mxu0
        %v1728 = vadd.f32 %v1687, %v1727
        %1729 = vmatmul.f32.gmra.mxu0 %v1473
        %v1730 = vpop.f32.mrf.mxu0
        %v1731 = vadd.f32 %v1690, %v1730
        %1732 = vmatmul.f32.gmra.mxu0 %v1480
        %v1733 = vpop.f32.mrf.mxu0
        %v1734 = vadd.f32 %v1693, %v1733
        %1735 = vmatmul.f32.gmra.mxu0 %v1487
        %v1736 = vpop.f32.mrf.mxu0
        %v1737 = vadd.f32 %v1696, %v1736
        %1738 = vmatmul.f32.gmra.mxu0 %v1494
        %v1739 = vpop.f32.mrf.mxu0
        %v1740 = vadd.f32 %v1699, %v1739
        %1741 = vdwg.mxu0
        %1742 = vmatpush.msra.mxu0 %v751
        %1743 = vmatpush.msra.mxu0 %v750
        %1744 = vmatpush.msra.mxu0 %v749
        %1745 = vmatpush.msra.mxu0 %v748
        %1746 = vmatpush.msra.mxu0 %v747
        %1747 = vmatpush.msra.mxu0 %v746
        %1748 = vmatpush.msra.mxu0 %v745
        %1749 = vmatpush.msra.mxu0 %v744
        %1750 = vmatpush.msra.mxu0 %v743
        %1751 = vmatpush.msra.mxu0 %v742
        %1752 = vmatpush.msra.mxu0 %v741
        %1753 = vmatpush.msra.mxu0 %v740
        %1754 = vmatpush.msra.mxu0 %v739
        %1755 = vmatpush.msra.mxu0 %v738
        %1756 = vmatpush.msra.mxu0 %v737
        %1757 = vmatpush.msra.mxu0 %v736
        %1758 = vmatmul.f32.gmra.mxu0 %v1446
        %v1759 = vpop.f32.mrf.mxu0
        %v1760 = vadd.f32 %v1719, %v1759
        %1761 = vmatmul.f32.gmra.mxu0 %v1453
        %v1762 = vpop.f32.mrf.mxu0
        %v1763 = vadd.f32 %v1722, %v1762
        %1764 = vmatmul.f32.gmra.mxu0 %v1460
        %v1765 = vpop.f32.mrf.mxu0
        %v1766 = vadd.f32 %v1725, %v1765
        %1767 = vmatmul.f32.gmra.mxu0 %v1467
        %v1768 = vpop.f32.mrf.mxu0
        %v1769 = vadd.f32 %v1728, %v1768
        %1770 = vmatmul.f32.gmra.mxu0 %v1474
        %v1771 = vpop.f32.mrf.mxu0
        %v1772 = vadd.f32 %v1731, %v1771
        %1773 = vmatmul.f32.gmra.mxu0 %v1481
        %v1774 = vpop.f32.mrf.mxu0
        %v1775 = vadd.f32 %v1734, %v1774
        %1776 = vmatmul.f32.gmra.mxu0 %v1488
        %v1777 = vpop.f32.mrf.mxu0
        %v1778 = vadd.f32 %v1737, %v1777
        %1779 = vmatmul.f32.gmra.mxu0 %v1495
        %v1780 = vpop.f32.mrf.mxu0
        %v1781 = vadd.f32 %v1740, %v1780
        %1782 = vdwg.mxu0
        %s1783 = scalar_lea.vmem %s612, 1344 [#allocation2]
        %v1784 = vld [vmem:[%s1783] sm:$0xff]
        %v1785 = vld [vmem:[%s1783 + $0x8] sm:$0xff]
        %v1786 = vld [vmem:[%s1783 + $0x10] sm:$0xff]
        %v1787 = vld [vmem:[%s1783 + $0x18] sm:$0xff]
        %v1788 = vld [vmem:[%s1783 + $0x20] sm:$0xff]
        %v1789 = vld [vmem:[%s1783 + $0x28] sm:$0xff]
        %v1790 = vld [vmem:[%s1783 + $0x30] sm:$0xff]
        %v1791 = vld [vmem:[%s1783 + $0x38] sm:$0xff]
        %v1792 = vld [vmem:[%s1783 + $0x40] sm:$0xff]
        %v1793 = vld [vmem:[%s1783 + $0x48] sm:$0xff]
        %v1794 = vld [vmem:[%s1783 + $0x50] sm:$0xff]
        %v1795 = vld [vmem:[%s1783 + $0x58] sm:$0xff]
        %v1796 = vld [vmem:[%s1783 + $0x60] sm:$0xff]
        %v1797 = vld [vmem:[%s1783 + $0x68] sm:$0xff]
        %v1798 = vld [vmem:[%s1783 + $0x70] sm:$0xff]
        %v1799 = vld [vmem:[%s1783 + $0x78] sm:$0xff]
        %v1800 = vld [vmem:[%s1783 + $0x80] sm:$0xff]
        %v1801 = vld [vmem:[%s1783 + $0x88] sm:$0xff]
        %v1802 = vld [vmem:[%s1783 + $0x90] sm:$0xff]
        %v1803 = vld [vmem:[%s1783 + $0x98] sm:$0xff]
        %v1804 = vld [vmem:[%s1783 + $0xa0] sm:$0xff]
        %v1805 = vld [vmem:[%s1783 + $0xa8] sm:$0xff]
        %v1806 = vld [vmem:[%s1783 + $0xb0] sm:$0xff]
        %v1807 = vld [vmem:[%s1783 + $0xb8] sm:$0xff]
        %v1808 = vld [vmem:[%s1783 + $0xc0] sm:$0xff]
        %v1809 = vld [vmem:[%s1783 + $0xc8] sm:$0xff]
        %v1810 = vld [vmem:[%s1783 + $0xd0] sm:$0xff]
        %v1811 = vld [vmem:[%s1783 + $0xd8] sm:$0xff]
        %v1812 = vld [vmem:[%s1783 + $0xe0] sm:$0xff]
        %v1813 = vld [vmem:[%s1783 + $0xe8] sm:$0xff]
        %v1814 = vld [vmem:[%s1783 + $0xf0] sm:$0xff]
        %v1815 = vld [vmem:[%s1783 + $0xf8] sm:$0xff]
        %v1816 = vld [vmem:[%s1783 + $0x100] sm:$0xff]
        %v1817 = vld [vmem:[%s1783 + $0x108] sm:$0xff]
        %v1818 = vld [vmem:[%s1783 + $0x110] sm:$0xff]
        %v1819 = vld [vmem:[%s1783 + $0x118] sm:$0xff]
        %v1820 = vld [vmem:[%s1783 + $0x120] sm:$0xff]
        %v1821 = vld [vmem:[%s1783 + $0x128] sm:$0xff]
        %v1822 = vld [vmem:[%s1783 + $0x130] sm:$0xff]
        %v1823 = vld [vmem:[%s1783 + $0x138] sm:$0xff]
        %v1824 = vld [vmem:[%s1783 + $0x140] sm:$0xff]
        %v1825 = vld [vmem:[%s1783 + $0x148] sm:$0xff]
        %v1826 = vld [vmem:[%s1783 + $0x150] sm:$0xff]
        %v1827 = vld [vmem:[%s1783 + $0x158] sm:$0xff]
        %v1828 = vld [vmem:[%s1783 + $0x160] sm:$0xff]
        %v1829 = vld [vmem:[%s1783 + $0x168] sm:$0xff]
        %v1830 = vld [vmem:[%s1783 + $0x170] sm:$0xff]
        %v1831 = vld [vmem:[%s1783 + $0x178] sm:$0xff]
        %v1832 = vld [vmem:[%s1783 + $0x180] sm:$0xff]
        %v1833 = vld [vmem:[%s1783 + $0x188] sm:$0xff]
        %v1834 = vld [vmem:[%s1783 + $0x190] sm:$0xff]
        %v1835 = vld [vmem:[%s1783 + $0x198] sm:$0xff]
        %v1836 = vld [vmem:[%s1783 + $0x1a0] sm:$0xff]
        %v1837 = vld [vmem:[%s1783 + $0x1a8] sm:$0xff]
        %v1838 = vld [vmem:[%s1783 + $0x1b0] sm:$0xff]
        %v1839 = vld [vmem:[%s1783 + $0x1b8] sm:$0xff]
        %1840 = vmatpush.msra.mxu0 %v655
        %1841 = vmatpush.msra.mxu0 %v654
        %1842 = vmatpush.msra.mxu0 %v653
        %1843 = vmatpush.msra.mxu0 %v652
        %1844 = vmatpush.msra.mxu0 %v651
        %1845 = vmatpush.msra.mxu0 %v650
        %1846 = vmatpush.msra.mxu0 %v649
        %1847 = vmatpush.msra.mxu0 %v648
        %1848 = vmatpush.msra.mxu0 %v647
        %1849 = vmatpush.msra.mxu0 %v646
        %1850 = vmatpush.msra.mxu0 %v645
        %1851 = vmatpush.msra.mxu0 %v644
        %1852 = vmatpush.msra.mxu0 %v643
        %1853 = vmatpush.msra.mxu0 %v642
        %1854 = vmatpush.msra.mxu0 %v641
        %1855 = vmatpush.msra.mxu0 %v640
        %1856 = vmatmul.f32.gmra.mxu0 %v1784
        %v1857 = vpop.f32.mrf.mxu0
        %v1858 = vadd.f32 0.0, %v1857
        %1859 = vmatmul.f32.gmra.mxu0 %v1791
        %v1860 = vpop.f32.mrf.mxu0
        %v1861 = vadd.f32 0.0, %v1860
        %1862 = vmatmul.f32.gmra.mxu0 %v1798
        %v1863 = vpop.f32.mrf.mxu0
        %v1864 = vadd.f32 0.0, %v1863
        %1865 = vmatmul.f32.gmra.mxu0 %v1805
        %v1866 = vpop.f32.mrf.mxu0
        %v1867 = vadd.f32 0.0, %v1866
        %1868 = vmatmul.f32.gmra.mxu0 %v1812
        %v1869 = vpop.f32.mrf.mxu0
        %v1870 = vadd.f32 0.0, %v1869
        %1871 = vmatmul.f32.gmra.mxu0 %v1819
        %v1872 = vpop.f32.mrf.mxu0
        %v1873 = vadd.f32 0.0, %v1872
        %1874 = vmatmul.f32.gmra.mxu0 %v1826
        %v1875 = vpop.f32.mrf.mxu0
        %v1876 = vadd.f32 0.0, %v1875
        %1877 = vmatmul.f32.gmra.mxu0 %v1833
        %v1878 = vpop.f32.mrf.mxu0
        %v1879 = vadd.f32 0.0, %v1878
        %1880 = vdwg.mxu0
        %1881 = vmatpush.msra.mxu0 %v671
        %1882 = vmatpush.msra.mxu0 %v670
        %1883 = vmatpush.msra.mxu0 %v669
        %1884 = vmatpush.msra.mxu0 %v668
        %1885 = vmatpush.msra.mxu0 %v667
        %1886 = vmatpush.msra.mxu0 %v666
        %1887 = vmatpush.msra.mxu0 %v665
        %1888 = vmatpush.msra.mxu0 %v664
        %1889 = vmatpush.msra.mxu0 %v663
        %1890 = vmatpush.msra.mxu0 %v662
        %1891 = vmatpush.msra.mxu0 %v661
        %1892 = vmatpush.msra.mxu0 %v660
        %1893 = vmatpush.msra.mxu0 %v659
        %1894 = vmatpush.msra.mxu0 %v658
        %1895 = vmatpush.msra.mxu0 %v657
        %1896 = vmatpush.msra.mxu0 %v656
        %1897 = vmatmul.f32.gmra.mxu0 %v1785
        %v1898 = vpop.f32.mrf.mxu0
        %v1899 = vadd.f32 %v1858, %v1898
        %1900 = vmatmul.f32.gmra.mxu0 %v1792
        %v1901 = vpop.f32.mrf.mxu0
        %v1902 = vadd.f32 %v1861, %v1901
        %1903 = vmatmul.f32.gmra.mxu0 %v1799
        %v1904 = vpop.f32.mrf.mxu0
        %v1905 = vadd.f32 %v1864, %v1904
        %1906 = vmatmul.f32.gmra.mxu0 %v1806
        %v1907 = vpop.f32.mrf.mxu0
        %v1908 = vadd.f32 %v1867, %v1907
        %1909 = vmatmul.f32.gmra.mxu0 %v1813
        %v1910 = vpop.f32.mrf.mxu0
        %v1911 = vadd.f32 %v1870, %v1910
        %1912 = vmatmul.f32.gmra.mxu0 %v1820
        %v1913 = vpop.f32.mrf.mxu0
        %v1914 = vadd.f32 %v1873, %v1913
        %1915 = vmatmul.f32.gmra.mxu0 %v1827
        %v1916 = vpop.f32.mrf.mxu0
        %v1917 = vadd.f32 %v1876, %v1916
        %1918 = vmatmul.f32.gmra.mxu0 %v1834
        %v1919 = vpop.f32.mrf.mxu0
        %v1920 = vadd.f32 %v1879, %v1919
        %1921 = vdwg.mxu0
        %1922 = vmatpush.msra.mxu0 %v687
        %1923 = vmatpush.msra.mxu0 %v686
        %1924 = vmatpush.msra.mxu0 %v685
        %1925 = vmatpush.msra.mxu0 %v684
        %1926 = vmatpush.msra.mxu0 %v683
        %1927 = vmatpush.msra.mxu0 %v682
        %1928 = vmatpush.msra.mxu0 %v681
        %1929 = vmatpush.msra.mxu0 %v680
        %1930 = vmatpush.msra.mxu0 %v679
        %1931 = vmatpush.msra.mxu0 %v678
        %1932 = vmatpush.msra.mxu0 %v677
        %1933 = vmatpush.msra.mxu0 %v676
        %1934 = vmatpush.msra.mxu0 %v675
        %1935 = vmatpush.msra.mxu0 %v674
        %1936 = vmatpush.msra.mxu0 %v673
        %1937 = vmatpush.msra.mxu0 %v672
        %1938 = vmatmul.f32.gmra.mxu0 %v1786
        %v1939 = vpop.f32.mrf.mxu0
        %v1940 = vadd.f32 %v1899, %v1939
        %1941 = vmatmul.f32.gmra.mxu0 %v1793
        %v1942 = vpop.f32.mrf.mxu0
        %v1943 = vadd.f32 %v1902, %v1942
        %1944 = vmatmul.f32.gmra.mxu0 %v1800
        %v1945 = vpop.f32.mrf.mxu0
        %v1946 = vadd.f32 %v1905, %v1945
        %1947 = vmatmul.f32.gmra.mxu0 %v1807
        %v1948 = vpop.f32.mrf.mxu0
        %v1949 = vadd.f32 %v1908, %v1948
        %1950 = vmatmul.f32.gmra.mxu0 %v1814
        %v1951 = vpop.f32.mrf.mxu0
        %v1952 = vadd.f32 %v1911, %v1951
        %1953 = vmatmul.f32.gmra.mxu0 %v1821
        %v1954 = vpop.f32.mrf.mxu0
        %v1955 = vadd.f32 %v1914, %v1954
        %1956 = vmatmul.f32.gmra.mxu0 %v1828
        %v1957 = vpop.f32.mrf.mxu0
        %v1958 = vadd.f32 %v1917, %v1957
        %1959 = vmatmul.f32.gmra.mxu0 %v1835
        %v1960 = vpop.f32.mrf.mxu0
        %v1961 = vadd.f32 %v1920, %v1960
        %1962 = vdwg.mxu0
        %1963 = vmatpush.msra.mxu0 %v703
        %1964 = vmatpush.msra.mxu0 %v702
        %1965 = vmatpush.msra.mxu0 %v701
        %1966 = vmatpush.msra.mxu0 %v700
        %1967 = vmatpush.msra.mxu0 %v699
        %1968 = vmatpush.msra.mxu0 %v698
        %1969 = vmatpush.msra.mxu0 %v697
        %1970 = vmatpush.msra.mxu0 %v696
        %1971 = vmatpush.msra.mxu0 %v695
        %1972 = vmatpush.msra.mxu0 %v694
        %1973 = vmatpush.msra.mxu0 %v693
        %1974 = vmatpush.msra.mxu0 %v692
        %1975 = vmatpush.msra.mxu0 %v691
        %1976 = vmatpush.msra.mxu0 %v690
        %1977 = vmatpush.msra.mxu0 %v689
        %1978 = vmatpush.msra.mxu0 %v688
        %1979 = vmatmul.f32.gmra.mxu0 %v1787
        %v1980 = vpop.f32.mrf.mxu0
        %v1981 = vadd.f32 %v1940, %v1980
        %1982 = vmatmul.f32.gmra.mxu0 %v1794
        %v1983 = vpop.f32.mrf.mxu0
        %v1984 = vadd.f32 %v1943, %v1983
        %1985 = vmatmul.f32.gmra.mxu0 %v1801
        %v1986 = vpop.f32.mrf.mxu0
        %v1987 = vadd.f32 %v1946, %v1986
        %1988 = vmatmul.f32.gmra.mxu0 %v1808
        %v1989 = vpop.f32.mrf.mxu0
        %v1990 = vadd.f32 %v1949, %v1989
        %1991 = vmatmul.f32.gmra.mxu0 %v1815
        %v1992 = vpop.f32.mrf.mxu0
        %v1993 = vadd.f32 %v1952, %v1992
        %1994 = vmatmul.f32.gmra.mxu0 %v1822
        %v1995 = vpop.f32.mrf.mxu0
        %v1996 = vadd.f32 %v1955, %v1995
        %1997 = vmatmul.f32.gmra.mxu0 %v1829
        %v1998 = vpop.f32.mrf.mxu0
        %v1999 = vadd.f32 %v1958, %v1998
        %2000 = vmatmul.f32.gmra.mxu0 %v1836
        %v2001 = vpop.f32.mrf.mxu0
        %v2002 = vadd.f32 %v1961, %v2001
        %2003 = vdwg.mxu0
        %2004 = vmatpush.msra.mxu0 %v719
        %2005 = vmatpush.msra.mxu0 %v718
        %2006 = vmatpush.msra.mxu0 %v717
        %2007 = vmatpush.msra.mxu0 %v716
        %2008 = vmatpush.msra.mxu0 %v715
        %2009 = vmatpush.msra.mxu0 %v714
        %2010 = vmatpush.msra.mxu0 %v713
        %2011 = vmatpush.msra.mxu0 %v712
        %2012 = vmatpush.msra.mxu0 %v711
        %2013 = vmatpush.msra.mxu0 %v710
        %2014 = vmatpush.msra.mxu0 %v709
        %2015 = vmatpush.msra.mxu0 %v708
        %2016 = vmatpush.msra.mxu0 %v707
        %2017 = vmatpush.msra.mxu0 %v706
        %2018 = vmatpush.msra.mxu0 %v705
        %2019 = vmatpush.msra.mxu0 %v704
        %2020 = vmatmul.f32.gmra.mxu0 %v1788
        %v2021 = vpop.f32.mrf.mxu0
        %v2022 = vadd.f32 %v1981, %v2021
        %2023 = vmatmul.f32.gmra.mxu0 %v1795
        %v2024 = vpop.f32.mrf.mxu0
        %v2025 = vadd.f32 %v1984, %v2024
        %2026 = vmatmul.f32.gmra.mxu0 %v1802
        %v2027 = vpop.f32.mrf.mxu0
        %v2028 = vadd.f32 %v1987, %v2027
        %2029 = vmatmul.f32.gmra.mxu0 %v1809
        %v2030 = vpop.f32.mrf.mxu0
        %v2031 = vadd.f32 %v1990, %v2030
        %2032 = vmatmul.f32.gmra.mxu0 %v1816
        %v2033 = vpop.f32.mrf.mxu0
        %v2034 = vadd.f32 %v1993, %v2033
        %2035 = vmatmul.f32.gmra.mxu0 %v1823
        %v2036 = vpop.f32.mrf.mxu0
        %v2037 = vadd.f32 %v1996, %v2036
        %2038 = vmatmul.f32.gmra.mxu0 %v1830
        %v2039 = vpop.f32.mrf.mxu0
        %v2040 = vadd.f32 %v1999, %v2039
        %2041 = vmatmul.f32.gmra.mxu0 %v1837
        %v2042 = vpop.f32.mrf.mxu0
        %v2043 = vadd.f32 %v2002, %v2042
        %2044 = vdwg.mxu0
        %2045 = vmatpush.msra.mxu0 %v735
        %2046 = vmatpush.msra.mxu0 %v734
        %2047 = vmatpush.msra.mxu0 %v733
        %2048 = vmatpush.msra.mxu0 %v732
        %2049 = vmatpush.msra.mxu0 %v731
        %2050 = vmatpush.msra.mxu0 %v730
        %2051 = vmatpush.msra.mxu0 %v729
        %2052 = vmatpush.msra.mxu0 %v728
        %2053 = vmatpush.msra.mxu0 %v727
        %2054 = vmatpush.msra.mxu0 %v726
        %2055 = vmatpush.msra.mxu0 %v725
        %2056 = vmatpush.msra.mxu0 %v724
        %2057 = vmatpush.msra.mxu0 %v723
        %2058 = vmatpush.msra.mxu0 %v722
        %2059 = vmatpush.msra.mxu0 %v721
        %2060 = vmatpush.msra.mxu0 %v720
        %2061 = vmatmul.f32.gmra.mxu0 %v1789
        %v2062 = vpop.f32.mrf.mxu0
        %v2063 = vadd.f32 %v2022, %v2062
        %2064 = vmatmul.f32.gmra.mxu0 %v1796
        %v2065 = vpop.f32.mrf.mxu0
        %v2066 = vadd.f32 %v2025, %v2065
        %2067 = vmatmul.f32.gmra.mxu0 %v1803
        %v2068 = vpop.f32.mrf.mxu0
        %v2069 = vadd.f32 %v2028, %v2068
        %2070 = vmatmul.f32.gmra.mxu0 %v1810
        %v2071 = vpop.f32.mrf.mxu0
        %v2072 = vadd.f32 %v2031, %v2071
        %2073 = vmatmul.f32.gmra.mxu0 %v1817
        %v2074 = vpop.f32.mrf.mxu0
        %v2075 = vadd.f32 %v2034, %v2074
        %2076 = vmatmul.f32.gmra.mxu0 %v1824
        %v2077 = vpop.f32.mrf.mxu0
        %v2078 = vadd.f32 %v2037, %v2077
        %2079 = vmatmul.f32.gmra.mxu0 %v1831
        %v2080 = vpop.f32.mrf.mxu0
        %v2081 = vadd.f32 %v2040, %v2080
        %2082 = vmatmul.f32.gmra.mxu0 %v1838
        %v2083 = vpop.f32.mrf.mxu0
        %v2084 = vadd.f32 %v2043, %v2083
        %2085 = vdwg.mxu0
        %2086 = vmatpush.msra.mxu0 %v751
        %2087 = vmatpush.msra.mxu0 %v750
        %2088 = vmatpush.msra.mxu0 %v749
        %2089 = vmatpush.msra.mxu0 %v748
        %2090 = vmatpush.msra.mxu0 %v747
        %2091 = vmatpush.msra.mxu0 %v746
        %2092 = vmatpush.msra.mxu0 %v745
        %2093 = vmatpush.msra.mxu0 %v744
        %2094 = vmatpush.msra.mxu0 %v743
        %2095 = vmatpush.msra.mxu0 %v742
        %2096 = vmatpush.msra.mxu0 %v741
        %2097 = vmatpush.msra.mxu0 %v740
        %2098 = vmatpush.msra.mxu0 %v739
        %2099 = vmatpush.msra.mxu0 %v738
        %2100 = vmatpush.msra.mxu0 %v737
        %2101 = vmatpush.msra.mxu0 %v736
        %2102 = vmatmul.f32.gmra.mxu0 %v1790
        %v2103 = vpop.f32.mrf.mxu0
        %v2104 = vadd.f32 %v2063, %v2103
        %2105 = vmatmul.f32.gmra.mxu0 %v1797
        %v2106 = vpop.f32.mrf.mxu0
        %v2107 = vadd.f32 %v2066, %v2106
        %2108 = vmatmul.f32.gmra.mxu0 %v1804
        %v2109 = vpop.f32.mrf.mxu0
        %v2110 = vadd.f32 %v2069, %v2109
        %2111 = vmatmul.f32.gmra.mxu0 %v1811
        %v2112 = vpop.f32.mrf.mxu0
        %v2113 = vadd.f32 %v2072, %v2112
        %2114 = vmatmul.f32.gmra.mxu0 %v1818
        %v2115 = vpop.f32.mrf.mxu0
        %v2116 = vadd.f32 %v2075, %v2115
        %2117 = vmatmul.f32.gmra.mxu0 %v1825
        %v2118 = vpop.f32.mrf.mxu0
        %v2119 = vadd.f32 %v2078, %v2118
        %2120 = vmatmul.f32.gmra.mxu0 %v1832
        %v2121 = vpop.f32.mrf.mxu0
        %v2122 = vadd.f32 %v2081, %v2121
        %2123 = vmatmul.f32.gmra.mxu0 %v1839
        %v2124 = vpop.f32.mrf.mxu0
        %v2125 = vadd.f32 %v2084, %v2124
        %2126 = vdwg.mxu0
        %v2127 = vmax.f32 %v1072, %v1416
        %v2128 = vmax.f32 %v1075, %v1419
        %v2129 = vmax.f32 %v1078, %v1422
        %v2130 = vmax.f32 %v1081, %v1425
        %v2131 = vmax.f32 %v1084, %v1428
        %v2132 = vmax.f32 %v1087, %v1431
        %v2133 = vmax.f32 %v1090, %v1434
        %v2134 = vmax.f32 %v1093, %v1437
        %v2135 = vmax.f32 %v1760, %v2104
        %v2136 = vmax.f32 %v1763, %v2107
        %v2137 = vmax.f32 %v1766, %v2110
        %v2138 = vmax.f32 %v1769, %v2113
        %v2139 = vmax.f32 %v1772, %v2116
        %v2140 = vmax.f32 %v1775, %v2119
        %v2141 = vmax.f32 %v1778, %v2122
        %v2142 = vmax.f32 %v1781, %v2125
        %v2143 = vmax.f32 %v2127, %v2135
        %v2144 = vmax.f32 %v2128, %v2136
        %v2145 = vmax.f32 %v2129, %v2137
        %v2146 = vmax.f32 %v2130, %v2138
        %v2147 = vmax.f32 %v2131, %v2139
        %v2148 = vmax.f32 %v2132, %v2140
        %v2149 = vmax.f32 %v2133, %v2141
        %v2150 = vmax.f32 %v2134, %v2142
        %v2151 = vld [vmem:[%s2] sm:$0x1]
        %v2153 = vperm.slane %v2151, 0
        %v2155 = vadd.f32 %v2143, %v2153
        %v2156 = vadd.f32 %v2144, %v2153
        %v2157 = vadd.f32 %v2145, %v2153
        %v2158 = vadd.f32 %v2146, %v2153
        %v2159 = vadd.f32 %v2147, %v2153
        %v2160 = vadd.f32 %v2148, %v2153
        %v2161 = vadd.f32 %v2149, %v2153
        %v2162 = vadd.f32 %v2150, %v2153
        %vm2163 = vcmask 261120
        %2164 = vst.msk [vmem:[%s638] sm:$0xff] %vm2163, %v2155
        %2165 = vst.msk [vmem:[%s638 + $0x8] sm:$0xff] %vm2163, %v2156
        %2166 = vst.msk [vmem:[%s638 + $0x10] sm:$0xff] %vm2163, %v2157
        %2167 = vst.msk [vmem:[%s638 + $0x18] sm:$0xff] %vm2163, %v2158
        %2168 = vst.msk [vmem:[%s638 + $0x20] sm:$0xff] %vm2163, %v2159
        %2169 = vst.msk [vmem:[%s638 + $0x28] sm:$0xff] %vm2163, %v2160
        %2170 = vst.msk [vmem:[%s638 + $0x30] sm:$0xff] %vm2163, %v2161
        %2171 = vst.msk [vmem:[%s638 + $0x38] sm:$0xff] %vm2163, %v2162
        %s2172 = smul.u32 8, %s14
        %p2173 = scmp.lt.s32.totalorder %s2172, 15
        %s2174 = scalar_select %p2173, %s2172, 15
        %s2175 = smul.addr %s2174, 8
        %s2176 = scalar_lea.vmem %s3, %s2175
        // Predicated region
        $region56: #{net_forward.5} parent=50 // pred_check
          %p2177 = pneg %p100
        $region57: #{net_forward.5} parent=50 // pred_check_branch
          %2179 = sbr.rel (%p2177) target = $region59
        $region58: #{net_forward.5} parent=50 // pred_region
          %s2180 = smul.u32 8, %s14
        $region59: #{net_forward.5} parent=50 // pred_fallthru
          _
      $region51: #{net_forward.5} parent=5 // pred_fallthru
        _
      %p2181 = scmp.le.s32.totalorder 2, %s9
      // Predicated region
      $region60: #{net_forward.5} parent=5 // pred_check
        %p2182 = pneg %p2181
      $region61: #{net_forward.5} parent=5 // pred_check_branch
        %2184 = sbr.rel (%p2182) target = $region63
      $region62: #{net_forward.5} parent=5 // pred_region
        %s2185 = ssub.s32 %s9, 2
        // Predicated region
        $region64: #{net_forward.5} parent=62 // pred_check
          %p2186 = pneg %p106
        $region65: #{net_forward.5} parent=62 // pred_check_branch
          %2188 = sbr.rel (%p2186) target = $region67
        $region66: #{net_forward.5} parent=62 // pred_region
          %s2189 = smul.u32 8, %s15
          %p2190 = scmp.lt.s32.totalorder %s2189, 15
          %s2191 = scalar_select %p2190, %s2189, 15
          %s2192 = smul.addr %s2191, 8
          %s2193 = scalar_lea.vmem %s3, %s2192
        $region67: #{net_forward.5} parent=62 // pred_fallthru
          _
      $region63: #{net_forward.5} parent=5 // pred_fallthru
        _
    $region6: #{net_forward.5} parent=1 // loop_footer
      %s13 = sadd.s32 1, %s9
    $region7: #{net_forward.5} parent=1 // loop_footer_branch
      %8 = sbr.rel target = $region3
    $region8: #{net_forward.5} parent=1 // loop_exit
      _

// kernel: net_forward.6
$region0: #{net_forward.6}
  #allocation0 [shape = 'u32[]', space=smem, size = 0x4, offset = 0x4, fixed_abs, tag = 'smem constant byte address 0x4 - core index']
  #allocation1 [shape = 'u32[72,128]{1,0:T(1,128)}', space=vmem, size = 0x9000, scoped, tag = 'internal scratch']
  %s0 = inlined_call_operand.vmem [shape: f32[4,32,896], index: 0, kind: input, shape index: {}]
  %s1 = inlined_call_operand.vmem [shape: f32[896,64], index: 1, kind: input, shape index: {}]
  %s2 = inlined_call_operand.vmem [shape: f32[1,64], index: 2, kind: input, shape index: {}]
  %s3 = inlined_call_operand.vmem [shape: f32[32,64], index: 3, kind: output, shape index: {}]
  %s4 = sld [smem:[#allocation0]]
  $region68: #{net_forward.6} parent=0
    _
  %s6 = ssub.s32 1, %s4
  %s7 = scalar_select 0, %s6, %s4
  $region1: #{net_forward.6} parent=0
    #allocation2 [shape = 'u8[458752]{0}', space=vmem, size = 0x70000, scoped, tag = 'input window, operand 0']
    loop: start=0, step=1, limit=4
    $region2: #{net_forward.6} parent=1 // loop_pre_header
      _
    $region3: #{net_forward.6} parent=1 // loop_header
      %s9 = sphi 0, %s13
      %p10 = scmp.ge.s32.totalorder %s9, 4
      %s19 = sphi 0, %s21
      %s22 = sphi 0, %s19
      %s23 = sphi 0, %s22
      %s39 = sphi 0, %s23
      %s43 = sphi 0, %s43
      %s45 = sphi 0, %s43
      %s46 = sphi 0, %s45
      %s60 = sphi 0, %s46
      %s64 = sphi 0, %s64
      %s66 = sphi 0, %s64
      %s67 = sphi 0, %s66
      %s81 = sphi 0, %s67
      %s87 = sphi 0, %s89
      %s90 = sphi 0, %s87
      %s91 = sphi 0, %s90
      %s107 = sphi 0, %s91
    $region4: #{net_forward.6} parent=1 // loop_header_branch
      %12 = sbr.rel (%p10) target = $region8
    $region5: #{net_forward.6} parent=1 // loop_body
      %s14 = ssub.s32 %s9, 1
      %s15 = ssub.s32 %s9, 2
      %s16 = sadd.s32 %s9, 1
      %s17 = ssub.s32 %s9, %s16
      %p18 = scmp.eq.s32.totalorder %s17, 0
      %s20 = sadd.s32 %s19, 1
      %s21 = scalar_select %p18, %s19, %s20
      %p24 = pneg %p18
      %p25 = scmp.eq.s32.totalorder %s9, 1
      %p26 = por %p24, %p25
      %p27 = scmp.ne.s32.totalorder %s19, %s22
      %p28 = scmp.eq.s32.totalorder %s9, 0
      %p29 = por %p27, %p28
      %p30 = scmp.ne.s32.totalorder %s19, %s22
      %p31 = scmp.eq.s32.totalorder %s14, 1
      %p32 = por %p30, %p31
      %p33 = scmp.ne.s32.totalorder %s22, %s23
      %p34 = scmp.eq.s32.totalorder %s14, 0
      %p35 = por %p33, %p34
      %p36 = scmp.ne.s32.totalorder %s22, %s23
      %p37 = scmp.eq.s32.totalorder %s15, 1
      %p38 = por %p36, %p37
      %p40 = scmp.ne.s32.totalorder %s23, %s39
      %p41 = scmp.eq.s32.totalorder %s15, 0
      %p42 = por %p40, %p41
      %s44 = sadd.s32 %s43, 1
      %p47 = scmp.eq.s32.totalorder %s9, 1
      %p48 = scmp.ne.s32.totalorder %s43, %s45
      %p49 = scmp.eq.s32.totalorder %s9, 0
      %p50 = por %p48, %p49
      %p51 = scmp.ne.s32.totalorder %s43, %s45
      %p52 = scmp.eq.s32.totalorder %s14, 1
      %p53 = por %p51, %p52
      %p54 = scmp.ne.s32.totalorder %s45, %s46
      %p55 = scmp.eq.s32.totalorder %s14, 0
      %p56 = por %p54, %p55
      %p57 = scmp.ne.s32.totalorder %s45, %s46
      %p58 = scmp.eq.s32.totalorder %s15, 1
      %p59 = por %p57, %p58
      %p61 = scmp.ne.s32.totalorder %s46, %s60
      %p62 = scmp.eq.s32.totalorder %s15, 0
      %p63 = por %p61, %p62
      %s65 = sadd.s32 %s64, 1
      %p68 = scmp.eq.s32.totalorder %s9, 1
      %p69 = scmp.ne.s32.totalorder %s64, %s66
      %p70 = scmp.eq.s32.totalorder %s9, 0
      %p71 = por %p69, %p70
      %p72 = scmp.ne.s32.totalorder %s64, %s66
      %p73 = scmp.eq.s32.totalorder %s14, 1
      %p74 = por %p72, %p73
      %p75 = scmp.ne.s32.totalorder %s66, %s67
      %p76 = scmp.eq.s32.totalorder %s14, 0
      %p77 = por %p75, %p76
      %p78 = scmp.ne.s32.totalorder %s66, %s67
      %p79 = scmp.eq.s32.totalorder %s15, 1
      %p80 = por %p78, %p79
      %p82 = scmp.ne.s32.totalorder %s67, %s81
      %p83 = scmp.eq.s32.totalorder %s15, 0
      %p84 = por %p82, %p83
      %s85 = ssub.s32 %s9, %s16
      %p86 = scmp.eq.s32.totalorder %s85, 0
      %s88 = sadd.s32 %s87, 1
      %s89 = scalar_select %p86, %s87, %s88
      %p92 = pneg %p86
      %p93 = scmp.eq.s32.totalorder %s9, 1
      %p94 = por %p92, %p93
      %p95 = scmp.ne.s32.totalorder %s87, %s90
      %p96 = scmp.eq.s32.totalorder %s9, 0
      %p97 = por %p95, %p96
      %p98 = scmp.ne.s32.totalorder %s87, %s90
      %p99 = scmp.eq.s32.totalorder %s14, 1
      %p100 = por %p98, %p99
      %p101 = scmp.ne.s32.totalorder %s90, %s91
      %p102 = scmp.eq.s32.totalorder %s14, 0
      %p103 = por %p101, %p102
      %p104 = scmp.ne.s32.totalorder %s90, %s91
      %p105 = scmp.eq.s32.totalorder %s15, 1
      %p106 = por %p104, %p105
      %p108 = scmp.ne.s32.totalorder %s91, %s107
      %p109 = scmp.eq.s32.totalorder %s15, 0
      %p110 = por %p108, %p109
      %p111 = scmp.le.s32.totalorder 1, %s9
      %p112 = scmp.lt.s32.totalorder %s9, 3
      %p113 = pnand %p111, %p112
      %p114 = pneg %p113
      // Predicated region
      $region9: #{net_forward.6} parent=5 // pred_check
        _
      $region10: #{net_forward.6} parent=5 // pred_check_branch
        %116 = sbr.rel (%p113) target = $region12
      $region11: #{net_forward.6} parent=5 // pred_region
        %s117 = ssub.s32 %s9, 1
        // Predicated region
        $region13: #{net_forward.6} parent=11 // pred_check
          %p118 = pneg %p56
        $region14: #{net_forward.6} parent=11 // pred_check_branch
          %120 = sbr.rel (%p118) target = $region16
        $region15: #{net_forward.6} parent=11 // pred_region
          _
        $region16: #{net_forward.6} parent=11 // pred_fallthru
          _
        // Predicated region
        $region17: #{net_forward.6} parent=11 // pred_check
          %p121 = pneg %p77
        $region18: #{net_forward.6} parent=11 // pred_check_branch
          %123 = sbr.rel (%p121) target = $region20
        $region19: #{net_forward.6} parent=11 // pred_region
          _
        $region20: #{net_forward.6} parent=11 // pred_fallthru
          _
      $region12: #{net_forward.6} parent=5 // pred_fallthru
        _
      %p124 = scmp.lt.s32.totalorder %s9, 2
      // Predicated region
      $region21: #{net_forward.6} parent=5 // pred_check
        %p125 = pneg %p124
      $region22: #{net_forward.6} parent=5 // pred_check_branch
        %127 = sbr.rel (%p125) target = $region24
      $region23: #{net_forward.6} parent=5 // pred_region
        // Predicated region
        $region25: #{net_forward.6} parent=23 // pred_check
          %p128 = pneg %p29
        $region26: #{net_forward.6} parent=23 // pred_check_branch
          %130 = sbr.rel (%p128) target = $region28
        $region27: #{net_forward.6} parent=23 // pred_region
          %s131 = sand.u32 %s19, 1
          %s132 = sand.u32 %s19, 1
          %s133 = smul.addr %s132, 448
          %s134 = scalar_lea.vmem [#allocation2], %s133
          %s135 = smul.u32 2, %s9
          %s136 = smul.addr %s135, 7
          %s137 = smul.addr %s136, 8
          %s138 = scalar_lea.vmem %s0, %s137
          // Predicated region
          $region29: #{net_forward.6} parent=27 // pred_check
            _
          $region30: #{net_forward.6} parent=27 // pred_check_branch
            %140 = sbr.rel (0) target = $region32
          $region31: #{net_forward.6} parent=27 // pred_region
            // Predicated region
            $region33: #{net_forward.6} parent=31 // pred_check
              _
            $region34: #{net_forward.6} parent=31 // pred_check_branch
              %142 = sbr.rel (0) target = $region36
            $region35: #{net_forward.6} parent=31 // pred_region
              loop: start=0, step=1, limit=1
              $region37: #{net_forward.6} parent=35 // loop_pre_header
                _
              $region38: #{net_forward.6} parent=35 // loop_header
                %s144 = sphi 0, %s148
                %p145 = scmp.ge.s32.totalorder %s144, 1
                %s149 = sphi %s138, %s138
                %s150 = sphi %s134, %s134
              $region39: #{net_forward.6} parent=35 // loop_header_branch
                %147 = sbr.rel (%p145) target = $region43
              $region40: #{net_forward.6} parent=35 // loop_body
                %v151 = vld [vmem:[%s149] sm:$0xff]
                %152 = vst [vmem:[%s150] sm:$0xff] %v151
                %v153 = vld [vmem:[%s149 + $0x8] sm:$0xff]
                %154 = vst [vmem:[%s150 + $0x8] sm:$0xff] %v153
                %v155 = vld [vmem:[%s149 + $0x10] sm:$0xff]
                %156 = vst [vmem:[%s150 + $0x10] sm:$0xff] %v155
                %v157 = vld [vmem:[%s149 + $0x18] sm:$0xff]
                %158 = vst [vmem:[%s150 + $0x18] sm:$0xff] %v157
                %v159 = vld [vmem:[%s149 + $0x20] sm:$0xff]
                %160 = vst [vmem:[%s150 + $0x20] sm:$0xff] %v159
                %v161 = vld [vmem:[%s149 + $0x28] sm:$0xff]
                %162 = vst [vmem:[%s150 + $0x28] sm:$0xff] %v161
                %v163 = vld [vmem:[%s149 + $0x30] sm:$0xff]
                %164 = vst [vmem:[%s150 + $0x30] sm:$0xff] %v163
                %v165 = vld [vmem:[%s149 + $0x38] sm:$0xff]
                %166 = vst [vmem:[%s150 + $0x38] sm:$0xff] %v165
                %v167 = vld [vmem:[%s149 + $0x40] sm:$0xff]
                %168 = vst [vmem:[%s150 + $0x40] sm:$0xff] %v167
                %v169 = vld [vmem:[%s149 + $0x48] sm:$0xff]
                %170 = vst [vmem:[%s150 + $0x48] sm:$0xff] %v169
                %v171 = vld [vmem:[%s149 + $0x50] sm:$0xff]
                %172 = vst [vmem:[%s150 + $0x50] sm:$0xff] %v171
                %v173 = vld [vmem:[%s149 + $0x58] sm:$0xff]
                %174 = vst [vmem:[%s150 + $0x58] sm:$0xff] %v173
                %v175 = vld [vmem:[%s149 + $0x60] sm:$0xff]
                %176 = vst [vmem:[%s150 + $0x60] sm:$0xff] %v175
                %v177 = vld [vmem:[%s149 + $0x68] sm:$0xff]
                %178 = vst [vmem:[%s150 + $0x68] sm:$0xff] %v177
                %v179 = vld [vmem:[%s149 + $0xe0] sm:$0xff]
                %180 = vst [vmem:[%s150 + $0x70] sm:$0xff] %v179
                %v181 = vld [vmem:[%s149 + $0xe8] sm:$0xff]
                %182 = vst [vmem:[%s150 + $0x78] sm:$0xff] %v181
                %v183 = vld [vmem:[%s149 + $0xf0] sm:$0xff]
                %184 = vst [vmem:[%s150 + $0x80] sm:$0xff] %v183
                %v185 = vld [vmem:[%s149 + $0xf8] sm:$0xff]
                %186 = vst [vmem:[%s150 + $0x88] sm:$0xff] %v185
                %v187 = vld [vmem:[%s149 + $0x100] sm:$0xff]
                %188 = vst [vmem:[%s150 + $0x90] sm:$0xff] %v187
                %v189 = vld [vmem:[%s149 + $0x108] sm:$0xff]
                %190 = vst [vmem:[%s150 + $0x98] sm:$0xff] %v189
                %v191 = vld [vmem:[%s149 + $0x110] sm:$0xff]
                %192 = vst [vmem:[%s150 + $0xa0] sm:$0xff] %v191
                %v193 = vld [vmem:[%s149 + $0x118] sm:$0xff]
                %194 = vst [vmem:[%s150 + $0xa8] sm:$0xff] %v193
                %v195 = vld [vmem:[%s149 + $0x120] sm:$0xff]
                %196 = vst [vmem:[%s150 + $0xb0] sm:$0xff] %v195
                %v197 = vld [vmem:[%s149 + $0x128] sm:$0xff]
                %198 = vst [vmem:[%s150 + $0xb8] sm:$0xff] %v197
                %v199 = vld [vmem:[%s149 + $0x130] sm:$0xff]
                %200 = vst [vmem:[%s150 + $0xc0] sm:$0xff] %v199
                %v201 = vld [vmem:[%s149 + $0x138] sm:$0xff]
                %202 = vst [vmem:[%s150 + $0xc8] sm:$0xff] %v201
                %v203 = vld [vmem:[%s149 + $0x140] sm:$0xff]
                %204 = vst [vmem:[%s150 + $0xd0] sm:$0xff] %v203
                %v205 = vld [vmem:[%s149 + $0x148] sm:$0xff]
                %206 = vst [vmem:[%s150 + $0xd8] sm:$0xff] %v205
                %v207 = vld [vmem:[%s149 + $0x1c0] sm:$0xff]
                %208 = vst [vmem:[%s150 + $0xe0] sm:$0xff] %v207
                %v209 = vld [vmem:[%s149 + $0x1c8] sm:$0xff]
                %210 = vst [vmem:[%s150 + $0xe8] sm:$0xff] %v209
                %v211 = vld [vmem:[%s149 + $0x1d0] sm:$0xff]
                %212 = vst [vmem:[%s150 + $0xf0] sm:$0xff] %v211
                %v213 = vld [vmem:[%s149 + $0x1d8] sm:$0xff]
                %214 = vst [vmem:[%s150 + $0xf8] sm:$0xff] %v213
                %v215 = vld [vmem:[%s149 + $0x1e0] sm:$0xff]
                %216 = vst [vmem:[%s150 + $0x100] sm:$0xff] %v215
                %v217 = vld [vmem:[%s149 + $0x1e8] sm:$0xff]
                %218 = vst [vmem:[%s150 + $0x108] sm:$0xff] %v217
                %v219 = vld [vmem:[%s149 + $0x1f0] sm:$0xff]
                %220 = vst [vmem:[%s150 + $0x110] sm:$0xff] %v219
                %v221 = vld [vmem:[%s149 + $0x1f8] sm:$0xff]
                %222 = vst [vmem:[%s150 + $0x118] sm:$0xff] %v221
                %v223 = vld [vmem:[%s149 + $0x200] sm:$0xff]
                %224 = vst [vmem:[%s150 + $0x120] sm:$0xff] %v223
                %v225 = vld [vmem:[%s149 + $0x208] sm:$0xff]
                %226 = vst [vmem:[%s150 + $0x128] sm:$0xff] %v225
                %v227 = vld [vmem:[%s149 + $0x210] sm:$0xff]
                %228 = vst [vmem:[%s150 + $0x130] sm:$0xff] %v227
                %v229 = vld [vmem:[%s149 + $0x218] sm:$0xff]
                %230 = vst [vmem:[%s150 + $0x138] sm:$0xff] %v229
                %v231 = vld [vmem:[%s149 + $0x220] sm:$0xff]
                %232 = vst [vmem:[%s150 + $0x140] sm:$0xff] %v231
                %v233 = vld [vmem:[%s149 + $0x228] sm:$0xff]
                %234 = vst [vmem:[%s150 + $0x148] sm:$0xff] %v233
                %v235 = vld [vmem:[%s149 + $0x2a0] sm:$0xff]
                %236 = vst [vmem:[%s150 + $0x150] sm:$0xff] %v235
                %v237 = vld [vmem:[%s149 + $0x2a8] sm:$0xff]
                %238 = vst [vmem:[%s150 + $0x158] sm:$0xff] %v237
                %v239 = vld [vmem:[%s149 + $0x2b0] sm:$0xff]
                %240 = vst [vmem:[%s150 + $0x160] sm:$0xff] %v239
                %v241 = vld [vmem:[%s149 + $0x2b8] sm:$0xff]
                %242 = vst [vmem:[%s150 + $0x168] sm:$0xff] %v241
                %v243 = vld [vmem:[%s149 + $0x2c0] sm:$0xff]
                %244 = vst [vmem:[%s150 + $0x170] sm:$0xff] %v243
                %v245 = vld [vmem:[%s149 + $0x2c8] sm:$0xff]
                %246 = vst [vmem:[%s150 + $0x178] sm:$0xff] %v245
                %v247 = vld [vmem:[%s149 + $0x2d0] sm:$0xff]
                %248 = vst [vmem:[%s150 + $0x180] sm:$0xff] %v247
                %v249 = vld [vmem:[%s149 + $0x2d8] sm:$0xff]
                %250 = vst [vmem:[%s150 + $0x188] sm:$0xff] %v249
                %v251 = vld [vmem:[%s149 + $0x2e0] sm:$0xff]
                %252 = vst [vmem:[%s150 + $0x190] sm:$0xff] %v251
                %v253 = vld [vmem:[%s149 + $0x2e8] sm:$0xff]
                %254 = vst [vmem:[%s150 + $0x198] sm:$0xff] %v253
                %v255 = vld [vmem:[%s149 + $0x2f0] sm:$0xff]
                %256 = vst [vmem:[%s150 + $0x1a0] sm:$0xff] %v255
                %v257 = vld [vmem:[%s149 + $0x2f8] sm:$0xff]
                %258 = vst [vmem:[%s150 + $0x1a8] sm:$0xff] %v257
                %v259 = vld [vmem:[%s149 + $0x300] sm:$0xff]
                %260 = vst [vmem:[%s150 + $0x1b0] sm:$0xff] %v259
                %v261 = vld [vmem:[%s149 + $0x308] sm:$0xff]
                %262 = vst [vmem:[%s150 + $0x1b8] sm:$0xff] %v261
              $region41: #{net_forward.6} parent=35 // loop_footer
                %s148 = sadd.s32 1, %s144
              $region42: #{net_forward.6} parent=35 // loop_footer_branch
                %143 = sbr.rel target = $region38
              $region43: #{net_forward.6} parent=35 // loop_exit
                _
            $region36: #{net_forward.6} parent=31 // pred_fallthru
              _
            // Predicated region
            $region44: #{net_forward.6} parent=31 // pred_check
              _
            $region45: #{net_forward.6} parent=31 // pred_check_branch
              %264 = sbr.rel target = $region47
            $region46: #{net_forward.6} parent=31 // pred_region
              _
            $region47: #{net_forward.6} parent=31 // pred_fallthru
              _
          $region32: #{net_forward.6} parent=27 // pred_fallthru
            _
          %265 = vnop
        $region28: #{net_forward.6} parent=23 // pred_fallthru
          _
      $region24: #{net_forward.6} parent=5 // pred_fallthru
        _
      %p266 = scmp.le.s32.totalorder 1, %s9
      %p267 = scmp.lt.s32.totalorder %s9, 3
      %p268 = pnand %p266, %p267
      %p269 = pneg %p268
      // Predicated region
      $region48: #{net_forward.6} parent=5 // pred_check
        _
      $region49: #{net_forward.6} parent=5 // pred_check_branch
        %271 = sbr.rel (%p268) target = $region51
      $region50: #{net_forward.6} parent=5 // pred_region
        %s272 = ssub.s32 %s9, 1
        %s273 = sand.u32 %s22, 1
        %s274 = sand.u32 %s22, 1
        %s275 = smul.addr %s274, 448
        %s276 = scalar_lea.vmem [#allocation2], %s275
        // Predicated region
        $region52: #{net_forward.6} parent=50 // pred_check
          %p277 = pneg %p35
        $region53: #{net_forward.6} parent=50 // pred_check_branch
          %279 = sbr.rel (%p277) target = $region55
        $region54: #{net_forward.6} parent=50 // pred_region
          _
        $region55: #{net_forward.6} parent=50 // pred_fallthru
          _
        %s280 = sand.u32 %s22, 1
        %s281 = sand.u32 %s22, 1
        %s282 = smul.addr %s281, 448
        %s283 = scalar_lea.vmem [#allocation2], %s282
        %p284 = pneg %p35
        %p285 = pneg %p32
        %p286 = pneg %p56
        %p287 = pneg %p53
        %p288 = pneg %p77
        %p289 = pneg %p74
        %p290 = pneg %p103
        %p291 = pneg %p100
        %s292 = smul.u32 2, %s14
        %p293 = scmp.lt.s32.totalorder %s292, 3
        %s294 = scalar_select %p293, %s292, 3
        %s295 = smul.addr %s294, 8
        %s296 = scalar_lea.vmem %s3, %s295
        %s297 = smul.u32 2, %s14
        %s298 = smul.u32 2, %s14
        %p299 = scmp.lt.s32.totalorder %s298, 3
        %s300 = scalar_select %p299, %s298, 3
        %s301 = smul.addr %s300, 8
        %s302 = scalar_lea.vmem %s3, %s301
        %s303 = smul.u32 2, %s14
        %v304 = vld [vmem:[%s1] sm:$0xff]
        %v305 = vld [vmem:[%s1 + $0x8] sm:$0xff]
        %v306 = vld [vmem:[%s1 + $0x10] sm:$0xff]
        %v307 = vld [vmem:[%s1 + $0x18] sm:$0xff]
        %v308 = vld [vmem:[%s1 + $0x20] sm:$0xff]
        %v309 = vld [vmem:[%s1 + $0x28] sm:$0xff]
        %v310 = vld [vmem:[%s1 + $0x30] sm:$0xff]
        %v311 = vld [vmem:[%s1 + $0x38] sm:$0xff]
        %v312 = vld [vmem:[%s1 + $0x40] sm:$0xff]
        %v313 = vld [vmem:[%s1 + $0x48] sm:$0xff]
        %v314 = vld [vmem:[%s1 + $0x50] sm:$0xff]
        %v315 = vld [vmem:[%s1 + $0x58] sm:$0xff]
        %v316 = vld [vmem:[%s1 + $0x60] sm:$0xff]
        %v317 = vld [vmem:[%s1 + $0x68] sm:$0xff]
        %v318 = vld [vmem:[%s1 + $0x70] sm:$0xff]
        %v319 = vld [vmem:[%s1 + $0x78] sm:$0xff]
        %v320 = vld [vmem:[%s1 + $0x80] sm:$0xff]
        %v321 = vld [vmem:[%s1 + $0x88] sm:$0xff]
        %v322 = vld [vmem:[%s1 + $0x90] sm:$0xff]
        %v323 = vld [vmem:[%s1 + $0x98] sm:$0xff]
        %v324 = vld [vmem:[%s1 + $0xa0] sm:$0xff]
        %v325 = vld [vmem:[%s1 + $0xa8] sm:$0xff]
        %v326 = vld [vmem:[%s1 + $0xb0] sm:$0xff]
        %v327 = vld [vmem:[%s1 + $0xb8] sm:$0xff]
        %v328 = vld [vmem:[%s1 + $0xc0] sm:$0xff]
        %v329 = vld [vmem:[%s1 + $0xc8] sm:$0xff]
        %v330 = vld [vmem:[%s1 + $0xd0] sm:$0xff]
        %v331 = vld [vmem:[%s1 + $0xd8] sm:$0xff]
        %v332 = vld [vmem:[%s1 + $0xe0] sm:$0xff]
        %v333 = vld [vmem:[%s1 + $0xe8] sm:$0xff]
        %v334 = vld [vmem:[%s1 + $0xf0] sm:$0xff]
        %v335 = vld [vmem:[%s1 + $0xf8] sm:$0xff]
        %v336 = vld [vmem:[%s1 + $0x100] sm:$0xff]
        %v337 = vld [vmem:[%s1 + $0x108] sm:$0xff]
        %v338 = vld [vmem:[%s1 + $0x110] sm:$0xff]
        %v339 = vld [vmem:[%s1 + $0x118] sm:$0xff]
        %v340 = vld [vmem:[%s1 + $0x120] sm:$0xff]
        %v341 = vld [vmem:[%s1 + $0x128] sm:$0xff]
        %v342 = vld [vmem:[%s1 + $0x130] sm:$0xff]
        %v343 = vld [vmem:[%s1 + $0x138] sm:$0xff]
        %v344 = vld [vmem:[%s1 + $0x140] sm:$0xff]
        %v345 = vld [vmem:[%s1 + $0x148] sm:$0xff]
        %v346 = vld [vmem:[%s1 + $0x150] sm:$0xff]
        %v347 = vld [vmem:[%s1 + $0x158] sm:$0xff]
        %v348 = vld [vmem:[%s1 + $0x160] sm:$0xff]
        %v349 = vld [vmem:[%s1 + $0x168] sm:$0xff]
        %v350 = vld [vmem:[%s1 + $0x170] sm:$0xff]
        %v351 = vld [vmem:[%s1 + $0x178] sm:$0xff]
        %v352 = vld [vmem:[%s1 + $0x180] sm:$0xff]
        %v353 = vld [vmem:[%s1 + $0x188] sm:$0xff]
        %v354 = vld [vmem:[%s1 + $0x190] sm:$0xff]
        %v355 = vld [vmem:[%s1 + $0x198] sm:$0xff]
        %v356 = vld [vmem:[%s1 + $0x1a0] sm:$0xff]
        %v357 = vld [vmem:[%s1 + $0x1a8] sm:$0xff]
        %v358 = vld [vmem:[%s1 + $0x1b0] sm:$0xff]
        %v359 = vld [vmem:[%s1 + $0x1b8] sm:$0xff]
        %v360 = vld [vmem:[%s1 + $0x1c0] sm:$0xff]
        %v361 = vld [vmem:[%s1 + $0x1c8] sm:$0xff]
        %v362 = vld [vmem:[%s1 + $0x1d0] sm:$0xff]
        %v363 = vld [vmem:[%s1 + $0x1d8] sm:$0xff]
        %v364 = vld [vmem:[%s1 + $0x1e0] sm:$0xff]
        %v365 = vld [vmem:[%s1 + $0x1e8] sm:$0xff]
        %v366 = vld [vmem:[%s1 + $0x1f0] sm:$0xff]
        %v367 = vld [vmem:[%s1 + $0x1f8] sm:$0xff]
        %v368 = vld [vmem:[%s1 + $0x200] sm:$0xff]
        %v369 = vld [vmem:[%s1 + $0x208] sm:$0xff]
        %v370 = vld [vmem:[%s1 + $0x210] sm:$0xff]
        %v371 = vld [vmem:[%s1 + $0x218] sm:$0xff]
        %v372 = vld [vmem:[%s1 + $0x220] sm:$0xff]
        %v373 = vld [vmem:[%s1 + $0x228] sm:$0xff]
        %v374 = vld [vmem:[%s1 + $0x230] sm:$0xff]
        %v375 = vld [vmem:[%s1 + $0x238] sm:$0xff]
        %v376 = vld [vmem:[%s1 + $0x240] sm:$0xff]
        %v377 = vld [vmem:[%s1 + $0x248] sm:$0xff]
        %v378 = vld [vmem:[%s1 + $0x250] sm:$0xff]
        %v379 = vld [vmem:[%s1 + $0x258] sm:$0xff]
        %v380 = vld [vmem:[%s1 + $0x260] sm:$0xff]
        %v381 = vld [vmem:[%s1 + $0x268] sm:$0xff]
        %v382 = vld [vmem:[%s1 + $0x270] sm:$0xff]
        %v383 = vld [vmem:[%s1 + $0x278] sm:$0xff]
        %v384 = vld [vmem:[%s1 + $0x280] sm:$0xff]
        %v385 = vld [vmem:[%s1 + $0x288] sm:$0xff]
        %v386 = vld [vmem:[%s1 + $0x290] sm:$0xff]
        %v387 = vld [vmem:[%s1 + $0x298] sm:$0xff]
        %v388 = vld [vmem:[%s1 + $0x2a0] sm:$0xff]
        %v389 = vld [vmem:[%s1 + $0x2a8] sm:$0xff]
        %v390 = vld [vmem:[%s1 + $0x2b0] sm:$0xff]
        %v391 = vld [vmem:[%s1 + $0x2b8] sm:$0xff]
        %v392 = vld [vmem:[%s1 + $0x2c0] sm:$0xff]
        %v393 = vld [vmem:[%s1 + $0x2c8] sm:$0xff]
        %v394 = vld [vmem:[%s1 + $0x2d0] sm:$0xff]
        %v395 = vld [vmem:[%s1 + $0x2d8] sm:$0xff]
        %v396 = vld [vmem:[%s1 + $0x2e0] sm:$0xff]
        %v397 = vld [vmem:[%s1 + $0x2e8] sm:$0xff]
        %v398 = vld [vmem:[%s1 + $0x2f0] sm:$0xff]
        %v399 = vld [vmem:[%s1 + $0x2f8] sm:$0xff]
        %v400 = vld [vmem:[%s1 + $0x300] sm:$0xff]
        %v401 = vld [vmem:[%s1 + $0x308] sm:$0xff]
        %v402 = vld [vmem:[%s1 + $0x310] sm:$0xff]
        %v403 = vld [vmem:[%s1 + $0x318] sm:$0xff]
        %v404 = vld [vmem:[%s1 + $0x320] sm:$0xff]
        %v405 = vld [vmem:[%s1 + $0x328] sm:$0xff]
        %v406 = vld [vmem:[%s1 + $0x330] sm:$0xff]
        %v407 = vld [vmem:[%s1 + $0x338] sm:$0xff]
        %v408 = vld [vmem:[%s1 + $0x340] sm:$0xff]
        %v409 = vld [vmem:[%s1 + $0x348] sm:$0xff]
        %v410 = vld [vmem:[%s1 + $0x350] sm:$0xff]
        %v411 = vld [vmem:[%s1 + $0x358] sm:$0xff]
        %v412 = vld [vmem:[%s1 + $0x360] sm:$0xff]
        %v413 = vld [vmem:[%s1 + $0x368] sm:$0xff]
        %v414 = vld [vmem:[%s1 + $0x370] sm:$0xff]
        %v415 = vld [vmem:[%s1 + $0x378] sm:$0xff]
        %v416 = vld [vmem:[%s276] sm:$0xff]
        %v417 = vld [vmem:[%s276 + $0x8] sm:$0xff]
        %v418 = vld [vmem:[%s276 + $0x10] sm:$0xff]
        %v419 = vld [vmem:[%s276 + $0x18] sm:$0xff]
        %v420 = vld [vmem:[%s276 + $0x20] sm:$0xff]
        %v421 = vld [vmem:[%s276 + $0x28] sm:$0xff]
        %v422 = vld [vmem:[%s276 + $0x30] sm:$0xff]
        %v423 = vld [vmem:[%s276 + $0x38] sm:$0xff]
        %v424 = vld [vmem:[%s276 + $0x40] sm:$0xff]
        %v425 = vld [vmem:[%s276 + $0x48] sm:$0xff]
        %v426 = vld [vmem:[%s276 + $0x50] sm:$0xff]
        %v427 = vld [vmem:[%s276 + $0x58] sm:$0xff]
        %v428 = vld [vmem:[%s276 + $0x60] sm:$0xff]
        %v429 = vld [vmem:[%s276 + $0x68] sm:$0xff]
        %430 = vmatpush.msra.mxu0 %v319
        %431 = vmatpush.msra.mxu0 %v318
        %432 = vmatpush.msra.mxu0 %v317
        %433 = vmatpush.msra.mxu0 %v316
        %434 = vmatpush.msra.mxu0 %v315
        %435 = vmatpush.msra.mxu0 %v314
        %436 = vmatpush.msra.mxu0 %v313
        %437 = vmatpush.msra.mxu0 %v312
        %438 = vmatpush.msra.mxu0 %v311
        %439 = vmatpush.msra.mxu0 %v310
        %440 = vmatpush.msra.mxu0 %v309
        %441 = vmatpush.msra.mxu0 %v308
        %442 = vmatpush.msra.mxu0 %v307
        %443 = vmatpush.msra.mxu0 %v306
        %444 = vmatpush.msra.mxu0 %v305
        %445 = vmatpush.msra.mxu0 %v304
        %446 = vmatmul.f32.gmra.mxu0 %v416
        %v447 = vpop.f32.mrf.mxu0
        %v448 = vadd.f32 0.0, %v447
        %449 = vmatmul.f32.gmra.mxu0 %v423
        %v450 = vpop.f32.mrf.mxu0
        %v451 = vadd.f32 0.0, %v450
        %452 = vdwg.mxu0
        %453 = vmatpush.msra.mxu0 %v335
        %454 = vmatpush.msra.mxu0 %v334
        %455 = vmatpush.msra.mxu0 %v333
        %456 = vmatpush.msra.mxu0 %v332
        %457 = vmatpush.msra.mxu0 %v331
        %458 = vmatpush.msra.mxu0 %v330
        %459 = vmatpush.msra.mxu0 %v329
        %460 = vmatpush.msra.mxu0 %v328
        %461 = vmatpush.msra.mxu0 %v327
        %462 = vmatpush.msra.mxu0 %v326
        %463 = vmatpush.msra.mxu0 %v325
        %464 = vmatpush.msra.mxu0 %v324
        %465 = vmatpush.msra.mxu0 %v323
        %466 = vmatpush.msra.mxu0 %v322
        %467 = vmatpush.msra.mxu0 %v321
        %468 = vmatpush.msra.mxu0 %v320
        %469 = vmatmul.f32.gmra.mxu0 %v417
        %v470 = vpop.f32.mrf.mxu0
        %v471 = vadd.f32 %v448, %v470
        %472 = vmatmul.f32.gmra.mxu0 %v424
        %v473 = vpop.f32.mrf.mxu0
        %v474 = vadd.f32 %v451, %v473
        %475 = vdwg.mxu0
        %476 = vmatpush.msra.mxu0 %v351
        %477 = vmatpush.msra.mxu0 %v350
        %478 = vmatpush.msra.mxu0 %v349
        %479 = vmatpush.msra.mxu0 %v348
        %480 = vmatpush.msra.mxu0 %v347
        %481 = vmatpush.msra.mxu0 %v346
        %482 = vmatpush.msra.mxu0 %v345
        %483 = vmatpush.msra.mxu0 %v344
        %484 = vmatpush.msra.mxu0 %v343
        %485 = vmatpush.msra.mxu0 %v342
        %486 = vmatpush.msra.mxu0 %v341
        %487 = vmatpush.msra.mxu0 %v340
        %488 = vmatpush.msra.mxu0 %v339
        %489 = vmatpush.msra.mxu0 %v338
        %490 = vmatpush.msra.mxu0 %v337
        %491 = vmatpush.msra.mxu0 %v336
        %492 = vmatmul.f32.gmra.mxu0 %v418
        %v493 = vpop.f32.mrf.mxu0
        %v494 = vadd.f32 %v471, %v493
        %495 = vmatmul.f32.gmra.mxu0 %v425
        %v496 = vpop.f32.mrf.mxu0
        %v497 = vadd.f32 %v474, %v496
        %498 = vdwg.mxu0
        %499 = vmatpush.msra.mxu0 %v367
        %500 = vmatpush.msra.mxu0 %v366
        %501 = vmatpush.msra.mxu0 %v365
        %502 = vmatpush.msra.mxu0 %v364
        %503 = vmatpush.msra.mxu0 %v363
        %504 = vmatpush.msra.mxu0 %v362
        %505 = vmatpush.msra.mxu0 %v361
        %506 = vmatpush.msra.mxu0 %v360
        %507 = vmatpush.msra.mxu0 %v359
        %508 = vmatpush.msra.mxu0 %v358
        %509 = vmatpush.msra.mxu0 %v357
        %510 = vmatpush.msra.mxu0 %v356
        %511 = vmatpush.msra.mxu0 %v355
        %512 = vmatpush.msra.mxu0 %v354
        %513 = vmatpush.msra.mxu0 %v353
        %514 = vmatpush.msra.mxu0 %v352
        %515 = vmatmul.f32.gmra.mxu0 %v419
        %v516 = vpop.f32.mrf.mxu0
        %v517 = vadd.f32 %v494, %v516
        %518 = vmatmul.f32.gmra.mxu0 %v426
        %v519 = vpop.f32.mrf.mxu0
        %v520 = vadd.f32 %v497, %v519
        %521 = vdwg.mxu0
        %522 = vmatpush.msra.mxu0 %v383
        %523 = vmatpush.msra.mxu0 %v382
        %524 = vmatpush.msra.mxu0 %v381
        %525 = vmatpush.msra.mxu0 %v380
        %526 = vmatpush.msra.mxu0 %v379
        %527 = vmatpush.msra.mxu0 %v378
        %528 = vmatpush.msra.mxu0 %v377
        %529 = vmatpush.msra.mxu0 %v376
        %530 = vmatpush.msra.mxu0 %v375
        %531 = vmatpush.msra.mxu0 %v374
        %532 = vmatpush.msra.mxu0 %v373
        %533 = vmatpush.msra.mxu0 %v372
        %534 = vmatpush.msra.mxu0 %v371
        %535 = vmatpush.msra.mxu0 %v370
        %536 = vmatpush.msra.mxu0 %v369
        %537 = vmatpush.msra.mxu0 %v368
        %538 = vmatmul.f32.gmra.mxu0 %v420
        %v539 = vpop.f32.mrf.mxu0
        %v540 = vadd.f32 %v517, %v539
        %541 = vmatmul.f32.gmra.mxu0 %v427
        %v542 = vpop.f32.mrf.mxu0
        %v543 = vadd.f32 %v520, %v542
        %544 = vdwg.mxu0
        %545 = vmatpush.msra.mxu0 %v399
        %546 = vmatpush.msra.mxu0 %v398
        %547 = vmatpush.msra.mxu0 %v397
        %548 = vmatpush.msra.mxu0 %v396
        %549 = vmatpush.msra.mxu0 %v395
        %550 = vmatpush.msra.mxu0 %v394
        %551 = vmatpush.msra.mxu0 %v393
        %552 = vmatpush.msra.mxu0 %v392
        %553 = vmatpush.msra.mxu0 %v391
        %554 = vmatpush.msra.mxu0 %v390
        %555 = vmatpush.msra.mxu0 %v389
        %556 = vmatpush.msra.mxu0 %v388
        %557 = vmatpush.msra.mxu0 %v387
        %558 = vmatpush.msra.mxu0 %v386
        %559 = vmatpush.msra.mxu0 %v385
        %560 = vmatpush.msra.mxu0 %v384
        %561 = vmatmul.f32.gmra.mxu0 %v421
        %v562 = vpop.f32.mrf.mxu0
        %v563 = vadd.f32 %v540, %v562
        %564 = vmatmul.f32.gmra.mxu0 %v428
        %v565 = vpop.f32.mrf.mxu0
        %v566 = vadd.f32 %v543, %v565
        %567 = vdwg.mxu0
        %568 = vmatpush.msra.mxu0 %v415
        %569 = vmatpush.msra.mxu0 %v414
        %570 = vmatpush.msra.mxu0 %v413
        %571 = vmatpush.msra.mxu0 %v412
        %572 = vmatpush.msra.mxu0 %v411
        %573 = vmatpush.msra.mxu0 %v410
        %574 = vmatpush.msra.mxu0 %v409
        %575 = vmatpush.msra.mxu0 %v408
        %576 = vmatpush.msra.mxu0 %v407
        %577 = vmatpush.msra.mxu0 %v406
        %578 = vmatpush.msra.mxu0 %v405
        %579 = vmatpush.msra.mxu0 %v404
        %580 = vmatpush.msra.mxu0 %v403
        %581 = vmatpush.msra.mxu0 %v402
        %582 = vmatpush.msra.mxu0 %v401
        %583 = vmatpush.msra.mxu0 %v400
        %584 = vmatmul.f32.gmra.mxu0 %v422
        %v585 = vpop.f32.mrf.mxu0
        %v586 = vadd.f32 %v563, %v585
        %587 = vmatmul.f32.gmra.mxu0 %v429
        %v588 = vpop.f32.mrf.mxu0
        %v589 = vadd.f32 %v566, %v588
        %590 = vdwg.mxu0
        %s591 = scalar_lea.vmem %s276, 112 [#allocation2]
        %v592 = vld [vmem:[%s591] sm:$0xff]
        %v593 = vld [vmem:[%s591 + $0x8] sm:$0xff]
        %v594 = vld [vmem:[%s591 + $0x10] sm:$0xff]
        %v595 = vld [vmem:[%s591 + $0x18] sm:$0xff]
        %v596 = vld [vmem:[%s591 + $0x20] sm:$0xff]
        %v597 = vld [vmem:[%s591 + $0x28] sm:$0xff]
        %v598 = vld [vmem:[%s591 + $0x30] sm:$0xff]
        %v599 = vld [vmem:[%s591 + $0x38] sm:$0xff]
        %v600 = vld [vmem:[%s591 + $0x40] sm:$0xff]
        %v601 = vld [vmem:[%s591 + $0x48] sm:$0xff]
        %v602 = vld [vmem:[%s591 + $0x50] sm:$0xff]
        %v603 = vld [vmem:[%s591 + $0x58] sm:$0xff]
        %v604 = vld [vmem:[%s591 + $0x60] sm:$0xff]
        %v605 = vld [vmem:[%s591 + $0x68] sm:$0xff]
        %606 = vmatpush.msra.mxu0 %v319
        %607 = vmatpush.msra.mxu0 %v318
        %608 = vmatpush.msra.mxu0 %v317
        %609 = vmatpush.msra.mxu0 %v316
        %610 = vmatpush.msra.mxu0 %v315
        %611 = vmatpush.msra.mxu0 %v314
        %612 = vmatpush.msra.mxu0 %v313
        %613 = vmatpush.msra.mxu0 %v312
        %614 = vmatpush.msra.mxu0 %v311
        %615 = vmatpush.msra.mxu0 %v310
        %616 = vmatpush.msra.mxu0 %v309
        %617 = vmatpush.msra.mxu0 %v308
        %618 = vmatpush.msra.mxu0 %v307
        %619 = vmatpush.msra.mxu0 %v306
        %620 = vmatpush.msra.mxu0 %v305
        %621 = vmatpush.msra.mxu0 %v304
        %622 = vmatmul.f32.gmra.mxu0 %v592
        %v623 = vpop.f32.mrf.mxu0
        %v624 = vadd.f32 0.0, %v623
        %625 = vmatmul.f32.gmra.mxu0 %v599
        %v626 = vpop.f32.mrf.mxu0
        %v627 = vadd.f32 0.0, %v626
        %628 = vdwg.mxu0
        %629 = vmatpush.msra.mxu0 %v335
        %630 = vmatpush.msra.mxu0 %v334
        %631 = vmatpush.msra.mxu0 %v333
        %632 = vmatpush.msra.mxu0 %v332
        %633 = vmatpush.msra.mxu0 %v331
        %634 = vmatpush.msra.mxu0 %v330
        %635 = vmatpush.msra.mxu0 %v329
        %636 = vmatpush.msra.mxu0 %v328
        %637 = vmatpush.msra.mxu0 %v327
        %638 = vmatpush.msra.mxu0 %v326
        %639 = vmatpush.msra.mxu0 %v325
        %640 = vmatpush.msra.mxu0 %v324
        %641 = vmatpush.msra.mxu0 %v323
        %642 = vmatpush.msra.mxu0 %v322
        %643 = vmatpush.msra.mxu0 %v321
        %644 = vmatpush.msra.mxu0 %v320
        %645 = vmatmul.f32.gmra.mxu0 %v593
        %v646 = vpop.f32.mrf.mxu0
        %v647 = vadd.f32 %v624, %v646
        %648 = vmatmul.f32.gmra.mxu0 %v600
        %v649 = vpop.f32.mrf.mxu0
        %v650 = vadd.f32 %v627, %v649
        %651 = vdwg.mxu0
        %652 = vmatpush.msra.mxu0 %v351
        %653 = vmatpush.msra.mxu0 %v350
        %654 = vmatpush.msra.mxu0 %v349
        %655 = vmatpush.msra.mxu0 %v348
        %656 = vmatpush.msra.mxu0 %v347
        %657 = vmatpush.msra.mxu0 %v346
        %658 = vmatpush.msra.mxu0 %v345
        %659 = vmatpush.msra.mxu0 %v344
        %660 = vmatpush.msra.mxu0 %v343
        %661 = vmatpush.msra.mxu0 %v342
        %662 = vmatpush.msra.mxu0 %v341
        %663 = vmatpush.msra.mxu0 %v340
        %664 = vmatpush.msra.mxu0 %v339
        %665 = vmatpush.msra.mxu0 %v338
        %666 = vmatpush.msra.mxu0 %v337
        %667 = vmatpush.msra.mxu0 %v336
        %668 = vmatmul.f32.gmra.mxu0 %v594
        %v669 = vpop.f32.mrf.mxu0
        %v670 = vadd.f32 %v647, %v669
        %671 = vmatmul.f32.gmra.mxu0 %v601
        %v672 = vpop.f32.mrf.mxu0
        %v673 = vadd.f32 %v650, %v672
        %674 = vdwg.mxu0
        %675 = vmatpush.msra.mxu0 %v367
        %676 = vmatpush.msra.mxu0 %v366
        %677 = vmatpush.msra.mxu0 %v365
        %678 = vmatpush.msra.mxu0 %v364
        %679 = vmatpush.msra.mxu0 %v363
        %680 = vmatpush.msra.mxu0 %v362
        %681 = vmatpush.msra.mxu0 %v361
        %682 = vmatpush.msra.mxu0 %v360
        %683 = vmatpush.msra.mxu0 %v359
        %684 = vmatpush.msra.mxu0 %v358
        %685 = vmatpush.msra.mxu0 %v357
        %686 = vmatpush.msra.mxu0 %v356
        %687 = vmatpush.msra.mxu0 %v355
        %688 = vmatpush.msra.mxu0 %v354
        %689 = vmatpush.msra.mxu0 %v353
        %690 = vmatpush.msra.mxu0 %v352
        %691 = vmatmul.f32.gmra.mxu0 %v595
        %v692 = vpop.f32.mrf.mxu0
        %v693 = vadd.f32 %v670, %v692
        %694 = vmatmul.f32.gmra.mxu0 %v602
        %v695 = vpop.f32.mrf.mxu0
        %v696 = vadd.f32 %v673, %v695
        %697 = vdwg.mxu0
        %698 = vmatpush.msra.mxu0 %v383
        %699 = vmatpush.msra.mxu0 %v382
        %700 = vmatpush.msra.mxu0 %v381
        %701 = vmatpush.msra.mxu0 %v380
        %702 = vmatpush.msra.mxu0 %v379
        %703 = vmatpush.msra.mxu0 %v378
        %704 = vmatpush.msra.mxu0 %v377
        %705 = vmatpush.msra.mxu0 %v376
        %706 = vmatpush.msra.mxu0 %v375
        %707 = vmatpush.msra.mxu0 %v374
        %708 = vmatpush.msra.mxu0 %v373
        %709 = vmatpush.msra.mxu0 %v372
        %710 = vmatpush.msra.mxu0 %v371
        %711 = vmatpush.msra.mxu0 %v370
        %712 = vmatpush.msra.mxu0 %v369
        %713 = vmatpush.msra.mxu0 %v368
        %714 = vmatmul.f32.gmra.mxu0 %v596
        %v715 = vpop.f32.mrf.mxu0
        %v716 = vadd.f32 %v693, %v715
        %717 = vmatmul.f32.gmra.mxu0 %v603
        %v718 = vpop.f32.mrf.mxu0
        %v719 = vadd.f32 %v696, %v718
        %720 = vdwg.mxu0
        %721 = vmatpush.msra.mxu0 %v399
        %722 = vmatpush.msra.mxu0 %v398
        %723 = vmatpush.msra.mxu0 %v397
        %724 = vmatpush.msra.mxu0 %v396
        %725 = vmatpush.msra.mxu0 %v395
        %726 = vmatpush.msra.mxu0 %v394
        %727 = vmatpush.msra.mxu0 %v393
        %728 = vmatpush.msra.mxu0 %v392
        %729 = vmatpush.msra.mxu0 %v391
        %730 = vmatpush.msra.mxu0 %v390
        %731 = vmatpush.msra.mxu0 %v389
        %732 = vmatpush.msra.mxu0 %v388
        %733 = vmatpush.msra.mxu0 %v387
        %734 = vmatpush.msra.mxu0 %v386
        %735 = vmatpush.msra.mxu0 %v385
        %736 = vmatpush.msra.mxu0 %v384
        %737 = vmatmul.f32.gmra.mxu0 %v597
        %v738 = vpop.f32.mrf.mxu0
        %v739 = vadd.f32 %v716, %v738
        %740 = vmatmul.f32.gmra.mxu0 %v604
        %v741 = vpop.f32.mrf.mxu0
        %v742 = vadd.f32 %v719, %v741
        %743 = vdwg.mxu0
        %744 = vmatpush.msra.mxu0 %v415
        %745 = vmatpush.msra.mxu0 %v414
        %746 = vmatpush.msra.mxu0 %v413
        %747 = vmatpush.msra.mxu0 %v412
        %748 = vmatpush.msra.mxu0 %v411
        %749 = vmatpush.msra.mxu0 %v410
        %750 = vmatpush.msra.mxu0 %v409
        %751 = vmatpush.msra.mxu0 %v408
        %752 = vmatpush.msra.mxu0 %v407
        %753 = vmatpush.msra.mxu0 %v406
        %754 = vmatpush.msra.mxu0 %v405
        %755 = vmatpush.msra.mxu0 %v404
        %756 = vmatpush.msra.mxu0 %v403
        %757 = vmatpush.msra.mxu0 %v402
        %758 = vmatpush.msra.mxu0 %v401
        %759 = vmatpush.msra.mxu0 %v400
        %760 = vmatmul.f32.gmra.mxu0 %v598
        %v761 = vpop.f32.mrf.mxu0
        %v762 = vadd.f32 %v739, %v761
        %763 = vmatmul.f32.gmra.mxu0 %v605
        %v764 = vpop.f32.mrf.mxu0
        %v765 = vadd.f32 %v742, %v764
        %766 = vdwg.mxu0
        %s767 = scalar_lea.vmem %s276, 224 [#allocation2]
        %v768 = vld [vmem:[%s767] sm:$0xff]
        %v769 = vld [vmem:[%s767 + $0x8] sm:$0xff]
        %v770 = vld [vmem:[%s767 + $0x10] sm:$0xff]
        %v771 = vld [vmem:[%s767 + $0x18] sm:$0xff]
        %v772 = vld [vmem:[%s767 + $0x20] sm:$0xff]
        %v773 = vld [vmem:[%s767 + $0x28] sm:$0xff]
        %v774 = vld [vmem:[%s767 + $0x30] sm:$0xff]
        %v775 = vld [vmem:[%s767 + $0x38] sm:$0xff]
        %v776 = vld [vmem:[%s767 + $0x40] sm:$0xff]
        %v777 = vld [vmem:[%s767 + $0x48] sm:$0xff]
        %v778 = vld [vmem:[%s767 + $0x50] sm:$0xff]
        %v779 = vld [vmem:[%s767 + $0x58] sm:$0xff]
        %v780 = vld [vmem:[%s767 + $0x60] sm:$0xff]
        %v781 = vld [vmem:[%s767 + $0x68] sm:$0xff]
        %782 = vmatpush.msra.mxu0 %v319
        %783 = vmatpush.msra.mxu0 %v318
        %784 = vmatpush.msra.mxu0 %v317
        %785 = vmatpush.msra.mxu0 %v316
        %786 = vmatpush.msra.mxu0 %v315
        %787 = vmatpush.msra.mxu0 %v314
        %788 = vmatpush.msra.mxu0 %v313
        %789 = vmatpush.msra.mxu0 %v312
        %790 = vmatpush.msra.mxu0 %v311
        %791 = vmatpush.msra.mxu0 %v310
        %792 = vmatpush.msra.mxu0 %v309
        %793 = vmatpush.msra.mxu0 %v308
        %794 = vmatpush.msra.mxu0 %v307
        %795 = vmatpush.msra.mxu0 %v306
        %796 = vmatpush.msra.mxu0 %v305
        %797 = vmatpush.msra.mxu0 %v304
        %798 = vmatmul.f32.gmra.mxu0 %v768
        %v799 = vpop.f32.mrf.mxu0
        %v800 = vadd.f32 0.0, %v799
        %801 = vmatmul.f32.gmra.mxu0 %v775
        %v802 = vpop.f32.mrf.mxu0
        %v803 = vadd.f32 0.0, %v802
        %804 = vdwg.mxu0
        %805 = vmatpush.msra.mxu0 %v335
        %806 = vmatpush.msra.mxu0 %v334
        %807 = vmatpush.msra.mxu0 %v333
        %808 = vmatpush.msra.mxu0 %v332
        %809 = vmatpush.msra.mxu0 %v331
        %810 = vmatpush.msra.mxu0 %v330
        %811 = vmatpush.msra.mxu0 %v329
        %812 = vmatpush.msra.mxu0 %v328
        %813 = vmatpush.msra.mxu0 %v327
        %814 = vmatpush.msra.mxu0 %v326
        %815 = vmatpush.msra.mxu0 %v325
        %816 = vmatpush.msra.mxu0 %v324
        %817 = vmatpush.msra.mxu0 %v323
        %818 = vmatpush.msra.mxu0 %v322
        %819 = vmatpush.msra.mxu0 %v321
        %820 = vmatpush.msra.mxu0 %v320
        %821 = vmatmul.f32.gmra.mxu0 %v769
        %v822 = vpop.f32.mrf.mxu0
        %v823 = vadd.f32 %v800, %v822
        %824 = vmatmul.f32.gmra.mxu0 %v776
        %v825 = vpop.f32.mrf.mxu0
        %v826 = vadd.f32 %v803, %v825
        %827 = vdwg.mxu0
        %828 = vmatpush.msra.mxu0 %v351
        %829 = vmatpush.msra.mxu0 %v350
        %830 = vmatpush.msra.mxu0 %v349
        %831 = vmatpush.msra.mxu0 %v348
        %832 = vmatpush.msra.mxu0 %v347
        %833 = vmatpush.msra.mxu0 %v346
        %834 = vmatpush.msra.mxu0 %v345
        %835 = vmatpush.msra.mxu0 %v344
        %836 = vmatpush.msra.mxu0 %v343
        %837 = vmatpush.msra.mxu0 %v342
        %838 = vmatpush.msra.mxu0 %v341
        %839 = vmatpush.msra.mxu0 %v340
        %840 = vmatpush.msra.mxu0 %v339
        %841 = vmatpush.msra.mxu0 %v338
        %842 = vmatpush.msra.mxu0 %v337
        %843 = vmatpush.msra.mxu0 %v336
        %844 = vmatmul.f32.gmra.mxu0 %v770
        %v845 = vpop.f32.mrf.mxu0
        %v846 = vadd.f32 %v823, %v845
        %847 = vmatmul.f32.gmra.mxu0 %v777
        %v848 = vpop.f32.mrf.mxu0
        %v849 = vadd.f32 %v826, %v848
        %850 = vdwg.mxu0
        %851 = vmatpush.msra.mxu0 %v367
        %852 = vmatpush.msra.mxu0 %v366
        %853 = vmatpush.msra.mxu0 %v365
        %854 = vmatpush.msra.mxu0 %v364
        %855 = vmatpush.msra.mxu0 %v363
        %856 = vmatpush.msra.mxu0 %v362
        %857 = vmatpush.msra.mxu0 %v361
        %858 = vmatpush.msra.mxu0 %v360
        %859 = vmatpush.msra.mxu0 %v359
        %860 = vmatpush.msra.mxu0 %v358
        %861 = vmatpush.msra.mxu0 %v357
        %862 = vmatpush.msra.mxu0 %v356
        %863 = vmatpush.msra.mxu0 %v355
        %864 = vmatpush.msra.mxu0 %v354
        %865 = vmatpush.msra.mxu0 %v353
        %866 = vmatpush.msra.mxu0 %v352
        %867 = vmatmul.f32.gmra.mxu0 %v771
        %v868 = vpop.f32.mrf.mxu0
        %v869 = vadd.f32 %v846, %v868
        %870 = vmatmul.f32.gmra.mxu0 %v778
        %v871 = vpop.f32.mrf.mxu0
        %v872 = vadd.f32 %v849, %v871
        %873 = vdwg.mxu0
        %874 = vmatpush.msra.mxu0 %v383
        %875 = vmatpush.msra.mxu0 %v382
        %876 = vmatpush.msra.mxu0 %v381
        %877 = vmatpush.msra.mxu0 %v380
        %878 = vmatpush.msra.mxu0 %v379
        %879 = vmatpush.msra.mxu0 %v378
        %880 = vmatpush.msra.mxu0 %v377
        %881 = vmatpush.msra.mxu0 %v376
        %882 = vmatpush.msra.mxu0 %v375
        %883 = vmatpush.msra.mxu0 %v374
        %884 = vmatpush.msra.mxu0 %v373
        %885 = vmatpush.msra.mxu0 %v372
        %886 = vmatpush.msra.mxu0 %v371
        %887 = vmatpush.msra.mxu0 %v370
        %888 = vmatpush.msra.mxu0 %v369
        %889 = vmatpush.msra.mxu0 %v368
        %890 = vmatmul.f32.gmra.mxu0 %v772
        %v891 = vpop.f32.mrf.mxu0
        %v892 = vadd.f32 %v869, %v891
        %893 = vmatmul.f32.gmra.mxu0 %v779
        %v894 = vpop.f32.mrf.mxu0
        %v895 = vadd.f32 %v872, %v894
        %896 = vdwg.mxu0
        %897 = vmatpush.msra.mxu0 %v399
        %898 = vmatpush.msra.mxu0 %v398
        %899 = vmatpush.msra.mxu0 %v397
        %900 = vmatpush.msra.mxu0 %v396
        %901 = vmatpush.msra.mxu0 %v395
        %902 = vmatpush.msra.mxu0 %v394
        %903 = vmatpush.msra.mxu0 %v393
        %904 = vmatpush.msra.mxu0 %v392
        %905 = vmatpush.msra.mxu0 %v391
        %906 = vmatpush.msra.mxu0 %v390
        %907 = vmatpush.msra.mxu0 %v389
        %908 = vmatpush.msra.mxu0 %v388
        %909 = vmatpush.msra.mxu0 %v387
        %910 = vmatpush.msra.mxu0 %v386
        %911 = vmatpush.msra.mxu0 %v385
        %912 = vmatpush.msra.mxu0 %v384
        %913 = vmatmul.f32.gmra.mxu0 %v773
        %v914 = vpop.f32.mrf.mxu0
        %v915 = vadd.f32 %v892, %v914
        %916 = vmatmul.f32.gmra.mxu0 %v780
        %v917 = vpop.f32.mrf.mxu0
        %v918 = vadd.f32 %v895, %v917
        %919 = vdwg.mxu0
        %920 = vmatpush.msra.mxu0 %v415
        %921 = vmatpush.msra.mxu0 %v414
        %922 = vmatpush.msra.mxu0 %v413
        %923 = vmatpush.msra.mxu0 %v412
        %924 = vmatpush.msra.mxu0 %v411
        %925 = vmatpush.msra.mxu0 %v410
        %926 = vmatpush.msra.mxu0 %v409
        %927 = vmatpush.msra.mxu0 %v408
        %928 = vmatpush.msra.mxu0 %v407
        %929 = vmatpush.msra.mxu0 %v406
        %930 = vmatpush.msra.mxu0 %v405
        %931 = vmatpush.msra.mxu0 %v404
        %932 = vmatpush.msra.mxu0 %v403
        %933 = vmatpush.msra.mxu0 %v402
        %934 = vmatpush.msra.mxu0 %v401
        %935 = vmatpush.msra.mxu0 %v400
        %936 = vmatmul.f32.gmra.mxu0 %v774
        %v937 = vpop.f32.mrf.mxu0
        %v938 = vadd.f32 %v915, %v937
        %939 = vmatmul.f32.gmra.mxu0 %v781
        %v940 = vpop.f32.mrf.mxu0
        %v941 = vadd.f32 %v918, %v940
        %942 = vdwg.mxu0
        %s943 = scalar_lea.vmem %s276, 336 [#allocation2]
        %v944 = vld [vmem:[%s943] sm:$0xff]
        %v945 = vld [vmem:[%s943 + $0x8] sm:$0xff]
        %v946 = vld [vmem:[%s943 + $0x10] sm:$0xff]
        %v947 = vld [vmem:[%s943 + $0x18] sm:$0xff]
        %v948 = vld [vmem:[%s943 + $0x20] sm:$0xff]
        %v949 = vld [vmem:[%s943 + $0x28] sm:$0xff]
        %v950 = vld [vmem:[%s943 + $0x30] sm:$0xff]
        %v951 = vld [vmem:[%s943 + $0x38] sm:$0xff]
        %v952 = vld [vmem:[%s943 + $0x40] sm:$0xff]
        %v953 = vld [vmem:[%s943 + $0x48] sm:$0xff]
        %v954 = vld [vmem:[%s943 + $0x50] sm:$0xff]
        %v955 = vld [vmem:[%s943 + $0x58] sm:$0xff]
        %v956 = vld [vmem:[%s943 + $0x60] sm:$0xff]
        %v957 = vld [vmem:[%s943 + $0x68] sm:$0xff]
        %958 = vmatpush.msra.mxu0 %v319
        %959 = vmatpush.msra.mxu0 %v318
        %960 = vmatpush.msra.mxu0 %v317
        %961 = vmatpush.msra.mxu0 %v316
        %962 = vmatpush.msra.mxu0 %v315
        %963 = vmatpush.msra.mxu0 %v314
        %964 = vmatpush.msra.mxu0 %v313
        %965 = vmatpush.msra.mxu0 %v312
        %966 = vmatpush.msra.mxu0 %v311
        %967 = vmatpush.msra.mxu0 %v310
        %968 = vmatpush.msra.mxu0 %v309
        %969 = vmatpush.msra.mxu0 %v308
        %970 = vmatpush.msra.mxu0 %v307
        %971 = vmatpush.msra.mxu0 %v306
        %972 = vmatpush.msra.mxu0 %v305
        %973 = vmatpush.msra.mxu0 %v304
        %974 = vmatmul.f32.gmra.mxu0 %v944
        %v975 = vpop.f32.mrf.mxu0
        %v976 = vadd.f32 0.0, %v975
        %977 = vmatmul.f32.gmra.mxu0 %v951
        %v978 = vpop.f32.mrf.mxu0
        %v979 = vadd.f32 0.0, %v978
        %980 = vdwg.mxu0
        %981 = vmatpush.msra.mxu0 %v335
        %982 = vmatpush.msra.mxu0 %v334
        %983 = vmatpush.msra.mxu0 %v333
        %984 = vmatpush.msra.mxu0 %v332
        %985 = vmatpush.msra.mxu0 %v331
        %986 = vmatpush.msra.mxu0 %v330
        %987 = vmatpush.msra.mxu0 %v329
        %988 = vmatpush.msra.mxu0 %v328
        %989 = vmatpush.msra.mxu0 %v327
        %990 = vmatpush.msra.mxu0 %v326
        %991 = vmatpush.msra.mxu0 %v325
        %992 = vmatpush.msra.mxu0 %v324
        %993 = vmatpush.msra.mxu0 %v323
        %994 = vmatpush.msra.mxu0 %v322
        %995 = vmatpush.msra.mxu0 %v321
        %996 = vmatpush.msra.mxu0 %v320
        %997 = vmatmul.f32.gmra.mxu0 %v945
        %v998 = vpop.f32.mrf.mxu0
        %v999 = vadd.f32 %v976, %v998
        %1000 = vmatmul.f32.gmra.mxu0 %v952
        %v1001 = vpop.f32.mrf.mxu0
        %v1002 = vadd.f32 %v979, %v1001
        %1003 = vdwg.mxu0
        %1004 = vmatpush.msra.mxu0 %v351
        %1005 = vmatpush.msra.mxu0 %v350
        %1006 = vmatpush.msra.mxu0 %v349
        %1007 = vmatpush.msra.mxu0 %v348
        %1008 = vmatpush.msra.mxu0 %v347
        %1009 = vmatpush.msra.mxu0 %v346
        %1010 = vmatpush.msra.mxu0 %v345
        %1011 = vmatpush.msra.mxu0 %v344
        %1012 = vmatpush.msra.mxu0 %v343
        %1013 = vmatpush.msra.mxu0 %v342
        %1014 = vmatpush.msra.mxu0 %v341
        %1015 = vmatpush.msra.mxu0 %v340
        %1016 = vmatpush.msra.mxu0 %v339
        %1017 = vmatpush.msra.mxu0 %v338
        %1018 = vmatpush.msra.mxu0 %v337
        %1019 = vmatpush.msra.mxu0 %v336
        %1020 = vmatmul.f32.gmra.mxu0 %v946
        %v1021 = vpop.f32.mrf.mxu0
        %v1022 = vadd.f32 %v999, %v1021
        %1023 = vmatmul.f32.gmra.mxu0 %v953
        %v1024 = vpop.f32.mrf.mxu0
        %v1025 = vadd.f32 %v1002, %v1024
        %1026 = vdwg.mxu0
        %1027 = vmatpush.msra.mxu0 %v367
        %1028 = vmatpush.msra.mxu0 %v366
        %1029 = vmatpush.msra.mxu0 %v365
        %1030 = vmatpush.msra.mxu0 %v364
        %1031 = vmatpush.msra.mxu0 %v363
        %1032 = vmatpush.msra.mxu0 %v362
        %1033 = vmatpush.msra.mxu0 %v361
        %1034 = vmatpush.msra.mxu0 %v360
        %1035 = vmatpush.msra.mxu0 %v359
        %1036 = vmatpush.msra.mxu0 %v358
        %1037 = vmatpush.msra.mxu0 %v357
        %1038 = vmatpush.msra.mxu0 %v356
        %1039 = vmatpush.msra.mxu0 %v355
        %1040 = vmatpush.msra.mxu0 %v354
        %1041 = vmatpush.msra.mxu0 %v353
        %1042 = vmatpush.msra.mxu0 %v352
        %1043 = vmatmul.f32.gmra.mxu0 %v947
        %v1044 = vpop.f32.mrf.mxu0
        %v1045 = vadd.f32 %v1022, %v1044
        %1046 = vmatmul.f32.gmra.mxu0 %v954
        %v1047 = vpop.f32.mrf.mxu0
        %v1048 = vadd.f32 %v1025, %v1047
        %1049 = vdwg.mxu0
        %1050 = vmatpush.msra.mxu0 %v383
        %1051 = vmatpush.msra.mxu0 %v382
        %1052 = vmatpush.msra.mxu0 %v381
        %1053 = vmatpush.msra.mxu0 %v380
        %1054 = vmatpush.msra.mxu0 %v379
        %1055 = vmatpush.msra.mxu0 %v378
        %1056 = vmatpush.msra.mxu0 %v377
        %1057 = vmatpush.msra.mxu0 %v376
        %1058 = vmatpush.msra.mxu0 %v375
        %1059 = vmatpush.msra.mxu0 %v374
        %1060 = vmatpush.msra.mxu0 %v373
        %1061 = vmatpush.msra.mxu0 %v372
        %1062 = vmatpush.msra.mxu0 %v371
        %1063 = vmatpush.msra.mxu0 %v370
        %1064 = vmatpush.msra.mxu0 %v369
        %1065 = vmatpush.msra.mxu0 %v368
        %1066 = vmatmul.f32.gmra.mxu0 %v948
        %v1067 = vpop.f32.mrf.mxu0
        %v1068 = vadd.f32 %v1045, %v1067
        %1069 = vmatmul.f32.gmra.mxu0 %v955
        %v1070 = vpop.f32.mrf.mxu0
        %v1071 = vadd.f32 %v1048, %v1070
        %1072 = vdwg.mxu0
        %1073 = vmatpush.msra.mxu0 %v399
        %1074 = vmatpush.msra.mxu0 %v398
        %1075 = vmatpush.msra.mxu0 %v397
        %1076 = vmatpush.msra.mxu0 %v396
        %1077 = vmatpush.msra.mxu0 %v395
        %1078 = vmatpush.msra.mxu0 %v394
        %1079 = vmatpush.msra.mxu0 %v393
        %1080 = vmatpush.msra.mxu0 %v392
        %1081 = vmatpush.msra.mxu0 %v391
        %1082 = vmatpush.msra.mxu0 %v390
        %1083 = vmatpush.msra.mxu0 %v389
        %1084 = vmatpush.msra.mxu0 %v388
        %1085 = vmatpush.msra.mxu0 %v387
        %1086 = vmatpush.msra.mxu0 %v386
        %1087 = vmatpush.msra.mxu0 %v385
        %1088 = vmatpush.msra.mxu0 %v384
        %1089 = vmatmul.f32.gmra.mxu0 %v949
        %v1090 = vpop.f32.mrf.mxu0
        %v1091 = vadd.f32 %v1068, %v1090
        %1092 = vmatmul.f32.gmra.mxu0 %v956
        %v1093 = vpop.f32.mrf.mxu0
        %v1094 = vadd.f32 %v1071, %v1093
        %1095 = vdwg.mxu0
        %1096 = vmatpush.msra.mxu0 %v415
        %1097 = vmatpush.msra.mxu0 %v414
        %1098 = vmatpush.msra.mxu0 %v413
        %1099 = vmatpush.msra.mxu0 %v412
        %1100 = vmatpush.msra.mxu0 %v411
        %1101 = vmatpush.msra.mxu0 %v410
        %1102 = vmatpush.msra.mxu0 %v409
        %1103 = vmatpush.msra.mxu0 %v408
        %1104 = vmatpush.msra.mxu0 %v407
        %1105 = vmatpush.msra.mxu0 %v406
        %1106 = vmatpush.msra.mxu0 %v405
        %1107 = vmatpush.msra.mxu0 %v404
        %1108 = vmatpush.msra.mxu0 %v403
        %1109 = vmatpush.msra.mxu0 %v402
        %1110 = vmatpush.msra.mxu0 %v401
        %1111 = vmatpush.msra.mxu0 %v400
        %1112 = vmatmul.f32.gmra.mxu0 %v950
        %v1113 = vpop.f32.mrf.mxu0
        %v1114 = vadd.f32 %v1091, %v1113
        %1115 = vmatmul.f32.gmra.mxu0 %v957
        %v1116 = vpop.f32.mrf.mxu0
        %v1117 = vadd.f32 %v1094, %v1116
        %1118 = vdwg.mxu0
        %v1119 = vmax.f32 %v586, %v762
        %v1120 = vmax.f32 %v589, %v765
        %v1121 = vmax.f32 %v938, %v1114
        %v1122 = vmax.f32 %v941, %v1117
        %v1123 = vmax.f32 %v1119, %v1121
        %v1124 = vmax.f32 %v1120, %v1122
        %v1125 = vld [vmem:[%s2] sm:$0x1]
        %v1127 = vperm.slane %v1125, 0
        %v1129 = vadd.f32 %v1123, %v1127
        %v1130 = vadd.f32 %v1124, %v1127
        %vm1131 = vcmask 523264
        %1132 = vst.msk [vmem:[%s302] sm:$0xff] %vm1131, %v1129
        %1133 = vst.msk [vmem:[%s302 + $0x8] sm:$0xff] %vm1131, %v1130
        %s1134 = smul.u32 2, %s14
        %p1135 = scmp.lt.s32.totalorder %s1134, 3
        %s1136 = scalar_select %p1135, %s1134, 3
        %s1137 = smul.addr %s1136, 8
        %s1138 = scalar_lea.vmem %s3, %s1137
        // Predicated region
        $region56: #{net_forward.6} parent=50 // pred_check
          %p1139 = pneg %p100
        $region57: #{net_forward.6} parent=50 // pred_check_branch
          %1141 = sbr.rel (%p1139) target = $region59
        $region58: #{net_forward.6} parent=50 // pred_region
          %s1142 = smul.u32 2, %s14
        $region59: #{net_forward.6} parent=50 // pred_fallthru
          _
      $region51: #{net_forward.6} parent=5 // pred_fallthru
        _
      %p1143 = scmp.le.s32.totalorder 2, %s9
      // Predicated region
      $region60: #{net_forward.6} parent=5 // pred_check
        %p1144 = pneg %p1143
      $region61: #{net_forward.6} parent=5 // pred_check_branch
        %1146 = sbr.rel (%p1144) target = $region63
      $region62: #{net_forward.6} parent=5 // pred_region
        %s1147 = ssub.s32 %s9, 2
        // Predicated region
        $region64: #{net_forward.6} parent=62 // pred_check
          %p1148 = pneg %p106
        $region65: #{net_forward.6} parent=62 // pred_check_branch
          %1150 = sbr.rel (%p1148) target = $region67
        $region66: #{net_forward.6} parent=62 // pred_region
          %s1151 = smul.u32 2, %s15
          %p1152 = scmp.lt.s32.totalorder %s1151, 3
          %s1153 = scalar_select %p1152, %s1151, 3
          %s1154 = smul.addr %s1153, 8
          %s1155 = scalar_lea.vmem %s3, %s1154
        $region67: #{net_forward.6} parent=62 // pred_fallthru
          _
      $region63: #{net_forward.6} parent=5 // pred_fallthru
        _
    $region6: #{net_forward.6} parent=1 // loop_footer
      %s13 = sadd.s32 1, %s9
    $region7: #{net_forward.6} parent=1 // loop_footer_branch
      %8 = sbr.rel target = $region3
    $region8: #{net_forward.6} parent=1 // loop_exit
      _

// kernel: net_forward.7
$region0: #{net_forward.7}
  #allocation0 [shape = 'u32[]', space=smem, size = 0x4, offset = 0x4, fixed_abs, tag = 'smem constant byte address 0x4 - core index']
  #allocation1 [shape = 'u32[72,128]{1,0:T(1,128)}', space=vmem, size = 0x9000, scoped, tag = 'internal scratch']
  %s0 = inlined_call_operand.vmem [shape: f32[2,1024], index: 0, kind: input, shape index: {}]
  %s1 = inlined_call_operand.vmem [shape: f32[1024,64], index: 1, kind: input, shape index: {}]
  %s2 = inlined_call_operand.vmem [shape: f32[1,64], index: 2, kind: input, shape index: {}]
  %s3 = inlined_call_operand.vmem [shape: f32[64,10], index: 3, kind: input, shape index: {}]
  %s4 = inlined_call_operand.vmem [shape: f32[1,10], index: 4, kind: input, shape index: {}]
  %s5 = inlined_call_operand.hbm [shape: f32[2,10], index: 5, kind: output, shape index: {}]
  %s6 = sld [smem:[#allocation0]]
  $region30: #{net_forward.7} parent=0
    _
  %s8 = ssub.s32 1, %s6
  %s9 = scalar_select 0, %s8, %s6
  $region1: #{net_forward.7} parent=0
    #allocation2 [shape = 'u8[1024]{0}', space=vmem, size = 0x400, scoped, tag = 'output window, operand 0, single buffered']
    #allocation3 [shape = 's32[1]{0}', space=sflag, size = 0x4, scoped, tag = 'scoped memory for net_forward.7']
    %10 = vsyncpa [#allocation3], 0
    // Predicated region
    $region2: #{net_forward.7} parent=1 // pred_check
      _
    $region3: #{net_forward.7} parent=1 // pred_check_branch
      %12 = sbr.rel (0) target = $region5
    $region4: #{net_forward.7} parent=1 // pred_region
      _
    $region5: #{net_forward.7} parent=1 // pred_fallthru
      _
    // Predicated region
    $region6: #{net_forward.7} parent=1 // pred_check
      _
    $region7: #{net_forward.7} parent=1 // pred_check_branch
      %14 = sbr.rel (0) target = $region9
    $region8: #{net_forward.7} parent=1 // pred_region
      _
    $region9: #{net_forward.7} parent=1 // pred_fallthru
      _
    // Predicated region
    $region10: #{net_forward.7} parent=1 // pred_check
      _
    $region11: #{net_forward.7} parent=1 // pred_check_branch
      %16 = sbr.rel (0) target = $region13
    $region12: #{net_forward.7} parent=1 // pred_region
      _
    $region13: #{net_forward.7} parent=1 // pred_fallthru
      _
    // Predicated region
    $region14: #{net_forward.7} parent=1 // pred_check
      _
    $region15: #{net_forward.7} parent=1 // pred_check_branch
      %18 = sbr.rel (0) target = $region17
    $region16: #{net_forward.7} parent=1 // pred_region
      _
    $region17: #{net_forward.7} parent=1 // pred_fallthru
      _
    // Predicated region
    $region18: #{net_forward.7} parent=1 // pred_check
      _
    $region19: #{net_forward.7} parent=1 // pred_check_branch
      %20 = sbr.rel (0) target = $region21
    $region20: #{net_forward.7} parent=1 // pred_region
      _
    $region21: #{net_forward.7} parent=1 // pred_fallthru
      _
    %v21 = vld [vmem:[%s0] sm:$0xff]
    %v22 = vld [vmem:[%s0 + $0x8] sm:$0xff]
    %v23 = vld [vmem:[%s1] sm:$0xff]
    %v24 = vld [vmem:[%s1 + $0x8] sm:$0xff]
    %v25 = vld [vmem:[%s1 + $0x10] sm:$0xff]
    %v26 = vld [vmem:[%s1 + $0x18] sm:$0xff]
    %v27 = vld [vmem:[%s1 + $0x20] sm:$0xff]
    %v28 = vld [vmem:[%s1 + $0x28] sm:$0xff]
    %v29 = vld [vmem:[%s1 + $0x30] sm:$0xff]
    %v30 = vld [vmem:[%s1 + $0x38] sm:$0xff]
    %v31 = vld [vmem:[%s1 + $0x40] sm:$0xff]
    %v32 = vld [vmem:[%s1 + $0x48] sm:$0xff]
    %v33 = vld [vmem:[%s1 + $0x50] sm:$0xff]
    %v34 = vld [vmem:[%s1 + $0x58] sm:$0xff]
    %v35 = vld [vmem:[%s1 + $0x60] sm:$0xff]
    %v36 = vld [vmem:[%s1 + $0x68] sm:$0xff]
    %v37 = vld [vmem:[%s1 + $0x70] sm:$0xff]
    %v38 = vld [vmem:[%s1 + $0x78] sm:$0xff]
    %v39 = vld [vmem:[%s1 + $0x80] sm:$0xff]
    %v40 = vld [vmem:[%s1 + $0x88] sm:$0xff]
    %v41 = vld [vmem:[%s1 + $0x90] sm:$0xff]
    %v42 = vld [vmem:[%s1 + $0x98] sm:$0xff]
    %v43 = vld [vmem:[%s1 + $0xa0] sm:$0xff]
    %v44 = vld [vmem:[%s1 + $0xa8] sm:$0xff]
    %v45 = vld [vmem:[%s1 + $0xb0] sm:$0xff]
    %v46 = vld [vmem:[%s1 + $0xb8] sm:$0xff]
    %v47 = vld [vmem:[%s1 + $0xc0] sm:$0xff]
    %v48 = vld [vmem:[%s1 + $0xc8] sm:$0xff]
    %v49 = vld [vmem:[%s1 + $0xd0] sm:$0xff]
    %v50 = vld [vmem:[%s1 + $0xd8] sm:$0xff]
    %v51 = vld [vmem:[%s1 + $0xe0] sm:$0xff]
    %v52 = vld [vmem:[%s1 + $0xe8] sm:$0xff]
    %v53 = vld [vmem:[%s1 + $0xf0] sm:$0xff]
    %v54 = vld [vmem:[%s1 + $0xf8] sm:$0xff]
    %v55 = vld [vmem:[%s1 + $0x100] sm:$0xff]
    %v56 = vld [vmem:[%s1 + $0x108] sm:$0xff]
    %v57 = vld [vmem:[%s1 + $0x110] sm:$0xff]
    %v58 = vld [vmem:[%s1 + $0x118] sm:$0xff]
    %v59 = vld [vmem:[%s1 + $0x120] sm:$0xff]
    %v60 = vld [vmem:[%s1 + $0x128] sm:$0xff]
    %v61 = vld [vmem:[%s1 + $0x130] sm:$0xff]
    %v62 = vld [vmem:[%s1 + $0x138] sm:$0xff]
    %v63 = vld [vmem:[%s1 + $0x140] sm:$0xff]
    %v64 = vld [vmem:[%s1 + $0x148] sm:$0xff]
    %v65 = vld [vmem:[%s1 + $0x150] sm:$0xff]
    %v66 = vld [vmem:[%s1 + $0x158] sm:$0xff]
    %v67 = vld [vmem:[%s1 + $0x160] sm:$0xff]
    %v68 = vld [vmem:[%s1 + $0x168] sm:$0xff]
    %v69 = vld [vmem:[%s1 + $0x170] sm:$0xff]
    %v70 = vld [vmem:[%s1 + $0x178] sm:$0xff]
    %v71 = vld [vmem:[%s1 + $0x180] sm:$0xff]
    %v72 = vld [vmem:[%s1 + $0x188] sm:$0xff]
    %v73 = vld [vmem:[%s1 + $0x190] sm:$0xff]
    %v74 = vld [vmem:[%s1 + $0x198] sm:$0xff]
    %v75 = vld [vmem:[%s1 + $0x1a0] sm:$0xff]
    %v76 = vld [vmem:[%s1 + $0x1a8] sm:$0xff]
    %v77 = vld [vmem:[%s1 + $0x1b0] sm:$0xff]
    %v78 = vld [vmem:[%s1 + $0x1b8] sm:$0xff]
    %v79 = vld [vmem:[%s1 + $0x1c0] sm:$0xff]
    %v80 = vld [vmem:[%s1 + $0x1c8] sm:$0xff]
    %v81 = vld [vmem:[%s1 + $0x1d0] sm:$0xff]
    %v82 = vld [vmem:[%s1 + $0x1d8] sm:$0xff]
    %v83 = vld [vmem:[%s1 + $0x1e0] sm:$0xff]
    %v84 = vld [vmem:[%s1 + $0x1e8] sm:$0xff]
    %v85 = vld [vmem:[%s1 + $0x1f0] sm:$0xff]
    %v86 = vld [vmem:[%s1 + $0x1f8] sm:$0xff]
    %v87 = vld [vmem:[%s1 + $0x200] sm:$0xff]
    %v88 = vld [vmem:[%s1 + $0x208] sm:$0xff]
    %v89 = vld [vmem:[%s1 + $0x210] sm:$0xff]
    %v90 = vld [vmem:[%s1 + $0x218] sm:$0xff]
    %v91 = vld [vmem:[%s1 + $0x220] sm:$0xff]
    %v92 = vld [vmem:[%s1 + $0x228] sm:$0xff]
    %v93 = vld [vmem:[%s1 + $0x230] sm:$0xff]
    %v94 = vld [vmem:[%s1 + $0x238] sm:$0xff]
    %v95 = vld [vmem:[%s1 + $0x240] sm:$0xff]
    %v96 = vld [vmem:[%s1 + $0x248] sm:$0xff]
    %v97 = vld [vmem:[%s1 + $0x250] sm:$0xff]
    %v98 = vld [vmem:[%s1 + $0x258] sm:$0xff]
    %v99 = vld [vmem:[%s1 + $0x260] sm:$0xff]
    %v100 = vld [vmem:[%s1 + $0x268] sm:$0xff]
    %v101 = vld [vmem:[%s1 + $0x270] sm:$0xff]
    %v102 = vld [vmem:[%s1 + $0x278] sm:$0xff]
    %v103 = vld [vmem:[%s1 + $0x280] sm:$0xff]
    %v104 = vld [vmem:[%s1 + $0x288] sm:$0xff]
    %v105 = vld [vmem:[%s1 + $0x290] sm:$0xff]
    %v106 = vld [vmem:[%s1 + $0x298] sm:$0xff]
    %v107 = vld [vmem:[%s1 + $0x2a0] sm:$0xff]
    %v108 = vld [vmem:[%s1 + $0x2a8] sm:$0xff]
    %v109 = vld [vmem:[%s1 + $0x2b0] sm:$0xff]
    %v110 = vld [vmem:[%s1 + $0x2b8] sm:$0xff]
    %v111 = vld [vmem:[%s1 + $0x2c0] sm:$0xff]
    %v112 = vld [vmem:[%s1 + $0x2c8] sm:$0xff]
    %v113 = vld [vmem:[%s1 + $0x2d0] sm:$0xff]
    %v114 = vld [vmem:[%s1 + $0x2d8] sm:$0xff]
    %v115 = vld [vmem:[%s1 + $0x2e0] sm:$0xff]
    %v116 = vld [vmem:[%s1 + $0x2e8] sm:$0xff]
    %v117 = vld [vmem:[%s1 + $0x2f0] sm:$0xff]
    %v118 = vld [vmem:[%s1 + $0x2f8] sm:$0xff]
    %v119 = vld [vmem:[%s1 + $0x300] sm:$0xff]
    %v120 = vld [vmem:[%s1 + $0x308] sm:$0xff]
    %v121 = vld [vmem:[%s1 + $0x310] sm:$0xff]
    %v122 = vld [vmem:[%s1 + $0x318] sm:$0xff]
    %v123 = vld [vmem:[%s1 + $0x320] sm:$0xff]
    %v124 = vld [vmem:[%s1 + $0x328] sm:$0xff]
    %v125 = vld [vmem:[%s1 + $0x330] sm:$0xff]
    %v126 = vld [vmem:[%s1 + $0x338] sm:$0xff]
    %v127 = vld [vmem:[%s1 + $0x340] sm:$0xff]
    %v128 = vld [vmem:[%s1 + $0x348] sm:$0xff]
    %v129 = vld [vmem:[%s1 + $0x350] sm:$0xff]
    %v130 = vld [vmem:[%s1 + $0x358] sm:$0xff]
    %v131 = vld [vmem:[%s1 + $0x360] sm:$0xff]
    %v132 = vld [vmem:[%s1 + $0x368] sm:$0xff]
    %v133 = vld [vmem:[%s1 + $0x370] sm:$0xff]
    %v134 = vld [vmem:[%s1 + $0x378] sm:$0xff]
    %v135 = vld [vmem:[%s1 + $0x380] sm:$0xff]
    %v136 = vld [vmem:[%s1 + $0x388] sm:$0xff]
    %v137 = vld [vmem:[%s1 + $0x390] sm:$0xff]
    %v138 = vld [vmem:[%s1 + $0x398] sm:$0xff]
    %v139 = vld [vmem:[%s1 + $0x3a0] sm:$0xff]
    %v140 = vld [vmem:[%s1 + $0x3a8] sm:$0xff]
    %v141 = vld [vmem:[%s1 + $0x3b0] sm:$0xff]
    %v142 = vld [vmem:[%s1 + $0x3b8] sm:$0xff]
    %v143 = vld [vmem:[%s1 + $0x3c0] sm:$0xff]
    %v144 = vld [vmem:[%s1 + $0x3c8] sm:$0xff]
    %v145 = vld [vmem:[%s1 + $0x3d0] sm:$0xff]
    %v146 = vld [vmem:[%s1 + $0x3d8] sm:$0xff]
    %v147 = vld [vmem:[%s1 + $0x3e0] sm:$0xff]
    %v148 = vld [vmem:[%s1 + $0x3e8] sm:$0xff]
    %v149 = vld [vmem:[%s1 + $0x3f0] sm:$0xff]
    %v150 = vld [vmem:[%s1 + $0x3f8] sm:$0xff]
    %v151 = vld [vmem:[%s2] sm:$0x1]
    %v153 = vperm.slane %v151, 0
    %157 = vst [vmem:[#allocation1] ss:$4 sm:$0xff] %v21
    %s158 = scalar_lea.vmem [#allocation1], 32
    %159 = vst [vmem:[%s158] ss:$4 sm:$0xff] %v22
    %v160 = vld.sshfl [vmem:[#allocation1] sm:$0xff pattern:$0x73625140]
    %v161 = vld.sshfl [vmem:[#allocation1 + $0x8] sm:$0xff pattern:$0x73625140]
    %v162 = vld.sshfl [vmem:[#allocation1 + $0x10] sm:$0xff pattern:$0x73625140]
    %v163 = vld.sshfl [vmem:[#allocation1 + $0x18] sm:$0xff pattern:$0x73625140]
    %v164 = vld.sshfl [vmem:[#allocation1 + $0x20] sm:$0xff pattern:$0x73625140]
    %v165 = vld.sshfl [vmem:[#allocation1 + $0x28] sm:$0xff pattern:$0x73625140]
    %v166 = vld.sshfl [vmem:[#allocation1 + $0x30] sm:$0xff pattern:$0x73625140]
    %v167 = vld.sshfl [vmem:[#allocation1 + $0x38] sm:$0xff pattern:$0x73625140]
    %176 = vmatpush.msra.mxu0 %v38
    %177 = vmatpush.msra.mxu0 %v37
    %178 = vmatpush.msra.mxu0 %v36
    %179 = vmatpush.msra.mxu0 %v35
    %180 = vmatpush.msra.mxu0 %v34
    %181 = vmatpush.msra.mxu0 %v33
    %182 = vmatpush.msra.mxu0 %v32
    %183 = vmatpush.msra.mxu0 %v31
    %184 = vmatpush.msra.mxu0 %v30
    %185 = vmatpush.msra.mxu0 %v29
    %186 = vmatpush.msra.mxu0 %v28
    %187 = vmatpush.msra.mxu0 %v27
    %188 = vmatpush.msra.mxu0 %v26
    %189 = vmatpush.msra.mxu0 %v25
    %190 = vmatpush.msra.mxu0 %v24
    %191 = vmatpush.msra.mxu0 %v23
    %192 = vmatmul.f32.gmra.mxu0 %v160
    %v193 = vpop.f32.mrf.mxu0
    %v194 = vadd.f32 %v153, %v193
    %195 = vdwg.mxu0
    %196 = vmatpush.msra.mxu0 %v54
    %197 = vmatpush.msra.mxu0 %v53
    %198 = vmatpush.msra.mxu0 %v52
    %199 = vmatpush.msra.mxu0 %v51
    %200 = vmatpush.msra.mxu0 %v50
    %201 = vmatpush.msra.mxu0 %v49
    %202 = vmatpush.msra.mxu0 %v48
    %203 = vmatpush.msra.mxu0 %v47
    %204 = vmatpush.msra.mxu0 %v46
    %205 = vmatpush.msra.mxu0 %v45
    %206 = vmatpush.msra.mxu0 %v44
    %207 = vmatpush.msra.mxu0 %v43
    %208 = vmatpush.msra.mxu0 %v42
    %209 = vmatpush.msra.mxu0 %v41
    %210 = vmatpush.msra.mxu0 %v40
    %211 = vmatpush.msra.mxu0 %v39
    %212 = vmatmul.f32.gmra.mxu0 %v161
    %v213 = vpop.f32.mrf.mxu0
    %v214 = vadd.f32 %v194, %v213
    %215 = vdwg.mxu0
    %216 = vmatpush.msra.mxu0 %v70
    %217 = vmatpush.msra.mxu0 %v69
    %218 = vmatpush.msra.mxu0 %v68
    %219 = vmatpush.msra.mxu0 %v67
    %220 = vmatpush.msra.mxu0 %v66
    %221 = vmatpush.msra.mxu0 %v65
    %222 = vmatpush.msra.mxu0 %v64
    %223 = vmatpush.msra.mxu0 %v63
    %224 = vmatpush.msra.mxu0 %v62
    %225 = vmatpush.msra.mxu0 %v61
    %226 = vmatpush.msra.mxu0 %v60
    %227 = vmatpush.msra.mxu0 %v59
    %228 = vmatpush.msra.mxu0 %v58
    %229 = vmatpush.msra.mxu0 %v57
    %230 = vmatpush.msra.mxu0 %v56
    %231 = vmatpush.msra.mxu0 %v55
    %232 = vmatmul.f32.gmra.mxu0 %v162
    %v233 = vpop.f32.mrf.mxu0
    %v234 = vadd.f32 %v214, %v233
    %235 = vdwg.mxu0
    %236 = vmatpush.msra.mxu0 %v86
    %237 = vmatpush.msra.mxu0 %v85
    %238 = vmatpush.msra.mxu0 %v84
    %239 = vmatpush.msra.mxu0 %v83
    %240 = vmatpush.msra.mxu0 %v82
    %241 = vmatpush.msra.mxu0 %v81
    %242 = vmatpush.msra.mxu0 %v80
    %243 = vmatpush.msra.mxu0 %v79
    %244 = vmatpush.msra.mxu0 %v78
    %245 = vmatpush.msra.mxu0 %v77
    %246 = vmatpush.msra.mxu0 %v76
    %247 = vmatpush.msra.mxu0 %v75
    %248 = vmatpush.msra.mxu0 %v74
    %249 = vmatpush.msra.mxu0 %v73
    %250 = vmatpush.msra.mxu0 %v72
    %251 = vmatpush.msra.mxu0 %v71
    %252 = vmatmul.f32.gmra.mxu0 %v163
    %v253 = vpop.f32.mrf.mxu0
    %v254 = vadd.f32 %v234, %v253
    %255 = vdwg.mxu0
    %256 = vmatpush.msra.mxu0 %v102
    %257 = vmatpush.msra.mxu0 %v101
    %258 = vmatpush.msra.mxu0 %v100
    %259 = vmatpush.msra.mxu0 %v99
    %260 = vmatpush.msra.mxu0 %v98
    %261 = vmatpush.msra.mxu0 %v97
    %262 = vmatpush.msra.mxu0 %v96
    %263 = vmatpush.msra.mxu0 %v95
    %264 = vmatpush.msra.mxu0 %v94
    %265 = vmatpush.msra.mxu0 %v93
    %266 = vmatpush.msra.mxu0 %v92
    %267 = vmatpush.msra.mxu0 %v91
    %268 = vmatpush.msra.mxu0 %v90
    %269 = vmatpush.msra.mxu0 %v89
    %270 = vmatpush.msra.mxu0 %v88
    %271 = vmatpush.msra.mxu0 %v87
    %272 = vmatmul.f32.gmra.mxu0 %v164
    %v273 = vpop.f32.mrf.mxu0
    %v274 = vadd.f32 %v254, %v273
    %275 = vdwg.mxu0
    %276 = vmatpush.msra.mxu0 %v118
    %277 = vmatpush.msra.mxu0 %v117
    %278 = vmatpush.msra.mxu0 %v116
    %279 = vmatpush.msra.mxu0 %v115
    %280 = vmatpush.msra.mxu0 %v114
    %281 = vmatpush.msra.mxu0 %v113
    %282 = vmatpush.msra.mxu0 %v112
    %283 = vmatpush.msra.mxu0 %v111
    %284 = vmatpush.msra.mxu0 %v110
    %285 = vmatpush.msra.mxu0 %v109
    %286 = vmatpush.msra.mxu0 %v108
    %287 = vmatpush.msra.mxu0 %v107
    %288 = vmatpush.msra.mxu0 %v106
    %289 = vmatpush.msra.mxu0 %v105
    %290 = vmatpush.msra.mxu0 %v104
    %291 = vmatpush.msra.mxu0 %v103
    %292 = vmatmul.f32.gmra.mxu0 %v165
    %v293 = vpop.f32.mrf.mxu0
    %v294 = vadd.f32 %v274, %v293
    %295 = vdwg.mxu0
    %296 = vmatpush.msra.mxu0 %v134
    %297 = vmatpush.msra.mxu0 %v133
    %298 = vmatpush.msra.mxu0 %v132
    %299 = vmatpush.msra.mxu0 %v131
    %300 = vmatpush.msra.mxu0 %v130
    %301 = vmatpush.msra.mxu0 %v129
    %302 = vmatpush.msra.mxu0 %v128
    %303 = vmatpush.msra.mxu0 %v127
    %304 = vmatpush.msra.mxu0 %v126
    %305 = vmatpush.msra.mxu0 %v125
    %306 = vmatpush.msra.mxu0 %v124
    %307 = vmatpush.msra.mxu0 %v123
    %308 = vmatpush.msra.mxu0 %v122
    %309 = vmatpush.msra.mxu0 %v121
    %310 = vmatpush.msra.mxu0 %v120
    %311 = vmatpush.msra.mxu0 %v119
    %312 = vmatmul.f32.gmra.mxu0 %v166
    %v313 = vpop.f32.mrf.mxu0
    %v314 = vadd.f32 %v294, %v313
    %315 = vdwg.mxu0
    %316 = vmatpush.msra.mxu0 %v150
    %317 = vmatpush.msra.mxu0 %v149
    %318 = vmatpush.msra.mxu0 %v148
    %319 = vmatpush.msra.mxu0 %v147
    %320 = vmatpush.msra.mxu0 %v146
    %321 = vmatpush.msra.mxu0 %v145
    %322 = vmatpush.msra.mxu0 %v144
    %323 = vmatpush.msra.mxu0 %v143
    %324 = vmatpush.msra.mxu0 %v142
    %325 = vmatpush.msra.mxu0 %v141
    %326 = vmatpush.msra.mxu0 %v140
    %327 = vmatpush.msra.mxu0 %v139
    %328 = vmatpush.msra.mxu0 %v138
    %329 = vmatpush.msra.mxu0 %v137
    %330 = vmatpush.msra.mxu0 %v136
    %331 = vmatpush.msra.mxu0 %v135
    %332 = vmatmul.f32.gmra.mxu0 %v167
    %v333 = vpop.f32.mrf.mxu0
    %v334 = vadd.f32 %v314, %v333
    %335 = vdwg.mxu0
    %v336 = vld [vmem:[%s3] sm:$0xff]
    %v337 = vld [vmem:[%s3 + $0x8] sm:$0xff]
    %v338 = vld [vmem:[%s3 + $0x10] sm:$0xff]
    %v339 = vld [vmem:[%s3 + $0x18] sm:$0xff]
    %v340 = vld [vmem:[%s3 + $0x20] sm:$0xff]
    %v341 = vld [vmem:[%s3 + $0x28] sm:$0xff]
    %v342 = vld [vmem:[%s3 + $0x30] sm:$0xff]
    %v343 = vld [vmem:[%s3 + $0x38] sm:$0xff]
    %v344 = vld [vmem:[%s4] sm:$0x1]
    %v346 = vperm.slane %v344, 0
    %vm348 = vcmask 523264
    %v350 = vsel %vm348, %v334, 0
    %352 = vmatpush.msra.mxu0 0.0
    %353 = vmatpush.msra.mxu0 0.0
    %354 = vmatpush.msra.mxu0 0.0
    %355 = vmatpush.msra.mxu0 0.0
    %356 = vmatpush.msra.mxu0 0.0
    %357 = vmatpush.msra.mxu0 0.0
    %358 = vmatpush.msra.mxu0 0.0
    %359 = vmatpush.msra.mxu0 0.0
    %360 = vmatpush.msra.mxu0 %v343
    %361 = vmatpush.msra.mxu0 %v342
    %362 = vmatpush.msra.mxu0 %v341
    %363 = vmatpush.msra.mxu0 %v340
    %364 = vmatpush.msra.mxu0 %v339
    %365 = vmatpush.msra.mxu0 %v338
    %366 = vmatpush.msra.mxu0 %v337
    %367 = vmatpush.msra.mxu0 %v336
    %368 = vmatmul.f32.gmra.mxu0 %v350
    %v369 = vpop.f32.mrf.mxu0
    %v370 = vadd.f32 %v346, %v369
    %371 = vdwg.mxu0
    %vm372 = vcmask 74752
    %373 = vst.msk [vmem:[#allocation2] sm:$0x3] %vm372, %v370
    // Predicated region
    $region22: #{net_forward.7} parent=1 // pred_check
      _
    $region23: #{net_forward.7} parent=1 // pred_check_branch
      %375 = sbr.rel (0) target = $region25
    $region24: #{net_forward.7} parent=1 // pred_region
      %377 = vsyncadd [#allocation3], 0
      %s379 = sshll.u32 [#allocation2], 4
      %s380 = int_to_ptr.vmem [resolvable:$true] %s379
      %s381 = sshll.u32 %s5, 4
      %s382 = int_to_ptr.hbm [resolvable:$true] %s381
      %384 = dma.vmem_to_hbm [thread:$0]  %s380, 32, %s382, [#allocation3]
    $region25: #{net_forward.7} parent=1 // pred_fallthru
      _
    // Predicated region
    $region26: #{net_forward.7} parent=1 // pred_check
      _
    $region27: #{net_forward.7} parent=1 // pred_check_branch
      %386 = sbr.rel (0) target = $region29
    $region28: #{net_forward.7} parent=1 // pred_region
      %388 = dma.done [#allocation3], 32
    $region29: #{net_forward.7} parent=1 // pred_fallthru
      _
    %389 = vsyncpa [#allocation3], 1

</llo_original>
